<compile_context>
chip_gen: v5e
topology: v5e:2x2
jax: 0.10.0
libtpu: 0.0.40
codegen_flags: <defaults>
</compile_context>

<pallas_src>
import math

import numpy as np

import jax
import jax.numpy as jnp
from jax.experimental import pallas as pl
from jax.experimental.pallas import tpu as pltpu

# ---------------------------------------------------------------------------
# small config consistent with the module:
#   d_model % n_heads == 0, and n_heads == 8 because _reset_parameters builds
#   an 8-direction grid for the sampling-offset bias.
# ---------------------------------------------------------------------------
D_MODEL = 32
N_LEVELS = 2
N_HEADS = 8
N_POINTS = 2
C_HEAD = D_MODEL // N_HEADS          # 4
HP = N_HEADS * N_POINTS              # 16
LP = N_LEVELS * N_POINTS             # 4
HLP = N_HEADS * LP                   # 32


# ---------------------------------------------------------------------------
# fused Pallas kernel
# ---------------------------------------------------------------------------
def make_fused_kernel(bs, Q, level_hw):
    C = D_MODEL
    NH = N_HEADS
    NQ = bs * Q                      # lane-dense query/output width

    def kernel(q_ref, refps_ref, val0_ref, val1_ref,
               woff_ref, wv_ref, bv_ref,
               waw_ref, baw_ref, wout_ref, bout_ref,
               yc0_ref, xc0_ref, yc1_ref, xc1_ref, bc_ref,
               out_ref):
        q = q_ref[...]                                           # (C, NQ)

        # attention-weight conv + Sigmoid (the module's "softmax").
        # rows are pre-ordered (level, point, head) by the wrapper.
        aw = jax.nn.sigmoid(
            jnp.dot(waw_ref[...], q, preferred_element_type=jnp.float32)
            + baw_ref[...])                                      # (HLP, NQ)

        val_refs = (val0_ref, val1_ref)
        yc_refs = (yc0_ref, yc1_ref)
        xc_refs = (xc0_ref, xc1_ref)

        res = jnp.zeros((C, NQ), jnp.float32)

        for l, (vh, vw) in enumerate(level_hw):
            NV = bs * vh * vw            # value positions with batch folded in

            # sampling pixel coords for all (coord, point, head) rows.
            # refps is pre-scaled in the wrapper so this directly yields
            #   pix = (ref + off/dim) * (dim-1)     (align_corners=True)
            # rows 0..HP-1 = x (point-major, head-minor); rows HP..2HP-1 = y.
            pix = (jnp.dot(woff_ref[l], q, preferred_element_type=jnp.float32)
                   + refps_ref[l])                               # (2*HP, NQ)

            # 1x1 value projection for this level
            vproj = (jnp.dot(wv_ref[l], val_refs[l][...],
                             preferred_element_type=jnp.float32)
                     + bv_ref[l])                                # (C, NV)

            # precomputed static coordinate constants (host-side, tiny DMAs):
            #   yc : gapped y row coordinate  b*(vh+1)+y        (NV, 1)
            #   xc : x row coordinate         x                 (NV, 1)
            #   bc : per-query-column batch offset b_q*(vh+1)   (1, NQ)
            yc = yc_refs[l][...]
            xc = xc_refs[l][...]
            bc = bc_ref[l]

            parts = []
            for h in range(NH):
                vproj_h = vproj[h * C_HEAD:(h + 1) * C_HEAD, :]   # (C_HEAD, NV)
                acc_h = jnp.zeros((C_HEAD, NQ), jnp.float32)
                for p in range(N_POINTS):
                    r = p * NH + h
                    ix = pix[r:r + 1, :]                          # (1, NQ)
                    iy = pix[HP + r:HP + r + 1, :]                # (1, NQ)
                    a = aw[(l * N_POINTS + p) * NH + h:
                           (l * N_POINTS + p) * NH + h + 1, :]    # (1, NQ)
                    # zeros padding: clamping y into the just-outside band and
                    # adding the per-batch gap offset reproduces grid_sample's
                    # zeros padding and prevents bleed across folded batches.
                    iyg = jnp.clip(iy, -1.0, float(vh)) + bc
                    tent = (jnp.maximum(1.0 - jnp.abs(ix - xc), 0.0)
                            * jnp.maximum(1.0 - jnp.abs(iyg - yc), 0.0))  # (NV,NQ)
                    # sample + point contribution on the MXU; the attention
                    # weight is a per-column scale applied AFTER the matmul
                    # (NQ mults instead of NV*NQ).
                    acc_h = acc_h + a * jnp.dot(
                        vproj_h, tent, preferred_element_type=jnp.float32)
                parts.append(acc_h)                               # (C_HEAD, NQ)

            res = res + jnp.concatenate(parts, axis=0)            # (C, NQ)

        # 1x1 output projection, lane-dense (C, bs*Q) store.
        out_ref[...] = (jnp.dot(wout_ref[...], res,
                                preferred_element_type=jnp.float32)
                        + bout_ref[...])

    return kernel


# ---------------------------------------------------------------------------
# wrapper: parameter re-layout + lane-dense input layout (pure glue)
# ---------------------------------------------------------------------------
def motr_deform_attn(params, query, reference_points, values):
    assert len(values) == N_LEVELS == 2
    bs, C, H, W = query.shape
    Q = H * W
    NQ = bs * Q

    # channel-major, batch folded into the lane dimension
    q_cl = query.reshape(bs, C, Q).transpose(1, 0, 2).reshape(C, NQ)

    # reference points -> rows ordered (coord, point, head), cols (batch, query)
    ref = reference_points.reshape(bs, N_HEADS, N_POINTS, 2, Q)
    ref_cl = ref.transpose(3, 2, 1, 0, 4).reshape(2 * HP, NQ)

    level_hw = tuple((int(v.shape[-2]), int(v.shape[-1])) for v in values)
    vals_cl = [v.reshape(bs, C, h * w).transpose(1, 0, 2).reshape(C, bs * h * w)
               for v, (h, w) in zip(values, level_hw)]

    # per-level offset-conv params: reorder rows to (coord, point, head) and
    # pre-scale so the kernel emits pixel coordinates directly:
    #   pix = (ref + (Wq+b)/dim)*(dim-1) = W'q + (b' + ref*(dim-1))
    # The ref-dependent part (refps) is computed here, not in the kernel.
    woff_l, refps_l, wv_l, bv_l = [], [], [], []
    yc_l, xc_l, bc_l = [], [], []
    for i, (vh, vw) in enumerate(level_hw):
        w = params['off_w'][i].reshape(N_HEADS, N_POINTS, 2, C).transpose(2, 1, 0, 3)
        b = params['off_b'][i].reshape(N_HEADS, N_POINTS, 2).transpose(2, 1, 0)
        scale = jnp.array([(vw - 1.0) / vw, (vh - 1.0) / vh], jnp.float32)[:, None, None]
        woff_l.append((w * scale[..., None]).reshape(2 * HP, C))
        boff = (b * scale).reshape(2 * HP, 1)
        dscale = jnp.concatenate(
            [jnp.full((HP, 1), vw - 1.0, jnp.float32),
             jnp.full((HP, 1), vh - 1.0, jnp.float32)], axis=0)
        refps_l.append(ref_cl * dscale + boff)                    # (2*HP, NQ)
        wv_l.append(params['val_w'][i])
        bv_l.append(params['val_b'][i][:, None])

        # static index tensors (compile-time constants given bs/Q/level_hw),
        # built host-side with numpy and passed as tiny f32 inputs.
        Vq = vh * vw
        v_idx = np.arange(bs * Vq)
        b_idx = v_idx // Vq
        y_idx = (v_idx % Vq) // vw
        x_idx = v_idx % vw
        yc_l.append(jnp.asarray((b_idx * (vh + 1) + y_idx)[:, None], jnp.float32))
        xc_l.append(jnp.asarray(x_idx[:, None], jnp.float32))
        bcol = (np.arange(NQ) // Q).astype(np.float32) * float(vh + 1)
        bc_l.append(jnp.asarray(bcol[None, :], jnp.float32))

    woff = jnp.stack(woff_l)                 # (L, 2*HP, C)
    refps = jnp.stack(refps_l)               # (L, 2*HP, NQ)
    wv = jnp.stack(wv_l)                     # (L, C, C)
    bv = jnp.stack(bv_l)                     # (L, C, 1)
    bc = jnp.stack(bc_l)                     # (L, 1, NQ)

    # attention-weight conv rows reordered (level, point, head)
    waw = params['aw_w'].reshape(N_HEADS, N_LEVELS, N_POINTS, C) \
        .transpose(1, 2, 0, 3).reshape(HLP, C)
    baw = params['aw_b'].reshape(N_HEADS, N_LEVELS, N_POINTS) \
        .transpose(1, 2, 0).reshape(HLP, 1)
    wout = params['out_w']
    bout = params['out_b'][:, None]

    kernel = make_fused_kernel(bs, Q, level_hw)

    def full(shape):
        return pl.BlockSpec(shape, lambda i, _s=shape: (0,) * len(_s))

    operands = (q_cl, refps, vals_cl[0], vals_cl[1],
                woff, wv, bv, waw, baw, wout, bout,
                yc_l[0], xc_l[0], yc_l[1], xc_l[1], bc)

    out_cl = pl.pallas_call(
        kernel,
        out_shape=jax.ShapeDtypeStruct((C, NQ), jnp.float32),
        grid=(1,),
        in_specs=[full(op.shape) for op in operands],
        out_specs=full((C, NQ)),
        compiler_params=pltpu.CompilerParams(
            dimension_semantics=("arbitrary",),
            vmem_limit_bytes=32 * 1024 * 1024),
    )(*operands)

    return out_cl.reshape(C, bs, Q).transpose(1, 0, 2).reshape(bs, C, H, W)


# ---------------------------------------------------------------------------
# pure-JAX reference (independent of the kernel's tent/matmul formulation)
# ---------------------------------------------------------------------------
def _grid_sample_bilinear_zeros(value, grid):
    # value: (N, C, Hv, Wv); grid: (N, Hg, Wg, 2) in [-1, 1]; align_corners=True
    N, Cc, Hv, Wv = value.shape
    gx, gy = grid[..., 0], grid[..., 1]
    ix = (gx + 1.0) * 0.5 * (Wv - 1)
    iy = (gy + 1.0) * 0.5 * (Hv - 1)
    x0 = jnp.floor(ix); x1 = x0 + 1.0
    y0 = jnp.floor(iy); y1 = y0 + 1.0
    wx1 = ix - x0; wx0 = 1.0 - wx1
    wy1 = iy - y0; wy0 = 1.0 - wy1
    vflat = value.reshape(N, Cc, Hv * Wv)

    def gather(xc, yc, w):
        valid = (xc >= 0) & (xc <= Wv - 1) & (yc >= 0) & (yc <= Hv - 1)
        xi = jnp.clip(xc, 0, Wv - 1).astype(jnp.int32)
        yi = jnp.clip(yc, 0, Hv - 1).astype(jnp.int32)
        idx = (yi * Wv + xi).reshape(N, 1, -1)
        idx = jnp.broadcast_to(idx, (N, Cc, idx.shape[-1]))
        g = jnp.take_along_axis(vflat, idx, axis=2).reshape(N, Cc, *xc.shape[1:])
        return g * (w * valid.astype(value.dtype))[:, None]

    return (gather(x0, y0, wx0 * wy0) + gather(x1, y0, wx1 * wy0)
            + gather(x0, y1, wx0 * wy1) + gather(x1, y1, wx1 * wy1))


def reference_forward(params, query, reference_points, values):
    bs, C, H, W = query.shape
    Q = H * W
    q_flat = query.reshape(bs, C, Q)
    sv_list = []
    for i in range(N_LEVELS):
        vh, vw = int(values[i].shape[-2]), int(values[i].shape[-1])
        off = jnp.einsum('oc,bcq->boq', params['off_w'][i], q_flat) \
            + params['off_b'][i][None, :, None]
        off = off.reshape(bs * N_HEADS * N_POINTS, 2, H, W)
        div = jnp.array([1.0 / vw, 1.0 / vh], jnp.float32).reshape(1, 2, 1, 1)
        loc = reference_points + off * div
        grid = (loc * 2.0 - 1.0).reshape(bs * N_HEADS, N_POINTS, 2, Q).transpose(0, 1, 3, 2)
        v = jnp.einsum('oc,bcq->boq', params['val_w'][i],
                       values[i].reshape(bs, C, vh * vw)) \
            + params['val_b'][i][None, :, None]
        v = v.reshape(bs * N_HEADS, C_HEAD, vh, vw)
        sv_list.append(_grid_sample_bilinear_zeros(v, grid))      # (B*H, C_head, P, Q)
    sv_all = jnp.concatenate(sv_list, axis=2)                     # (B*H, C_head, L*P, Q)
    aw = jnp.einsum('oc,bcq->boq', params['aw_w'], q_flat) + params['aw_b'][None, :, None]
    aw = jax.nn.sigmoid(aw.reshape(bs * N_HEADS, 1, N_LEVELS * N_POINTS, Q))
    res = jnp.sum(sv_all * aw, axis=2).reshape(bs, C, Q)
    out = jnp.einsum('oc,bcq->boq', params['out_w'], res) + params['out_b'][None, :, None]
    return out.reshape(bs, C, H, W)


# ---------------------------------------------------------------------------
# deterministic parameter init (shapes per MotrDeformAttn.__init__)
# ---------------------------------------------------------------------------
def _xavier_uniform(key, out_c, in_c):
    bound = math.sqrt(6.0 / (in_c + out_c))
    return jax.random.uniform(key, (out_c, in_c), jnp.float32, -bound, bound)


def init_params(key):
    HP2 = N_HEADS * N_POINTS * 2
    ks = iter(jax.random.split(key, 2 * N_LEVELS + 2))

    # sampling-offset bias exactly as _reset_parameters (8-direction grid).
    thetas = jnp.arange(8, dtype=jnp.float32) * (2.0 * math.pi / 8.0)
    grid = jnp.stack([jnp.cos(thetas), jnp.sin(thetas)], -1)
    grid = grid / jnp.max(jnp.abs(grid), axis=-1, keepdims=True)
    grid = jnp.tile(grid.reshape(8, 1, 1, 2), (1, N_LEVELS, N_POINTS, 1))
    grid = grid * jnp.arange(1, N_POINTS + 1, dtype=jnp.float32).reshape(1, 1, N_POINTS, 1)

    params = {'off_w': [], 'off_b': [], 'val_w': [], 'val_b': []}
    for j in range(N_LEVELS):
        # module zeroes these weights; use small deterministic random values so
        # the sampling / attention data paths are actually exercised.
        params['off_w'].append(0.05 * jax.random.normal(next(ks), (HP2, D_MODEL), jnp.float32))
        params['off_b'].append(grid[:, j, :, :].reshape(-1))
        params['val_w'].append(_xavier_uniform(next(ks), D_MODEL, D_MODEL))
        params['val_b'].append(jnp.zeros((D_MODEL,), jnp.float32))
    k_aw, k_out = jax.random.split(jax.random.fold_in(key, 1234))
    params['aw_w'] = 0.1 * jax.random.normal(k_aw, (HLP, D_MODEL), jnp.float32)
    params['aw_b'] = jnp.zeros((HLP,), jnp.float32)
    params['out_w'] = _xavier_uniform(k_out, D_MODEL, D_MODEL)
    params['out_b'] = jnp.zeros((D_MODEL,), jnp.float32)
    return params


# ---------------------------------------------------------------------------
if __name__ == "__main__":
    key = jax.random.PRNGKey(0)
    kp, kq, kr, kv0, kv1 = jax.random.split(key, 5)
    params = init_params(kp)

    bs, H, W = 2, 8, 8
    query = jax.random.normal(kq, (bs, D_MODEL, H, W), jnp.float32)
    reference_points = jax.random.uniform(
        kr, (bs * N_HEADS * N_POINTS, 2, H, W), jnp.float32, 0.1, 0.9)
    values = [
        jax.random.normal(kv0, (bs, D_MODEL, 8, 8), jnp.float32),
        jax.random.normal(kv1, (bs, D_MODEL, 4, 4), jnp.float32),
    ]

    out = motr_deform_attn(params, query, reference_points, values)
    out = jax.block_until_ready(out)
    assert out.shape == (bs, D_MODEL, H, W)

    ref = reference_forward(params, query, reference_points, values)
    err = float(jnp.max(jnp.abs(out - ref)))
    assert err < 2e-3, f"max abs err = {err}"
    print("KERNEL_OK")
</pallas_src>

<mosaic_0001>
module attributes {stable_mosaic.version = 11 : i64} {
  func.func @kernel(%arg0: i32, %arg1: memref<32x128xf32, #tpu.memory_space<vmem>>, %arg2: memref<2x32x128xf32, #tpu.memory_space<vmem>>, %arg3: memref<32x128xf32, #tpu.memory_space<vmem>>, %arg4: memref<32x32xf32, #tpu.memory_space<vmem>>, %arg5: memref<2x32x32xf32, #tpu.memory_space<vmem>>, %arg6: memref<2x32x32xf32, #tpu.memory_space<vmem>>, %arg7: memref<2x32x1xf32, #tpu.memory_space<vmem>>, %arg8: memref<32x32xf32, #tpu.memory_space<vmem>>, %arg9: memref<32x1xf32, #tpu.memory_space<vmem>>, %arg10: memref<32x32xf32, #tpu.memory_space<vmem>>, %arg11: memref<32x1xf32, #tpu.memory_space<vmem>>, %arg12: memref<128x1xf32, #tpu.memory_space<vmem>>, %arg13: memref<128x1xf32, #tpu.memory_space<vmem>>, %arg14: memref<32x1xf32, #tpu.memory_space<vmem>>, %arg15: memref<32x1xf32, #tpu.memory_space<vmem>>, %arg16: memref<2x1x128xf32, #tpu.memory_space<vmem>>, %arg17: memref<32x128xf32, #tpu.memory_space<vmem>>) attributes {dimension_semantics = [#tpu.dimension_semantics<arbitrary>], iteration_bounds = array<i64: 1>, scalar_prefetch = 0 : i64, scratch_operands = 0 : i64, tpu.core_type = #tpu.core_type<tc>, window_params = [{pipeline_mode = #tpu.pipeline_mode<synchronous>, transform_indices = @transform_0, window_bounds = array<i64: 32, 128>}, {pipeline_mode = #tpu.pipeline_mode<synchronous>, transform_indices = @transform_1, window_bounds = array<i64: 2, 32, 128>}, {pipeline_mode = #tpu.pipeline_mode<synchronous>, transform_indices = @transform_2, window_bounds = array<i64: 32, 128>}, {pipeline_mode = #tpu.pipeline_mode<synchronous>, transform_indices = @transform_3, window_bounds = array<i64: 32, 32>}, {pipeline_mode = #tpu.pipeline_mode<synchronous>, transform_indices = @transform_4, window_bounds = array<i64: 2, 32, 32>}, {pipeline_mode = #tpu.pipeline_mode<synchronous>, transform_indices = @transform_5, window_bounds = array<i64: 2, 32, 32>}, {pipeline_mode = #tpu.pipeline_mode<synchronous>, transform_indices = @transform_6, window_bounds = array<i64: 2, 32, 1>}, {pipeline_mode = #tpu.pipeline_mode<synchronous>, transform_indices = @transform_7, window_bounds = array<i64: 32, 32>}, {pipeline_mode = #tpu.pipeline_mode<synchronous>, transform_indices = @transform_8, window_bounds = array<i64: 32, 1>}, {pipeline_mode = #tpu.pipeline_mode<synchronous>, transform_indices = @transform_9, window_bounds = array<i64: 32, 32>}, {pipeline_mode = #tpu.pipeline_mode<synchronous>, transform_indices = @transform_10, window_bounds = array<i64: 32, 1>}, {pipeline_mode = #tpu.pipeline_mode<synchronous>, transform_indices = @transform_11, window_bounds = array<i64: 128, 1>}, {pipeline_mode = #tpu.pipeline_mode<synchronous>, transform_indices = @transform_12, window_bounds = array<i64: 128, 1>}, {pipeline_mode = #tpu.pipeline_mode<synchronous>, transform_indices = @transform_13, window_bounds = array<i64: 32, 1>}, {pipeline_mode = #tpu.pipeline_mode<synchronous>, transform_indices = @transform_14, window_bounds = array<i64: 32, 1>}, {pipeline_mode = #tpu.pipeline_mode<synchronous>, transform_indices = @transform_15, window_bounds = array<i64: 2, 1, 128>}, {pipeline_mode = #tpu.pipeline_mode<synchronous>, transform_indices = @transform_16, window_bounds = array<i64: 32, 128>}]} {
    %c0 = arith.constant 0 : index
    %c0_0 = arith.constant 0 : index
    %0 = vector.load %arg1[%c0, %c0_0] : memref<32x128xf32, #tpu.memory_space<vmem>>, vector<32x128xf32>
    %c0_1 = arith.constant 0 : index
    %c0_2 = arith.constant 0 : index
    %1 = vector.load %arg8[%c0_1, %c0_2] : memref<32x32xf32, #tpu.memory_space<vmem>>, vector<32x32xf32>
    %cst = arith.constant dense<0.000000e+00> : vector<32x128xf32>
    %2 = tpu.matmul %1, %0, %cst {dimension_numbers = #tpu.dot_dimension_numbers<[1], [0], [0], [1], [0, 0, 1, 1], [], []>} : vector<32x32xf32>, vector<32x128xf32>, vector<32x128xf32> -> vector<32x128xf32>
    %c0_3 = arith.constant 0 : index
    %c0_4 = arith.constant 0 : index
    %3 = vector.load %arg9[%c0_3, %c0_4] : memref<32x1xf32, #tpu.memory_space<vmem>>, vector<32x1xf32>
    %4 = vector.broadcast %3 : vector<32x1xf32> to vector<32x128xf32>
    %5 = arith.addf %2, %4 : vector<32x128xf32>
    %6 = arith.negf %5 : vector<32x128xf32>
    %7 = math.exp %6 : vector<32x128xf32>
    %cst_5 = arith.constant 1.000000e+00 : f32
    %8 = vector.broadcast %cst_5 : f32 to vector<32x128xf32>
    %9 = arith.addf %8, %7 : vector<32x128xf32>
    %10 = arith.divf %8, %9 : vector<32x128xf32>
    %cst_6 = arith.constant 0.000000e+00 : f32
    %11 = vector.broadcast %cst_6 : f32 to vector<32x128xf32>
    %c0_7 = arith.constant 0 : index
    %c0_8 = arith.constant 0 : index
    %c0_9 = arith.constant 0 : index
    %12 = vector.load %arg5[%c0_7, %c0_8, %c0_9] : memref<2x32x32xf32, #tpu.memory_space<vmem>>, vector<1x32x32xf32>
    %13 = vector.shape_cast %12 : vector<1x32x32xf32> to vector<32x32xf32>
    %cst_10 = arith.constant dense<0.000000e+00> : vector<32x128xf32>
    %14 = tpu.matmul %13, %0, %cst_10 {dimension_numbers = #tpu.dot_dimension_numbers<[1], [0], [0], [1], [0, 0, 1, 1], [], []>} : vector<32x32xf32>, vector<32x128xf32>, vector<32x128xf32> -> vector<32x128xf32>
    %c0_11 = arith.constant 0 : index
    %c0_12 = arith.constant 0 : index
    %c0_13 = arith.constant 0 : index
    %15 = vector.load %arg2[%c0_11, %c0_12, %c0_13] : memref<2x32x128xf32, #tpu.memory_space<vmem>>, vector<1x32x128xf32>
    %16 = vector.shape_cast %15 : vector<1x32x128xf32> to vector<32x128xf32>
    %17 = arith.addf %14, %16 : vector<32x128xf32>
    %c0_14 = arith.constant 0 : index
    %c0_15 = arith.constant 0 : index
    %c0_16 = arith.constant 0 : index
    %18 = vector.load %arg6[%c0_14, %c0_15, %c0_16] : memref<2x32x32xf32, #tpu.memory_space<vmem>>, vector<1x32x32xf32>
    %19 = vector.shape_cast %18 : vector<1x32x32xf32> to vector<32x32xf32>
    %c0_17 = arith.constant 0 : index
    %c0_18 = arith.constant 0 : index
    %20 = vector.load %arg3[%c0_17, %c0_18] : memref<32x128xf32, #tpu.memory_space<vmem>>, vector<32x128xf32>
    %cst_19 = arith.constant dense<0.000000e+00> : vector<32x128xf32>
    %21 = tpu.matmul %19, %20, %cst_19 {dimension_numbers = #tpu.dot_dimension_numbers<[1], [0], [0], [1], [0, 0, 1, 1], [], []>} : vector<32x32xf32>, vector<32x128xf32>, vector<32x128xf32> -> vector<32x128xf32>
    %c0_20 = arith.constant 0 : index
    %c0_21 = arith.constant 0 : index
    %c0_22 = arith.constant 0 : index
    %22 = vector.load %arg7[%c0_20, %c0_21, %c0_22] : memref<2x32x1xf32, #tpu.memory_space<vmem>>, vector<1x32x1xf32>
    %23 = vector.shape_cast %22 : vector<1x32x1xf32> to vector<32x1xf32>
    %24 = vector.broadcast %23 : vector<32x1xf32> to vector<32x128xf32>
    %25 = arith.addf %21, %24 : vector<32x128xf32>
    %c0_23 = arith.constant 0 : index
    %c0_24 = arith.constant 0 : index
    %26 = vector.load %arg12[%c0_23, %c0_24] : memref<128x1xf32, #tpu.memory_space<vmem>>, vector<128x1xf32>
    %c0_25 = arith.constant 0 : index
    %c0_26 = arith.constant 0 : index
    %27 = vector.load %arg13[%c0_25, %c0_26] : memref<128x1xf32, #tpu.memory_space<vmem>>, vector<128x1xf32>
    %c0_27 = arith.constant 0 : index
    %c0_28 = arith.constant 0 : index
    %c0_29 = arith.constant 0 : index
    %28 = vector.load %arg16[%c0_27, %c0_28, %c0_29] : memref<2x1x128xf32, #tpu.memory_space<vmem>>, vector<1x1x128xf32>
    %29 = vector.shape_cast %28 : vector<1x1x128xf32> to vector<1x128xf32>
    %30 = vector.extract_strided_slice %25 {offsets = [0, 0], sizes = [4, 128], strides = [1, 1]} : vector<32x128xf32> to vector<4x128xf32>
    %cst_30 = arith.constant 0.000000e+00 : f32
    %31 = vector.broadcast %cst_30 : f32 to vector<4x128xf32>
    %32 = vector.extract_strided_slice %17 {offsets = [0, 0], sizes = [1, 128], strides = [1, 1]} : vector<32x128xf32> to vector<1x128xf32>
    %33 = vector.extract_strided_slice %17 {offsets = [16, 0], sizes = [1, 128], strides = [1, 1]} : vector<32x128xf32> to vector<1x128xf32>
    %34 = vector.extract_strided_slice %10 {offsets = [0, 0], sizes = [1, 128], strides = [1, 1]} : vector<32x128xf32> to vector<1x128xf32>
    %cst_31 = arith.constant -1.000000e+00 : f32
    %cst_32 = arith.constant 8.000000e+00 : f32
    %35 = vector.broadcast %cst_31 : f32 to vector<1x128xf32>
    %36 = arith.maximumf %35, %33 : vector<1x128xf32>
    %37 = vector.broadcast %cst_32 : f32 to vector<1x128xf32>
    %38 = arith.minimumf %37, %36 : vector<1x128xf32>
    %39 = arith.addf %38, %29 : vector<1x128xf32>
    %40 = vector.broadcast %32 : vector<1x128xf32> to vector<128x128xf32>
    %41 = vector.broadcast %27 : vector<128x1xf32> to vector<128x128xf32>
    %42 = arith.subf %40, %41 : vector<128x128xf32>
    %43 = math.absf %42 : vector<128x128xf32>
    %cst_33 = arith.constant 1.000000e+00 : f32
    %44 = vector.broadcast %cst_33 : f32 to vector<128x128xf32>
    %45 = arith.subf %44, %43 : vector<128x128xf32>
    %cst_34 = arith.constant 0.000000e+00 : f32
    %46 = vector.broadcast %cst_34 : f32 to vector<128x128xf32>
    %47 = arith.maximumf %45, %46 : vector<128x128xf32>
    %48 = vector.broadcast %39 : vector<1x128xf32> to vector<128x128xf32>
    %49 = vector.broadcast %26 : vector<128x1xf32> to vector<128x128xf32>
    %50 = arith.subf %48, %49 : vector<128x128xf32>
    %51 = math.absf %50 : vector<128x128xf32>
    %cst_35 = arith.constant 1.000000e+00 : f32
    %52 = vector.broadcast %cst_35 : f32 to vector<128x128xf32>
    %53 = arith.subf %52, %51 : vector<128x128xf32>
    %cst_36 = arith.constant 0.000000e+00 : f32
    %54 = vector.broadcast %cst_36 : f32 to vector<128x128xf32>
    %55 = arith.maximumf %53, %54 : vector<128x128xf32>
    %56 = arith.mulf %47, %55 : vector<128x128xf32>
    %cst_37 = arith.constant dense<0.000000e+00> : vector<4x128xf32>
    %57 = tpu.matmul %30, %56, %cst_37 {dimension_numbers = #tpu.dot_dimension_numbers<[1], [0], [0], [1], [0, 0, 1, 1], [], []>} : vector<4x128xf32>, vector<128x128xf32>, vector<4x128xf32> -> vector<4x128xf32>
    %58 = vector.broadcast %34 : vector<1x128xf32> to vector<4x128xf32>
    %59 = arith.mulf %58, %57 : vector<4x128xf32>
    %60 = arith.addf %31, %59 : vector<4x128xf32>
    %61 = vector.extract_strided_slice %17 {offsets = [8, 0], sizes = [1, 128], strides = [1, 1]} : vector<32x128xf32> to vector<1x128xf32>
    %62 = vector.extract_strided_slice %17 {offsets = [24, 0], sizes = [1, 128], strides = [1, 1]} : vector<32x128xf32> to vector<1x128xf32>
    %63 = vector.extract_strided_slice %10 {offsets = [8, 0], sizes = [1, 128], strides = [1, 1]} : vector<32x128xf32> to vector<1x128xf32>
    %cst_38 = arith.constant -1.000000e+00 : f32
    %cst_39 = arith.constant 8.000000e+00 : f32
    %64 = vector.broadcast %cst_38 : f32 to vector<1x128xf32>
    %65 = arith.maximumf %64, %62 : vector<1x128xf32>
    %66 = vector.broadcast %cst_39 : f32 to vector<1x128xf32>
    %67 = arith.minimumf %66, %65 : vector<1x128xf32>
    %68 = arith.addf %67, %29 : vector<1x128xf32>
    %69 = vector.broadcast %61 : vector<1x128xf32> to vector<128x128xf32>
    %70 = vector.broadcast %27 : vector<128x1xf32> to vector<128x128xf32>
    %71 = arith.subf %69, %70 : vector<128x128xf32>
    %72 = math.absf %71 : vector<128x128xf32>
    %cst_40 = arith.constant 1.000000e+00 : f32
    %73 = vector.broadcast %cst_40 : f32 to vector<128x128xf32>
    %74 = arith.subf %73, %72 : vector<128x128xf32>
    %cst_41 = arith.constant 0.000000e+00 : f32
    %75 = vector.broadcast %cst_41 : f32 to vector<128x128xf32>
    %76 = arith.maximumf %74, %75 : vector<128x128xf32>
    %77 = vector.broadcast %68 : vector<1x128xf32> to vector<128x128xf32>
    %78 = vector.broadcast %26 : vector<128x1xf32> to vector<128x128xf32>
    %79 = arith.subf %77, %78 : vector<128x128xf32>
    %80 = math.absf %79 : vector<128x128xf32>
    %cst_42 = arith.constant 1.000000e+00 : f32
    %81 = vector.broadcast %cst_42 : f32 to vector<128x128xf32>
    %82 = arith.subf %81, %80 : vector<128x128xf32>
    %cst_43 = arith.constant 0.000000e+00 : f32
    %83 = vector.broadcast %cst_43 : f32 to vector<128x128xf32>
    %84 = arith.maximumf %82, %83 : vector<128x128xf32>
    %85 = arith.mulf %76, %84 : vector<128x128xf32>
    %cst_44 = arith.constant dense<0.000000e+00> : vector<4x128xf32>
    %86 = tpu.matmul %30, %85, %cst_44 {dimension_numbers = #tpu.dot_dimension_numbers<[1], [0], [0], [1], [0, 0, 1, 1], [], []>} : vector<4x128xf32>, vector<128x128xf32>, vector<4x128xf32> -> vector<4x128xf32>
    %87 = vector.broadcast %63 : vector<1x128xf32> to vector<4x128xf32>
    %88 = arith.mulf %87, %86 : vector<4x128xf32>
    %89 = arith.addf %60, %88 : vector<4x128xf32>
    %90 = vector.extract_strided_slice %25 {offsets = [4, 0], sizes = [4, 128], strides = [1, 1]} : vector<32x128xf32> to vector<4x128xf32>
    %cst_45 = arith.constant 0.000000e+00 : f32
    %91 = vector.broadcast %cst_45 : f32 to vector<4x128xf32>
    %92 = vector.extract_strided_slice %17 {offsets = [1, 0], sizes = [1, 128], strides = [1, 1]} : vector<32x128xf32> to vector<1x128xf32>
    %93 = vector.extract_strided_slice %17 {offsets = [17, 0], sizes = [1, 128], strides = [1, 1]} : vector<32x128xf32> to vector<1x128xf32>
    %94 = vector.extract_strided_slice %10 {offsets = [1, 0], sizes = [1, 128], strides = [1, 1]} : vector<32x128xf32> to vector<1x128xf32>
    %cst_46 = arith.constant -1.000000e+00 : f32
    %cst_47 = arith.constant 8.000000e+00 : f32
    %95 = vector.broadcast %cst_46 : f32 to vector<1x128xf32>
    %96 = arith.maximumf %95, %93 : vector<1x128xf32>
    %97 = vector.broadcast %cst_47 : f32 to vector<1x128xf32>
    %98 = arith.minimumf %97, %96 : vector<1x128xf32>
    %99 = arith.addf %98, %29 : vector<1x128xf32>
    %100 = vector.broadcast %92 : vector<1x128xf32> to vector<128x128xf32>
    %101 = vector.broadcast %27 : vector<128x1xf32> to vector<128x128xf32>
    %102 = arith.subf %100, %101 : vector<128x128xf32>
    %103 = math.absf %102 : vector<128x128xf32>
    %cst_48 = arith.constant 1.000000e+00 : f32
    %104 = vector.broadcast %cst_48 : f32 to vector<128x128xf32>
    %105 = arith.subf %104, %103 : vector<128x128xf32>
    %cst_49 = arith.constant 0.000000e+00 : f32
    %106 = vector.broadcast %cst_49 : f32 to vector<128x128xf32>
    %107 = arith.maximumf %105, %106 : vector<128x128xf32>
    %108 = vector.broadcast %99 : vector<1x128xf32> to vector<128x128xf32>
    %109 = vector.broadcast %26 : vector<128x1xf32> to vector<128x128xf32>
    %110 = arith.subf %108, %109 : vector<128x128xf32>
    %111 = math.absf %110 : vector<128x128xf32>
    %cst_50 = arith.constant 1.000000e+00 : f32
    %112 = vector.broadcast %cst_50 : f32 to vector<128x128xf32>
    %113 = arith.subf %112, %111 : vector<128x128xf32>
    %cst_51 = arith.constant 0.000000e+00 : f32
    %114 = vector.broadcast %cst_51 : f32 to vector<128x128xf32>
    %115 = arith.maximumf %113, %114 : vector<128x128xf32>
    %116 = arith.mulf %107, %115 : vector<128x128xf32>
    %cst_52 = arith.constant dense<0.000000e+00> : vector<4x128xf32>
    %117 = tpu.matmul %90, %116, %cst_52 {dimension_numbers = #tpu.dot_dimension_numbers<[1], [0], [0], [1], [0, 0, 1, 1], [], []>} : vector<4x128xf32>, vector<128x128xf32>, vector<4x128xf32> -> vector<4x128xf32>
    %118 = vector.broadcast %94 : vector<1x128xf32> to vector<4x128xf32>
    %119 = arith.mulf %118, %117 : vector<4x128xf32>
    %120 = arith.addf %91, %119 : vector<4x128xf32>
    %121 = vector.extract_strided_slice %17 {offsets = [9, 0], sizes = [1, 128], strides = [1, 1]} : vector<32x128xf32> to vector<1x128xf32>
    %122 = vector.extract_strided_slice %17 {offsets = [25, 0], sizes = [1, 128], strides = [1, 1]} : vector<32x128xf32> to vector<1x128xf32>
    %123 = vector.extract_strided_slice %10 {offsets = [9, 0], sizes = [1, 128], strides = [1, 1]} : vector<32x128xf32> to vector<1x128xf32>
    %cst_53 = arith.constant -1.000000e+00 : f32
    %cst_54 = arith.constant 8.000000e+00 : f32
    %124 = vector.broadcast %cst_53 : f32 to vector<1x128xf32>
    %125 = arith.maximumf %124, %122 : vector<1x128xf32>
    %126 = vector.broadcast %cst_54 : f32 to vector<1x128xf32>
    %127 = arith.minimumf %126, %125 : vector<1x128xf32>
    %128 = arith.addf %127, %29 : vector<1x128xf32>
    %129 = vector.broadcast %121 : vector<1x128xf32> to vector<128x128xf32>
    %130 = vector.broadcast %27 : vector<128x1xf32> to vector<128x128xf32>
    %131 = arith.subf %129, %130 : vector<128x128xf32>
    %132 = math.absf %131 : vector<128x128xf32>
    %cst_55 = arith.constant 1.000000e+00 : f32
    %133 = vector.broadcast %cst_55 : f32 to vector<128x128xf32>
    %134 = arith.subf %133, %132 : vector<128x128xf32>
    %cst_56 = arith.constant 0.000000e+00 : f32
    %135 = vector.broadcast %cst_56 : f32 to vector<128x128xf32>
    %136 = arith.maximumf %134, %135 : vector<128x128xf32>
    %137 = vector.broadcast %128 : vector<1x128xf32> to vector<128x128xf32>
    %138 = vector.broadcast %26 : vector<128x1xf32> to vector<128x128xf32>
    %139 = arith.subf %137, %138 : vector<128x128xf32>
    %140 = math.absf %139 : vector<128x128xf32>
    %cst_57 = arith.constant 1.000000e+00 : f32
    %141 = vector.broadcast %cst_57 : f32 to vector<128x128xf32>
    %142 = arith.subf %141, %140 : vector<128x128xf32>
    %cst_58 = arith.constant 0.000000e+00 : f32
    %143 = vector.broadcast %cst_58 : f32 to vector<128x128xf32>
    %144 = arith.maximumf %142, %143 : vector<128x128xf32>
    %145 = arith.mulf %136, %144 : vector<128x128xf32>
    %cst_59 = arith.constant dense<0.000000e+00> : vector<4x128xf32>
    %146 = tpu.matmul %90, %145, %cst_59 {dimension_numbers = #tpu.dot_dimension_numbers<[1], [0], [0], [1], [0, 0, 1, 1], [], []>} : vector<4x128xf32>, vector<128x128xf32>, vector<4x128xf32> -> vector<4x128xf32>
    %147 = vector.broadcast %123 : vector<1x128xf32> to vector<4x128xf32>
    %148 = arith.mulf %147, %146 : vector<4x128xf32>
    %149 = arith.addf %120, %148 : vector<4x128xf32>
    %150 = vector.extract_strided_slice %25 {offsets = [8, 0], sizes = [4, 128], strides = [1, 1]} : vector<32x128xf32> to vector<4x128xf32>
    %cst_60 = arith.constant 0.000000e+00 : f32
    %151 = vector.broadcast %cst_60 : f32 to vector<4x128xf32>
    %152 = vector.extract_strided_slice %17 {offsets = [2, 0], sizes = [1, 128], strides = [1, 1]} : vector<32x128xf32> to vector<1x128xf32>
    %153 = vector.extract_strided_slice %17 {offsets = [18, 0], sizes = [1, 128], strides = [1, 1]} : vector<32x128xf32> to vector<1x128xf32>
    %154 = vector.extract_strided_slice %10 {offsets = [2, 0], sizes = [1, 128], strides = [1, 1]} : vector<32x128xf32> to vector<1x128xf32>
    %cst_61 = arith.constant -1.000000e+00 : f32
    %cst_62 = arith.constant 8.000000e+00 : f32
    %155 = vector.broadcast %cst_61 : f32 to vector<1x128xf32>
    %156 = arith.maximumf %155, %153 : vector<1x128xf32>
    %157 = vector.broadcast %cst_62 : f32 to vector<1x128xf32>
    %158 = arith.minimumf %157, %156 : vector<1x128xf32>
    %159 = arith.addf %158, %29 : vector<1x128xf32>
    %160 = vector.broadcast %152 : vector<1x128xf32> to vector<128x128xf32>
    %161 = vector.broadcast %27 : vector<128x1xf32> to vector<128x128xf32>
    %162 = arith.subf %160, %161 : vector<128x128xf32>
    %163 = math.absf %162 : vector<128x128xf32>
    %cst_63 = arith.constant 1.000000e+00 : f32
    %164 = vector.broadcast %cst_63 : f32 to vector<128x128xf32>
    %165 = arith.subf %164, %163 : vector<128x128xf32>
    %cst_64 = arith.constant 0.000000e+00 : f32
    %166 = vector.broadcast %cst_64 : f32 to vector<128x128xf32>
    %167 = arith.maximumf %165, %166 : vector<128x128xf32>
    %168 = vector.broadcast %159 : vector<1x128xf32> to vector<128x128xf32>
    %169 = vector.broadcast %26 : vector<128x1xf32> to vector<128x128xf32>
    %170 = arith.subf %168, %169 : vector<128x128xf32>
    %171 = math.absf %170 : vector<128x128xf32>
    %cst_65 = arith.constant 1.000000e+00 : f32
    %172 = vector.broadcast %cst_65 : f32 to vector<128x128xf32>
    %173 = arith.subf %172, %171 : vector<128x128xf32>
    %cst_66 = arith.constant 0.000000e+00 : f32
    %174 = vector.broadcast %cst_66 : f32 to vector<128x128xf32>
    %175 = arith.maximumf %173, %174 : vector<128x128xf32>
    %176 = arith.mulf %167, %175 : vector<128x128xf32>
    %cst_67 = arith.constant dense<0.000000e+00> : vector<4x128xf32>
    %177 = tpu.matmul %150, %176, %cst_67 {dimension_numbers = #tpu.dot_dimension_numbers<[1], [0], [0], [1], [0, 0, 1, 1], [], []>} : vector<4x128xf32>, vector<128x128xf32>, vector<4x128xf32> -> vector<4x128xf32>
    %178 = vector.broadcast %154 : vector<1x128xf32> to vector<4x128xf32>
    %179 = arith.mulf %178, %177 : vector<4x128xf32>
    %180 = arith.addf %151, %179 : vector<4x128xf32>
    %181 = vector.extract_strided_slice %17 {offsets = [10, 0], sizes = [1, 128], strides = [1, 1]} : vector<32x128xf32> to vector<1x128xf32>
    %182 = vector.extract_strided_slice %17 {offsets = [26, 0], sizes = [1, 128], strides = [1, 1]} : vector<32x128xf32> to vector<1x128xf32>
    %183 = vector.extract_strided_slice %10 {offsets = [10, 0], sizes = [1, 128], strides = [1, 1]} : vector<32x128xf32> to vector<1x128xf32>
    %cst_68 = arith.constant -1.000000e+00 : f32
    %cst_69 = arith.constant 8.000000e+00 : f32
    %184 = vector.broadcast %cst_68 : f32 to vector<1x128xf32>
    %185 = arith.maximumf %184, %182 : vector<1x128xf32>
    %186 = vector.broadcast %cst_69 : f32 to vector<1x128xf32>
    %187 = arith.minimumf %186, %185 : vector<1x128xf32>
    %188 = arith.addf %187, %29 : vector<1x128xf32>
    %189 = vector.broadcast %181 : vector<1x128xf32> to vector<128x128xf32>
    %190 = vector.broadcast %27 : vector<128x1xf32> to vector<128x128xf32>
    %191 = arith.subf %189, %190 : vector<128x128xf32>
    %192 = math.absf %191 : vector<128x128xf32>
    %cst_70 = arith.constant 1.000000e+00 : f32
    %193 = vector.broadcast %cst_70 : f32 to vector<128x128xf32>
    %194 = arith.subf %193, %192 : vector<128x128xf32>
    %cst_71 = arith.constant 0.000000e+00 : f32
    %195 = vector.broadcast %cst_71 : f32 to vector<128x128xf32>
    %196 = arith.maximumf %194, %195 : vector<128x128xf32>
    %197 = vector.broadcast %188 : vector<1x128xf32> to vector<128x128xf32>
    %198 = vector.broadcast %26 : vector<128x1xf32> to vector<128x128xf32>
    %199 = arith.subf %197, %198 : vector<128x128xf32>
    %200 = math.absf %199 : vector<128x128xf32>
    %cst_72 = arith.constant 1.000000e+00 : f32
    %201 = vector.broadcast %cst_72 : f32 to vector<128x128xf32>
    %202 = arith.subf %201, %200 : vector<128x128xf32>
    %cst_73 = arith.constant 0.000000e+00 : f32
    %203 = vector.broadcast %cst_73 : f32 to vector<128x128xf32>
    %204 = arith.maximumf %202, %203 : vector<128x128xf32>
    %205 = arith.mulf %196, %204 : vector<128x128xf32>
    %cst_74 = arith.constant dense<0.000000e+00> : vector<4x128xf32>
    %206 = tpu.matmul %150, %205, %cst_74 {dimension_numbers = #tpu.dot_dimension_numbers<[1], [0], [0], [1], [0, 0, 1, 1], [], []>} : vector<4x128xf32>, vector<128x128xf32>, vector<4x128xf32> -> vector<4x128xf32>
    %207 = vector.broadcast %183 : vector<1x128xf32> to vector<4x128xf32>
    %208 = arith.mulf %207, %206 : vector<4x128xf32>
    %209 = arith.addf %180, %208 : vector<4x128xf32>
    %210 = vector.extract_strided_slice %25 {offsets = [12, 0], sizes = [4, 128], strides = [1, 1]} : vector<32x128xf32> to vector<4x128xf32>
    %cst_75 = arith.constant 0.000000e+00 : f32
    %211 = vector.broadcast %cst_75 : f32 to vector<4x128xf32>
    %212 = vector.extract_strided_slice %17 {offsets = [3, 0], sizes = [1, 128], strides = [1, 1]} : vector<32x128xf32> to vector<1x128xf32>
    %213 = vector.extract_strided_slice %17 {offsets = [19, 0], sizes = [1, 128], strides = [1, 1]} : vector<32x128xf32> to vector<1x128xf32>
    %214 = vector.extract_strided_slice %10 {offsets = [3, 0], sizes = [1, 128], strides = [1, 1]} : vector<32x128xf32> to vector<1x128xf32>
    %cst_76 = arith.constant -1.000000e+00 : f32
    %cst_77 = arith.constant 8.000000e+00 : f32
    %215 = vector.broadcast %cst_76 : f32 to vector<1x128xf32>
    %216 = arith.maximumf %215, %213 : vector<1x128xf32>
    %217 = vector.broadcast %cst_77 : f32 to vector<1x128xf32>
    %218 = arith.minimumf %217, %216 : vector<1x128xf32>
    %219 = arith.addf %218, %29 : vector<1x128xf32>
    %220 = vector.broadcast %212 : vector<1x128xf32> to vector<128x128xf32>
    %221 = vector.broadcast %27 : vector<128x1xf32> to vector<128x128xf32>
    %222 = arith.subf %220, %221 : vector<128x128xf32>
    %223 = math.absf %222 : vector<128x128xf32>
    %cst_78 = arith.constant 1.000000e+00 : f32
    %224 = vector.broadcast %cst_78 : f32 to vector<128x128xf32>
    %225 = arith.subf %224, %223 : vector<128x128xf32>
    %cst_79 = arith.constant 0.000000e+00 : f32
    %226 = vector.broadcast %cst_79 : f32 to vector<128x128xf32>
    %227 = arith.maximumf %225, %226 : vector<128x128xf32>
    %228 = vector.broadcast %219 : vector<1x128xf32> to vector<128x128xf32>
    %229 = vector.broadcast %26 : vector<128x1xf32> to vector<128x128xf32>
    %230 = arith.subf %228, %229 : vector<128x128xf32>
    %231 = math.absf %230 : vector<128x128xf32>
    %cst_80 = arith.constant 1.000000e+00 : f32
    %232 = vector.broadcast %cst_80 : f32 to vector<128x128xf32>
    %233 = arith.subf %232, %231 : vector<128x128xf32>
    %cst_81 = arith.constant 0.000000e+00 : f32
    %234 = vector.broadcast %cst_81 : f32 to vector<128x128xf32>
    %235 = arith.maximumf %233, %234 : vector<128x128xf32>
    %236 = arith.mulf %227, %235 : vector<128x128xf32>
    %cst_82 = arith.constant dense<0.000000e+00> : vector<4x128xf32>
    %237 = tpu.matmul %210, %236, %cst_82 {dimension_numbers = #tpu.dot_dimension_numbers<[1], [0], [0], [1], [0, 0, 1, 1], [], []>} : vector<4x128xf32>, vector<128x128xf32>, vector<4x128xf32> -> vector<4x128xf32>
    %238 = vector.broadcast %214 : vector<1x128xf32> to vector<4x128xf32>
    %239 = arith.mulf %238, %237 : vector<4x128xf32>
    %240 = arith.addf %211, %239 : vector<4x128xf32>
    %241 = vector.extract_strided_slice %17 {offsets = [11, 0], sizes = [1, 128], strides = [1, 1]} : vector<32x128xf32> to vector<1x128xf32>
    %242 = vector.extract_strided_slice %17 {offsets = [27, 0], sizes = [1, 128], strides = [1, 1]} : vector<32x128xf32> to vector<1x128xf32>
    %243 = vector.extract_strided_slice %10 {offsets = [11, 0], sizes = [1, 128], strides = [1, 1]} : vector<32x128xf32> to vector<1x128xf32>
    %cst_83 = arith.constant -1.000000e+00 : f32
    %cst_84 = arith.constant 8.000000e+00 : f32
    %244 = vector.broadcast %cst_83 : f32 to vector<1x128xf32>
    %245 = arith.maximumf %244, %242 : vector<1x128xf32>
    %246 = vector.broadcast %cst_84 : f32 to vector<1x128xf32>
    %247 = arith.minimumf %246, %245 : vector<1x128xf32>
    %248 = arith.addf %247, %29 : vector<1x128xf32>
    %249 = vector.broadcast %241 : vector<1x128xf32> to vector<128x128xf32>
    %250 = vector.broadcast %27 : vector<128x1xf32> to vector<128x128xf32>
    %251 = arith.subf %249, %250 : vector<128x128xf32>
    %252 = math.absf %251 : vector<128x128xf32>
    %cst_85 = arith.constant 1.000000e+00 : f32
    %253 = vector.broadcast %cst_85 : f32 to vector<128x128xf32>
    %254 = arith.subf %253, %252 : vector<128x128xf32>
    %cst_86 = arith.constant 0.000000e+00 : f32
    %255 = vector.broadcast %cst_86 : f32 to vector<128x128xf32>
    %256 = arith.maximumf %254, %255 : vector<128x128xf32>
    %257 = vector.broadcast %248 : vector<1x128xf32> to vector<128x128xf32>
    %258 = vector.broadcast %26 : vector<128x1xf32> to vector<128x128xf32>
    %259 = arith.subf %257, %258 : vector<128x128xf32>
    %260 = math.absf %259 : vector<128x128xf32>
    %cst_87 = arith.constant 1.000000e+00 : f32
    %261 = vector.broadcast %cst_87 : f32 to vector<128x128xf32>
    %262 = arith.subf %261, %260 : vector<128x128xf32>
    %cst_88 = arith.constant 0.000000e+00 : f32
    %263 = vector.broadcast %cst_88 : f32 to vector<128x128xf32>
    %264 = arith.maximumf %262, %263 : vector<128x128xf32>
    %265 = arith.mulf %256, %264 : vector<128x128xf32>
    %cst_89 = arith.constant dense<0.000000e+00> : vector<4x128xf32>
    %266 = tpu.matmul %210, %265, %cst_89 {dimension_numbers = #tpu.dot_dimension_numbers<[1], [0], [0], [1], [0, 0, 1, 1], [], []>} : vector<4x128xf32>, vector<128x128xf32>, vector<4x128xf32> -> vector<4x128xf32>
    %267 = vector.broadcast %243 : vector<1x128xf32> to vector<4x128xf32>
    %268 = arith.mulf %267, %266 : vector<4x128xf32>
    %269 = arith.addf %240, %268 : vector<4x128xf32>
    %270 = vector.extract_strided_slice %25 {offsets = [16, 0], sizes = [4, 128], strides = [1, 1]} : vector<32x128xf32> to vector<4x128xf32>
    %cst_90 = arith.constant 0.000000e+00 : f32
    %271 = vector.broadcast %cst_90 : f32 to vector<4x128xf32>
    %272 = vector.extract_strided_slice %17 {offsets = [4, 0], sizes = [1, 128], strides = [1, 1]} : vector<32x128xf32> to vector<1x128xf32>
    %273 = vector.extract_strided_slice %17 {offsets = [20, 0], sizes = [1, 128], strides = [1, 1]} : vector<32x128xf32> to vector<1x128xf32>
    %274 = vector.extract_strided_slice %10 {offsets = [4, 0], sizes = [1, 128], strides = [1, 1]} : vector<32x128xf32> to vector<1x128xf32>
    %cst_91 = arith.constant -1.000000e+00 : f32
    %cst_92 = arith.constant 8.000000e+00 : f32
    %275 = vector.broadcast %cst_91 : f32 to vector<1x128xf32>
    %276 = arith.maximumf %275, %273 : vector<1x128xf32>
    %277 = vector.broadcast %cst_92 : f32 to vector<1x128xf32>
    %278 = arith.minimumf %277, %276 : vector<1x128xf32>
    %279 = arith.addf %278, %29 : vector<1x128xf32>
    %280 = vector.broadcast %272 : vector<1x128xf32> to vector<128x128xf32>
    %281 = vector.broadcast %27 : vector<128x1xf32> to vector<128x128xf32>
    %282 = arith.subf %280, %281 : vector<128x128xf32>
    %283 = math.absf %282 : vector<128x128xf32>
    %cst_93 = arith.constant 1.000000e+00 : f32
    %284 = vector.broadcast %cst_93 : f32 to vector<128x128xf32>
    %285 = arith.subf %284, %283 : vector<128x128xf32>
    %cst_94 = arith.constant 0.000000e+00 : f32
    %286 = vector.broadcast %cst_94 : f32 to vector<128x128xf32>
    %287 = arith.maximumf %285, %286 : vector<128x128xf32>
    %288 = vector.broadcast %279 : vector<1x128xf32> to vector<128x128xf32>
    %289 = vector.broadcast %26 : vector<128x1xf32> to vector<128x128xf32>
    %290 = arith.subf %288, %289 : vector<128x128xf32>
    %291 = math.absf %290 : vector<128x128xf32>
    %cst_95 = arith.constant 1.000000e+00 : f32
    %292 = vector.broadcast %cst_95 : f32 to vector<128x128xf32>
    %293 = arith.subf %292, %291 : vector<128x128xf32>
    %cst_96 = arith.constant 0.000000e+00 : f32
    %294 = vector.broadcast %cst_96 : f32 to vector<128x128xf32>
    %295 = arith.maximumf %293, %294 : vector<128x128xf32>
    %296 = arith.mulf %287, %295 : vector<128x128xf32>
    %cst_97 = arith.constant dense<0.000000e+00> : vector<4x128xf32>
    %297 = tpu.matmul %270, %296, %cst_97 {dimension_numbers = #tpu.dot_dimension_numbers<[1], [0], [0], [1], [0, 0, 1, 1], [], []>} : vector<4x128xf32>, vector<128x128xf32>, vector<4x128xf32> -> vector<4x128xf32>
    %298 = vector.broadcast %274 : vector<1x128xf32> to vector<4x128xf32>
    %299 = arith.mulf %298, %297 : vector<4x128xf32>
    %300 = arith.addf %271, %299 : vector<4x128xf32>
    %301 = vector.extract_strided_slice %17 {offsets = [12, 0], sizes = [1, 128], strides = [1, 1]} : vector<32x128xf32> to vector<1x128xf32>
    %302 = vector.extract_strided_slice %17 {offsets = [28, 0], sizes = [1, 128], strides = [1, 1]} : vector<32x128xf32> to vector<1x128xf32>
    %303 = vector.extract_strided_slice %10 {offsets = [12, 0], sizes = [1, 128], strides = [1, 1]} : vector<32x128xf32> to vector<1x128xf32>
    %cst_98 = arith.constant -1.000000e+00 : f32
    %cst_99 = arith.constant 8.000000e+00 : f32
    %304 = vector.broadcast %cst_98 : f32 to vector<1x128xf32>
    %305 = arith.maximumf %304, %302 : vector<1x128xf32>
    %306 = vector.broadcast %cst_99 : f32 to vector<1x128xf32>
    %307 = arith.minimumf %306, %305 : vector<1x128xf32>
    %308 = arith.addf %307, %29 : vector<1x128xf32>
    %309 = vector.broadcast %301 : vector<1x128xf32> to vector<128x128xf32>
    %310 = vector.broadcast %27 : vector<128x1xf32> to vector<128x128xf32>
    %311 = arith.subf %309, %310 : vector<128x128xf32>
    %312 = math.absf %311 : vector<128x128xf32>
    %cst_100 = arith.constant 1.000000e+00 : f32
    %313 = vector.broadcast %cst_100 : f32 to vector<128x128xf32>
    %314 = arith.subf %313, %312 : vector<128x128xf32>
    %cst_101 = arith.constant 0.000000e+00 : f32
    %315 = vector.broadcast %cst_101 : f32 to vector<128x128xf32>
    %316 = arith.maximumf %314, %315 : vector<128x128xf32>
    %317 = vector.broadcast %308 : vector<1x128xf32> to vector<128x128xf32>
    %318 = vector.broadcast %26 : vector<128x1xf32> to vector<128x128xf32>
    %319 = arith.subf %317, %318 : vector<128x128xf32>
    %320 = math.absf %319 : vector<128x128xf32>
    %cst_102 = arith.constant 1.000000e+00 : f32
    %321 = vector.broadcast %cst_102 : f32 to vector<128x128xf32>
    %322 = arith.subf %321, %320 : vector<128x128xf32>
    %cst_103 = arith.constant 0.000000e+00 : f32
    %323 = vector.broadcast %cst_103 : f32 to vector<128x128xf32>
    %324 = arith.maximumf %322, %323 : vector<128x128xf32>
    %325 = arith.mulf %316, %324 : vector<128x128xf32>
    %cst_104 = arith.constant dense<0.000000e+00> : vector<4x128xf32>
    %326 = tpu.matmul %270, %325, %cst_104 {dimension_numbers = #tpu.dot_dimension_numbers<[1], [0], [0], [1], [0, 0, 1, 1], [], []>} : vector<4x128xf32>, vector<128x128xf32>, vector<4x128xf32> -> vector<4x128xf32>
    %327 = vector.broadcast %303 : vector<1x128xf32> to vector<4x128xf32>
    %328 = arith.mulf %327, %326 : vector<4x128xf32>
    %329 = arith.addf %300, %328 : vector<4x128xf32>
    %330 = vector.extract_strided_slice %25 {offsets = [20, 0], sizes = [4, 128], strides = [1, 1]} : vector<32x128xf32> to vector<4x128xf32>
    %cst_105 = arith.constant 0.000000e+00 : f32
    %331 = vector.broadcast %cst_105 : f32 to vector<4x128xf32>
    %332 = vector.extract_strided_slice %17 {offsets = [5, 0], sizes = [1, 128], strides = [1, 1]} : vector<32x128xf32> to vector<1x128xf32>
    %333 = vector.extract_strided_slice %17 {offsets = [21, 0], sizes = [1, 128], strides = [1, 1]} : vector<32x128xf32> to vector<1x128xf32>
    %334 = vector.extract_strided_slice %10 {offsets = [5, 0], sizes = [1, 128], strides = [1, 1]} : vector<32x128xf32> to vector<1x128xf32>
    %cst_106 = arith.constant -1.000000e+00 : f32
    %cst_107 = arith.constant 8.000000e+00 : f32
    %335 = vector.broadcast %cst_106 : f32 to vector<1x128xf32>
    %336 = arith.maximumf %335, %333 : vector<1x128xf32>
    %337 = vector.broadcast %cst_107 : f32 to vector<1x128xf32>
    %338 = arith.minimumf %337, %336 : vector<1x128xf32>
    %339 = arith.addf %338, %29 : vector<1x128xf32>
    %340 = vector.broadcast %332 : vector<1x128xf32> to vector<128x128xf32>
    %341 = vector.broadcast %27 : vector<128x1xf32> to vector<128x128xf32>
    %342 = arith.subf %340, %341 : vector<128x128xf32>
    %343 = math.absf %342 : vector<128x128xf32>
    %cst_108 = arith.constant 1.000000e+00 : f32
    %344 = vector.broadcast %cst_108 : f32 to vector<128x128xf32>
    %345 = arith.subf %344, %343 : vector<128x128xf32>
    %cst_109 = arith.constant 0.000000e+00 : f32
    %346 = vector.broadcast %cst_109 : f32 to vector<128x128xf32>
    %347 = arith.maximumf %345, %346 : vector<128x128xf32>
    %348 = vector.broadcast %339 : vector<1x128xf32> to vector<128x128xf32>
    %349 = vector.broadcast %26 : vector<128x1xf32> to vector<128x128xf32>
    %350 = arith.subf %348, %349 : vector<128x128xf32>
    %351 = math.absf %350 : vector<128x128xf32>
    %cst_110 = arith.constant 1.000000e+00 : f32
    %352 = vector.broadcast %cst_110 : f32 to vector<128x128xf32>
    %353 = arith.subf %352, %351 : vector<128x128xf32>
    %cst_111 = arith.constant 0.000000e+00 : f32
    %354 = vector.broadcast %cst_111 : f32 to vector<128x128xf32>
    %355 = arith.maximumf %353, %354 : vector<128x128xf32>
    %356 = arith.mulf %347, %355 : vector<128x128xf32>
    %cst_112 = arith.constant dense<0.000000e+00> : vector<4x128xf32>
    %357 = tpu.matmul %330, %356, %cst_112 {dimension_numbers = #tpu.dot_dimension_numbers<[1], [0], [0], [1], [0, 0, 1, 1], [], []>} : vector<4x128xf32>, vector<128x128xf32>, vector<4x128xf32> -> vector<4x128xf32>
    %358 = vector.broadcast %334 : vector<1x128xf32> to vector<4x128xf32>
    %359 = arith.mulf %358, %357 : vector<4x128xf32>
    %360 = arith.addf %331, %359 : vector<4x128xf32>
    %361 = vector.extract_strided_slice %17 {offsets = [13, 0], sizes = [1, 128], strides = [1, 1]} : vector<32x128xf32> to vector<1x128xf32>
    %362 = vector.extract_strided_slice %17 {offsets = [29, 0], sizes = [1, 128], strides = [1, 1]} : vector<32x128xf32> to vector<1x128xf32>
    %363 = vector.extract_strided_slice %10 {offsets = [13, 0], sizes = [1, 128], strides = [1, 1]} : vector<32x128xf32> to vector<1x128xf32>
    %cst_113 = arith.constant -1.000000e+00 : f32
    %cst_114 = arith.constant 8.000000e+00 : f32
    %364 = vector.broadcast %cst_113 : f32 to vector<1x128xf32>
    %365 = arith.maximumf %364, %362 : vector<1x128xf32>
    %366 = vector.broadcast %cst_114 : f32 to vector<1x128xf32>
    %367 = arith.minimumf %366, %365 : vector<1x128xf32>
    %368 = arith.addf %367, %29 : vector<1x128xf32>
    %369 = vector.broadcast %361 : vector<1x128xf32> to vector<128x128xf32>
    %370 = vector.broadcast %27 : vector<128x1xf32> to vector<128x128xf32>
    %371 = arith.subf %369, %370 : vector<128x128xf32>
    %372 = math.absf %371 : vector<128x128xf32>
    %cst_115 = arith.constant 1.000000e+00 : f32
    %373 = vector.broadcast %cst_115 : f32 to vector<128x128xf32>
    %374 = arith.subf %373, %372 : vector<128x128xf32>
    %cst_116 = arith.constant 0.000000e+00 : f32
    %375 = vector.broadcast %cst_116 : f32 to vector<128x128xf32>
    %376 = arith.maximumf %374, %375 : vector<128x128xf32>
    %377 = vector.broadcast %368 : vector<1x128xf32> to vector<128x128xf32>
    %378 = vector.broadcast %26 : vector<128x1xf32> to vector<128x128xf32>
    %379 = arith.subf %377, %378 : vector<128x128xf32>
    %380 = math.absf %379 : vector<128x128xf32>
    %cst_117 = arith.constant 1.000000e+00 : f32
    %381 = vector.broadcast %cst_117 : f32 to vector<128x128xf32>
    %382 = arith.subf %381, %380 : vector<128x128xf32>
    %cst_118 = arith.constant 0.000000e+00 : f32
    %383 = vector.broadcast %cst_118 : f32 to vector<128x128xf32>
    %384 = arith.maximumf %382, %383 : vector<128x128xf32>
    %385 = arith.mulf %376, %384 : vector<128x128xf32>
    %cst_119 = arith.constant dense<0.000000e+00> : vector<4x128xf32>
    %386 = tpu.matmul %330, %385, %cst_119 {dimension_numbers = #tpu.dot_dimension_numbers<[1], [0], [0], [1], [0, 0, 1, 1], [], []>} : vector<4x128xf32>, vector<128x128xf32>, vector<4x128xf32> -> vector<4x128xf32>
    %387 = vector.broadcast %363 : vector<1x128xf32> to vector<4x128xf32>
    %388 = arith.mulf %387, %386 : vector<4x128xf32>
    %389 = arith.addf %360, %388 : vector<4x128xf32>
    %390 = vector.extract_strided_slice %25 {offsets = [24, 0], sizes = [4, 128], strides = [1, 1]} : vector<32x128xf32> to vector<4x128xf32>
    %cst_120 = arith.constant 0.000000e+00 : f32
    %391 = vector.broadcast %cst_120 : f32 to vector<4x128xf32>
    %392 = vector.extract_strided_slice %17 {offsets = [6, 0], sizes = [1, 128], strides = [1, 1]} : vector<32x128xf32> to vector<1x128xf32>
    %393 = vector.extract_strided_slice %17 {offsets = [22, 0], sizes = [1, 128], strides = [1, 1]} : vector<32x128xf32> to vector<1x128xf32>
    %394 = vector.extract_strided_slice %10 {offsets = [6, 0], sizes = [1, 128], strides = [1, 1]} : vector<32x128xf32> to vector<1x128xf32>
    %cst_121 = arith.constant -1.000000e+00 : f32
    %cst_122 = arith.constant 8.000000e+00 : f32
    %395 = vector.broadcast %cst_121 : f32 to vector<1x128xf32>
    %396 = arith.maximumf %395, %393 : vector<1x128xf32>
    %397 = vector.broadcast %cst_122 : f32 to vector<1x128xf32>
    %398 = arith.minimumf %397, %396 : vector<1x128xf32>
    %399 = arith.addf %398, %29 : vector<1x128xf32>
    %400 = vector.broadcast %392 : vector<1x128xf32> to vector<128x128xf32>
    %401 = vector.broadcast %27 : vector<128x1xf32> to vector<128x128xf32>
    %402 = arith.subf %400, %401 : vector<128x128xf32>
    %403 = math.absf %402 : vector<128x128xf32>
    %cst_123 = arith.constant 1.000000e+00 : f32
    %404 = vector.broadcast %cst_123 : f32 to vector<128x128xf32>
    %405 = arith.subf %404, %403 : vector<128x128xf32>
    %cst_124 = arith.constant 0.000000e+00 : f32
    %406 = vector.broadcast %cst_124 : f32 to vector<128x128xf32>
    %407 = arith.maximumf %405, %406 : vector<128x128xf32>
    %408 = vector.broadcast %399 : vector<1x128xf32> to vector<128x128xf32>
    %409 = vector.broadcast %26 : vector<128x1xf32> to vector<128x128xf32>
    %410 = arith.subf %408, %409 : vector<128x128xf32>
    %411 = math.absf %410 : vector<128x128xf32>
    %cst_125 = arith.constant 1.000000e+00 : f32
    %412 = vector.broadcast %cst_125 : f32 to vector<128x128xf32>
    %413 = arith.subf %412, %411 : vector<128x128xf32>
    %cst_126 = arith.constant 0.000000e+00 : f32
    %414 = vector.broadcast %cst_126 : f32 to vector<128x128xf32>
    %415 = arith.maximumf %413, %414 : vector<128x128xf32>
    %416 = arith.mulf %407, %415 : vector<128x128xf32>
    %cst_127 = arith.constant dense<0.000000e+00> : vector<4x128xf32>
    %417 = tpu.matmul %390, %416, %cst_127 {dimension_numbers = #tpu.dot_dimension_numbers<[1], [0], [0], [1], [0, 0, 1, 1], [], []>} : vector<4x128xf32>, vector<128x128xf32>, vector<4x128xf32> -> vector<4x128xf32>
    %418 = vector.broadcast %394 : vector<1x128xf32> to vector<4x128xf32>
    %419 = arith.mulf %418, %417 : vector<4x128xf32>
    %420 = arith.addf %391, %419 : vector<4x128xf32>
    %421 = vector.extract_strided_slice %17 {offsets = [14, 0], sizes = [1, 128], strides = [1, 1]} : vector<32x128xf32> to vector<1x128xf32>
    %422 = vector.extract_strided_slice %17 {offsets = [30, 0], sizes = [1, 128], strides = [1, 1]} : vector<32x128xf32> to vector<1x128xf32>
    %423 = vector.extract_strided_slice %10 {offsets = [14, 0], sizes = [1, 128], strides = [1, 1]} : vector<32x128xf32> to vector<1x128xf32>
    %cst_128 = arith.constant -1.000000e+00 : f32
    %cst_129 = arith.constant 8.000000e+00 : f32
    %424 = vector.broadcast %cst_128 : f32 to vector<1x128xf32>
    %425 = arith.maximumf %424, %422 : vector<1x128xf32>
    %426 = vector.broadcast %cst_129 : f32 to vector<1x128xf32>
    %427 = arith.minimumf %426, %425 : vector<1x128xf32>
    %428 = arith.addf %427, %29 : vector<1x128xf32>
    %429 = vector.broadcast %421 : vector<1x128xf32> to vector<128x128xf32>
    %430 = vector.broadcast %27 : vector<128x1xf32> to vector<128x128xf32>
    %431 = arith.subf %429, %430 : vector<128x128xf32>
    %432 = math.absf %431 : vector<128x128xf32>
    %cst_130 = arith.constant 1.000000e+00 : f32
    %433 = vector.broadcast %cst_130 : f32 to vector<128x128xf32>
    %434 = arith.subf %433, %432 : vector<128x128xf32>
    %cst_131 = arith.constant 0.000000e+00 : f32
    %435 = vector.broadcast %cst_131 : f32 to vector<128x128xf32>
    %436 = arith.maximumf %434, %435 : vector<128x128xf32>
    %437 = vector.broadcast %428 : vector<1x128xf32> to vector<128x128xf32>
    %438 = vector.broadcast %26 : vector<128x1xf32> to vector<128x128xf32>
    %439 = arith.subf %437, %438 : vector<128x128xf32>
    %440 = math.absf %439 : vector<128x128xf32>
    %cst_132 = arith.constant 1.000000e+00 : f32
    %441 = vector.broadcast %cst_132 : f32 to vector<128x128xf32>
    %442 = arith.subf %441, %440 : vector<128x128xf32>
    %cst_133 = arith.constant 0.000000e+00 : f32
    %443 = vector.broadcast %cst_133 : f32 to vector<128x128xf32>
    %444 = arith.maximumf %442, %443 : vector<128x128xf32>
    %445 = arith.mulf %436, %444 : vector<128x128xf32>
    %cst_134 = arith.constant dense<0.000000e+00> : vector<4x128xf32>
    %446 = tpu.matmul %390, %445, %cst_134 {dimension_numbers = #tpu.dot_dimension_numbers<[1], [0], [0], [1], [0, 0, 1, 1], [], []>} : vector<4x128xf32>, vector<128x128xf32>, vector<4x128xf32> -> vector<4x128xf32>
    %447 = vector.broadcast %423 : vector<1x128xf32> to vector<4x128xf32>
    %448 = arith.mulf %447, %446 : vector<4x128xf32>
    %449 = arith.addf %420, %448 : vector<4x128xf32>
    %450 = vector.extract_strided_slice %25 {offsets = [28, 0], sizes = [4, 128], strides = [1, 1]} : vector<32x128xf32> to vector<4x128xf32>
    %cst_135 = arith.constant 0.000000e+00 : f32
    %451 = vector.broadcast %cst_135 : f32 to vector<4x128xf32>
    %452 = vector.extract_strided_slice %17 {offsets = [7, 0], sizes = [1, 128], strides = [1, 1]} : vector<32x128xf32> to vector<1x128xf32>
    %453 = vector.extract_strided_slice %17 {offsets = [23, 0], sizes = [1, 128], strides = [1, 1]} : vector<32x128xf32> to vector<1x128xf32>
    %454 = vector.extract_strided_slice %10 {offsets = [7, 0], sizes = [1, 128], strides = [1, 1]} : vector<32x128xf32> to vector<1x128xf32>
    %cst_136 = arith.constant -1.000000e+00 : f32
    %cst_137 = arith.constant 8.000000e+00 : f32
    %455 = vector.broadcast %cst_136 : f32 to vector<1x128xf32>
    %456 = arith.maximumf %455, %453 : vector<1x128xf32>
    %457 = vector.broadcast %cst_137 : f32 to vector<1x128xf32>
    %458 = arith.minimumf %457, %456 : vector<1x128xf32>
    %459 = arith.addf %458, %29 : vector<1x128xf32>
    %460 = vector.broadcast %452 : vector<1x128xf32> to vector<128x128xf32>
    %461 = vector.broadcast %27 : vector<128x1xf32> to vector<128x128xf32>
    %462 = arith.subf %460, %461 : vector<128x128xf32>
    %463 = math.absf %462 : vector<128x128xf32>
    %cst_138 = arith.constant 1.000000e+00 : f32
    %464 = vector.broadcast %cst_138 : f32 to vector<128x128xf32>
    %465 = arith.subf %464, %463 : vector<128x128xf32>
    %cst_139 = arith.constant 0.000000e+00 : f32
    %466 = vector.broadcast %cst_139 : f32 to vector<128x128xf32>
    %467 = arith.maximumf %465, %466 : vector<128x128xf32>
    %468 = vector.broadcast %459 : vector<1x128xf32> to vector<128x128xf32>
    %469 = vector.broadcast %26 : vector<128x1xf32> to vector<128x128xf32>
    %470 = arith.subf %468, %469 : vector<128x128xf32>
    %471 = math.absf %470 : vector<128x128xf32>
    %cst_140 = arith.constant 1.000000e+00 : f32
    %472 = vector.broadcast %cst_140 : f32 to vector<128x128xf32>
    %473 = arith.subf %472, %471 : vector<128x128xf32>
    %cst_141 = arith.constant 0.000000e+00 : f32
    %474 = vector.broadcast %cst_141 : f32 to vector<128x128xf32>
    %475 = arith.maximumf %473, %474 : vector<128x128xf32>
    %476 = arith.mulf %467, %475 : vector<128x128xf32>
    %cst_142 = arith.constant dense<0.000000e+00> : vector<4x128xf32>
    %477 = tpu.matmul %450, %476, %cst_142 {dimension_numbers = #tpu.dot_dimension_numbers<[1], [0], [0], [1], [0, 0, 1, 1], [], []>} : vector<4x128xf32>, vector<128x128xf32>, vector<4x128xf32> -> vector<4x128xf32>
    %478 = vector.broadcast %454 : vector<1x128xf32> to vector<4x128xf32>
    %479 = arith.mulf %478, %477 : vector<4x128xf32>
    %480 = arith.addf %451, %479 : vector<4x128xf32>
    %481 = vector.extract_strided_slice %17 {offsets = [15, 0], sizes = [1, 128], strides = [1, 1]} : vector<32x128xf32> to vector<1x128xf32>
    %482 = vector.extract_strided_slice %17 {offsets = [31, 0], sizes = [1, 128], strides = [1, 1]} : vector<32x128xf32> to vector<1x128xf32>
    %483 = vector.extract_strided_slice %10 {offsets = [15, 0], sizes = [1, 128], strides = [1, 1]} : vector<32x128xf32> to vector<1x128xf32>
    %cst_143 = arith.constant -1.000000e+00 : f32
    %cst_144 = arith.constant 8.000000e+00 : f32
    %484 = vector.broadcast %cst_143 : f32 to vector<1x128xf32>
    %485 = arith.maximumf %484, %482 : vector<1x128xf32>
    %486 = vector.broadcast %cst_144 : f32 to vector<1x128xf32>
    %487 = arith.minimumf %486, %485 : vector<1x128xf32>
    %488 = arith.addf %487, %29 : vector<1x128xf32>
    %489 = vector.broadcast %481 : vector<1x128xf32> to vector<128x128xf32>
    %490 = vector.broadcast %27 : vector<128x1xf32> to vector<128x128xf32>
    %491 = arith.subf %489, %490 : vector<128x128xf32>
    %492 = math.absf %491 : vector<128x128xf32>
    %cst_145 = arith.constant 1.000000e+00 : f32
    %493 = vector.broadcast %cst_145 : f32 to vector<128x128xf32>
    %494 = arith.subf %493, %492 : vector<128x128xf32>
    %cst_146 = arith.constant 0.000000e+00 : f32
    %495 = vector.broadcast %cst_146 : f32 to vector<128x128xf32>
    %496 = arith.maximumf %494, %495 : vector<128x128xf32>
    %497 = vector.broadcast %488 : vector<1x128xf32> to vector<128x128xf32>
    %498 = vector.broadcast %26 : vector<128x1xf32> to vector<128x128xf32>
    %499 = arith.subf %497, %498 : vector<128x128xf32>
    %500 = math.absf %499 : vector<128x128xf32>
    %cst_147 = arith.constant 1.000000e+00 : f32
    %501 = vector.broadcast %cst_147 : f32 to vector<128x128xf32>
    %502 = arith.subf %501, %500 : vector<128x128xf32>
    %cst_148 = arith.constant 0.000000e+00 : f32
    %503 = vector.broadcast %cst_148 : f32 to vector<128x128xf32>
    %504 = arith.maximumf %502, %503 : vector<128x128xf32>
    %505 = arith.mulf %496, %504 : vector<128x128xf32>
    %cst_149 = arith.constant dense<0.000000e+00> : vector<4x128xf32>
    %506 = tpu.matmul %450, %505, %cst_149 {dimension_numbers = #tpu.dot_dimension_numbers<[1], [0], [0], [1], [0, 0, 1, 1], [], []>} : vector<4x128xf32>, vector<128x128xf32>, vector<4x128xf32> -> vector<4x128xf32>
    %507 = vector.broadcast %483 : vector<1x128xf32> to vector<4x128xf32>
    %508 = arith.mulf %507, %506 : vector<4x128xf32>
    %509 = arith.addf %480, %508 : vector<4x128xf32>
    %510 = tpu.concatenate %89, %149, %209, %269, %329, %389, %449, %509 in 0 : vector<4x128xf32>, vector<4x128xf32>, vector<4x128xf32>, vector<4x128xf32>, vector<4x128xf32>, vector<4x128xf32>, vector<4x128xf32>, vector<4x128xf32> -> vector<32x128xf32>
    %511 = arith.addf %11, %510 : vector<32x128xf32>
    %c1 = arith.constant 1 : index
    %c0_150 = arith.constant 0 : index
    %c0_151 = arith.constant 0 : index
    %512 = vector.load %arg5[%c1, %c0_150, %c0_151] : memref<2x32x32xf32, #tpu.memory_space<vmem>>, vector<1x32x32xf32>
    %513 = vector.shape_cast %512 : vector<1x32x32xf32> to vector<32x32xf32>
    %cst_152 = arith.constant dense<0.000000e+00> : vector<32x128xf32>
    %514 = tpu.matmul %513, %0, %cst_152 {dimension_numbers = #tpu.dot_dimension_numbers<[1], [0], [0], [1], [0, 0, 1, 1], [], []>} : vector<32x32xf32>, vector<32x128xf32>, vector<32x128xf32> -> vector<32x128xf32>
    %c1_153 = arith.constant 1 : index
    %c0_154 = arith.constant 0 : index
    %c0_155 = arith.constant 0 : index
    %515 = vector.load %arg2[%c1_153, %c0_154, %c0_155] : memref<2x32x128xf32, #tpu.memory_space<vmem>>, vector<1x32x128xf32>
    %516 = vector.shape_cast %515 : vector<1x32x128xf32> to vector<32x128xf32>
    %517 = arith.addf %514, %516 : vector<32x128xf32>
    %c1_156 = arith.constant 1 : index
    %c0_157 = arith.constant 0 : index
    %c0_158 = arith.constant 0 : index
    %518 = vector.load %arg6[%c1_156, %c0_157, %c0_158] : memref<2x32x32xf32, #tpu.memory_space<vmem>>, vector<1x32x32xf32>
    %519 = vector.shape_cast %518 : vector<1x32x32xf32> to vector<32x32xf32>
    %c0_159 = arith.constant 0 : index
    %c0_160 = arith.constant 0 : index
    %520 = vector.load %arg4[%c0_159, %c0_160] : memref<32x32xf32, #tpu.memory_space<vmem>>, vector<32x32xf32>
    %cst_161 = arith.constant dense<0.000000e+00> : vector<32x32xf32>
    %521 = tpu.matmul %519, %520, %cst_161 {dimension_numbers = #tpu.dot_dimension_numbers<[1], [0], [0], [1], [0, 0, 1, 1], [], []>} : vector<32x32xf32>, vector<32x32xf32>, vector<32x32xf32> -> vector<32x32xf32>
    %c1_162 = arith.constant 1 : index
    %c0_163 = arith.constant 0 : index
    %c0_164 = arith.constant 0 : index
    %522 = vector.load %arg7[%c1_162, %c0_163, %c0_164] : memref<2x32x1xf32, #tpu.memory_space<vmem>>, vector<1x32x1xf32>
    %523 = vector.shape_cast %522 : vector<1x32x1xf32> to vector<32x1xf32>
    %524 = vector.broadcast %523 : vector<32x1xf32> to vector<32x32xf32>
    %525 = arith.addf %521, %524 : vector<32x32xf32>
    %c0_165 = arith.constant 0 : index
    %c0_166 = arith.constant 0 : index
    %526 = vector.load %arg14[%c0_165, %c0_166] : memref<32x1xf32, #tpu.memory_space<vmem>>, vector<32x1xf32>
    %c0_167 = arith.constant 0 : index
    %c0_168 = arith.constant 0 : index
    %527 = vector.load %arg15[%c0_167, %c0_168] : memref<32x1xf32, #tpu.memory_space<vmem>>, vector<32x1xf32>
    %c1_169 = arith.constant 1 : index
    %c0_170 = arith.constant 0 : index
    %c0_171 = arith.constant 0 : index
    %528 = vector.load %arg16[%c1_169, %c0_170, %c0_171] : memref<2x1x128xf32, #tpu.memory_space<vmem>>, vector<1x1x128xf32>
    %529 = vector.shape_cast %528 : vector<1x1x128xf32> to vector<1x128xf32>
    %530 = vector.extract_strided_slice %525 {offsets = [0, 0], sizes = [4, 32], strides = [1, 1]} : vector<32x32xf32> to vector<4x32xf32>
    %cst_172 = arith.constant 0.000000e+00 : f32
    %531 = vector.broadcast %cst_172 : f32 to vector<4x128xf32>
    %532 = vector.extract_strided_slice %517 {offsets = [0, 0], sizes = [1, 128], strides = [1, 1]} : vector<32x128xf32> to vector<1x128xf32>
    %533 = vector.extract_strided_slice %517 {offsets = [16, 0], sizes = [1, 128], strides = [1, 1]} : vector<32x128xf32> to vector<1x128xf32>
    %534 = vector.extract_strided_slice %10 {offsets = [16, 0], sizes = [1, 128], strides = [1, 1]} : vector<32x128xf32> to vector<1x128xf32>
    %cst_173 = arith.constant -1.000000e+00 : f32
    %cst_174 = arith.constant 4.000000e+00 : f32
    %535 = vector.broadcast %cst_173 : f32 to vector<1x128xf32>
    %536 = arith.maximumf %535, %533 : vector<1x128xf32>
    %537 = vector.broadcast %cst_174 : f32 to vector<1x128xf32>
    %538 = arith.minimumf %537, %536 : vector<1x128xf32>
    %539 = arith.addf %538, %529 : vector<1x128xf32>
    %540 = vector.broadcast %532 : vector<1x128xf32> to vector<32x128xf32>
    %541 = vector.broadcast %527 : vector<32x1xf32> to vector<32x128xf32>
    %542 = arith.subf %540, %541 : vector<32x128xf32>
    %543 = math.absf %542 : vector<32x128xf32>
    %cst_175 = arith.constant 1.000000e+00 : f32
    %544 = vector.broadcast %cst_175 : f32 to vector<32x128xf32>
    %545 = arith.subf %544, %543 : vector<32x128xf32>
    %cst_176 = arith.constant 0.000000e+00 : f32
    %546 = vector.broadcast %cst_176 : f32 to vector<32x128xf32>
    %547 = arith.maximumf %545, %546 : vector<32x128xf32>
    %548 = vector.broadcast %539 : vector<1x128xf32> to vector<32x128xf32>
    %549 = vector.broadcast %526 : vector<32x1xf32> to vector<32x128xf32>
    %550 = arith.subf %548, %549 : vector<32x128xf32>
    %551 = math.absf %550 : vector<32x128xf32>
    %cst_177 = arith.constant 1.000000e+00 : f32
    %552 = vector.broadcast %cst_177 : f32 to vector<32x128xf32>
    %553 = arith.subf %552, %551 : vector<32x128xf32>
    %cst_178 = arith.constant 0.000000e+00 : f32
    %554 = vector.broadcast %cst_178 : f32 to vector<32x128xf32>
    %555 = arith.maximumf %553, %554 : vector<32x128xf32>
    %556 = arith.mulf %547, %555 : vector<32x128xf32>
    %cst_179 = arith.constant dense<0.000000e+00> : vector<4x128xf32>
    %557 = tpu.matmul %530, %556, %cst_179 {dimension_numbers = #tpu.dot_dimension_numbers<[1], [0], [0], [1], [0, 0, 1, 1], [], []>} : vector<4x32xf32>, vector<32x128xf32>, vector<4x128xf32> -> vector<4x128xf32>
    %558 = vector.broadcast %534 : vector<1x128xf32> to vector<4x128xf32>
    %559 = arith.mulf %558, %557 : vector<4x128xf32>
    %560 = arith.addf %531, %559 : vector<4x128xf32>
    %561 = vector.extract_strided_slice %517 {offsets = [8, 0], sizes = [1, 128], strides = [1, 1]} : vector<32x128xf32> to vector<1x128xf32>
    %562 = vector.extract_strided_slice %517 {offsets = [24, 0], sizes = [1, 128], strides = [1, 1]} : vector<32x128xf32> to vector<1x128xf32>
    %563 = vector.extract_strided_slice %10 {offsets = [24, 0], sizes = [1, 128], strides = [1, 1]} : vector<32x128xf32> to vector<1x128xf32>
    %cst_180 = arith.constant -1.000000e+00 : f32
    %cst_181 = arith.constant 4.000000e+00 : f32
    %564 = vector.broadcast %cst_180 : f32 to vector<1x128xf32>
    %565 = arith.maximumf %564, %562 : vector<1x128xf32>
    %566 = vector.broadcast %cst_181 : f32 to vector<1x128xf32>
    %567 = arith.minimumf %566, %565 : vector<1x128xf32>
    %568 = arith.addf %567, %529 : vector<1x128xf32>
    %569 = vector.broadcast %561 : vector<1x128xf32> to vector<32x128xf32>
    %570 = vector.broadcast %527 : vector<32x1xf32> to vector<32x128xf32>
    %571 = arith.subf %569, %570 : vector<32x128xf32>
    %572 = math.absf %571 : vector<32x128xf32>
    %cst_182 = arith.constant 1.000000e+00 : f32
    %573 = vector.broadcast %cst_182 : f32 to vector<32x128xf32>
    %574 = arith.subf %573, %572 : vector<32x128xf32>
    %cst_183 = arith.constant 0.000000e+00 : f32
    %575 = vector.broadcast %cst_183 : f32 to vector<32x128xf32>
    %576 = arith.maximumf %574, %575 : vector<32x128xf32>
    %577 = vector.broadcast %568 : vector<1x128xf32> to vector<32x128xf32>
    %578 = vector.broadcast %526 : vector<32x1xf32> to vector<32x128xf32>
    %579 = arith.subf %577, %578 : vector<32x128xf32>
    %580 = math.absf %579 : vector<32x128xf32>
    %cst_184 = arith.constant 1.000000e+00 : f32
    %581 = vector.broadcast %cst_184 : f32 to vector<32x128xf32>
    %582 = arith.subf %581, %580 : vector<32x128xf32>
    %cst_185 = arith.constant 0.000000e+00 : f32
    %583 = vector.broadcast %cst_185 : f32 to vector<32x128xf32>
    %584 = arith.maximumf %582, %583 : vector<32x128xf32>
    %585 = arith.mulf %576, %584 : vector<32x128xf32>
    %cst_186 = arith.constant dense<0.000000e+00> : vector<4x128xf32>
    %586 = tpu.matmul %530, %585, %cst_186 {dimension_numbers = #tpu.dot_dimension_numbers<[1], [0], [0], [1], [0, 0, 1, 1], [], []>} : vector<4x32xf32>, vector<32x128xf32>, vector<4x128xf32> -> vector<4x128xf32>
    %587 = vector.broadcast %563 : vector<1x128xf32> to vector<4x128xf32>
    %588 = arith.mulf %587, %586 : vector<4x128xf32>
    %589 = arith.addf %560, %588 : vector<4x128xf32>
    %590 = vector.extract_strided_slice %525 {offsets = [4, 0], sizes = [4, 32], strides = [1, 1]} : vector<32x32xf32> to vector<4x32xf32>
    %cst_187 = arith.constant 0.000000e+00 : f32
    %591 = vector.broadcast %cst_187 : f32 to vector<4x128xf32>
    %592 = vector.extract_strided_slice %517 {offsets = [1, 0], sizes = [1, 128], strides = [1, 1]} : vector<32x128xf32> to vector<1x128xf32>
    %593 = vector.extract_strided_slice %517 {offsets = [17, 0], sizes = [1, 128], strides = [1, 1]} : vector<32x128xf32> to vector<1x128xf32>
    %594 = vector.extract_strided_slice %10 {offsets = [17, 0], sizes = [1, 128], strides = [1, 1]} : vector<32x128xf32> to vector<1x128xf32>
    %cst_188 = arith.constant -1.000000e+00 : f32
    %cst_189 = arith.constant 4.000000e+00 : f32
    %595 = vector.broadcast %cst_188 : f32 to vector<1x128xf32>
    %596 = arith.maximumf %595, %593 : vector<1x128xf32>
    %597 = vector.broadcast %cst_189 : f32 to vector<1x128xf32>
    %598 = arith.minimumf %597, %596 : vector<1x128xf32>
    %599 = arith.addf %598, %529 : vector<1x128xf32>
    %600 = vector.broadcast %592 : vector<1x128xf32> to vector<32x128xf32>
    %601 = vector.broadcast %527 : vector<32x1xf32> to vector<32x128xf32>
    %602 = arith.subf %600, %601 : vector<32x128xf32>
    %603 = math.absf %602 : vector<32x128xf32>
    %cst_190 = arith.constant 1.000000e+00 : f32
    %604 = vector.broadcast %cst_190 : f32 to vector<32x128xf32>
    %605 = arith.subf %604, %603 : vector<32x128xf32>
    %cst_191 = arith.constant 0.000000e+00 : f32
    %606 = vector.broadcast %cst_191 : f32 to vector<32x128xf32>
    %607 = arith.maximumf %605, %606 : vector<32x128xf32>
    %608 = vector.broadcast %599 : vector<1x128xf32> to vector<32x128xf32>
    %609 = vector.broadcast %526 : vector<32x1xf32> to vector<32x128xf32>
    %610 = arith.subf %608, %609 : vector<32x128xf32>
    %611 = math.absf %610 : vector<32x128xf32>
    %cst_192 = arith.constant 1.000000e+00 : f32
    %612 = vector.broadcast %cst_192 : f32 to vector<32x128xf32>
    %613 = arith.subf %612, %611 : vector<32x128xf32>
    %cst_193 = arith.constant 0.000000e+00 : f32
    %614 = vector.broadcast %cst_193 : f32 to vector<32x128xf32>
    %615 = arith.maximumf %613, %614 : vector<32x128xf32>
    %616 = arith.mulf %607, %615 : vector<32x128xf32>
    %cst_194 = arith.constant dense<0.000000e+00> : vector<4x128xf32>
    %617 = tpu.matmul %590, %616, %cst_194 {dimension_numbers = #tpu.dot_dimension_numbers<[1], [0], [0], [1], [0, 0, 1, 1], [], []>} : vector<4x32xf32>, vector<32x128xf32>, vector<4x128xf32> -> vector<4x128xf32>
    %618 = vector.broadcast %594 : vector<1x128xf32> to vector<4x128xf32>
    %619 = arith.mulf %618, %617 : vector<4x128xf32>
    %620 = arith.addf %591, %619 : vector<4x128xf32>
    %621 = vector.extract_strided_slice %517 {offsets = [9, 0], sizes = [1, 128], strides = [1, 1]} : vector<32x128xf32> to vector<1x128xf32>
    %622 = vector.extract_strided_slice %517 {offsets = [25, 0], sizes = [1, 128], strides = [1, 1]} : vector<32x128xf32> to vector<1x128xf32>
    %623 = vector.extract_strided_slice %10 {offsets = [25, 0], sizes = [1, 128], strides = [1, 1]} : vector<32x128xf32> to vector<1x128xf32>
    %cst_195 = arith.constant -1.000000e+00 : f32
    %cst_196 = arith.constant 4.000000e+00 : f32
    %624 = vector.broadcast %cst_195 : f32 to vector<1x128xf32>
    %625 = arith.maximumf %624, %622 : vector<1x128xf32>
    %626 = vector.broadcast %cst_196 : f32 to vector<1x128xf32>
    %627 = arith.minimumf %626, %625 : vector<1x128xf32>
    %628 = arith.addf %627, %529 : vector<1x128xf32>
    %629 = vector.broadcast %621 : vector<1x128xf32> to vector<32x128xf32>
    %630 = vector.broadcast %527 : vector<32x1xf32> to vector<32x128xf32>
    %631 = arith.subf %629, %630 : vector<32x128xf32>
    %632 = math.absf %631 : vector<32x128xf32>
    %cst_197 = arith.constant 1.000000e+00 : f32
    %633 = vector.broadcast %cst_197 : f32 to vector<32x128xf32>
    %634 = arith.subf %633, %632 : vector<32x128xf32>
    %cst_198 = arith.constant 0.000000e+00 : f32
    %635 = vector.broadcast %cst_198 : f32 to vector<32x128xf32>
    %636 = arith.maximumf %634, %635 : vector<32x128xf32>
    %637 = vector.broadcast %628 : vector<1x128xf32> to vector<32x128xf32>
    %638 = vector.broadcast %526 : vector<32x1xf32> to vector<32x128xf32>
    %639 = arith.subf %637, %638 : vector<32x128xf32>
    %640 = math.absf %639 : vector<32x128xf32>
    %cst_199 = arith.constant 1.000000e+00 : f32
    %641 = vector.broadcast %cst_199 : f32 to vector<32x128xf32>
    %642 = arith.subf %641, %640 : vector<32x128xf32>
    %cst_200 = arith.constant 0.000000e+00 : f32
    %643 = vector.broadcast %cst_200 : f32 to vector<32x128xf32>
    %644 = arith.maximumf %642, %643 : vector<32x128xf32>
    %645 = arith.mulf %636, %644 : vector<32x128xf32>
    %cst_201 = arith.constant dense<0.000000e+00> : vector<4x128xf32>
    %646 = tpu.matmul %590, %645, %cst_201 {dimension_numbers = #tpu.dot_dimension_numbers<[1], [0], [0], [1], [0, 0, 1, 1], [], []>} : vector<4x32xf32>, vector<32x128xf32>, vector<4x128xf32> -> vector<4x128xf32>
    %647 = vector.broadcast %623 : vector<1x128xf32> to vector<4x128xf32>
    %648 = arith.mulf %647, %646 : vector<4x128xf32>
    %649 = arith.addf %620, %648 : vector<4x128xf32>
    %650 = vector.extract_strided_slice %525 {offsets = [8, 0], sizes = [4, 32], strides = [1, 1]} : vector<32x32xf32> to vector<4x32xf32>
    %cst_202 = arith.constant 0.000000e+00 : f32
    %651 = vector.broadcast %cst_202 : f32 to vector<4x128xf32>
    %652 = vector.extract_strided_slice %517 {offsets = [2, 0], sizes = [1, 128], strides = [1, 1]} : vector<32x128xf32> to vector<1x128xf32>
    %653 = vector.extract_strided_slice %517 {offsets = [18, 0], sizes = [1, 128], strides = [1, 1]} : vector<32x128xf32> to vector<1x128xf32>
    %654 = vector.extract_strided_slice %10 {offsets = [18, 0], sizes = [1, 128], strides = [1, 1]} : vector<32x128xf32> to vector<1x128xf32>
    %cst_203 = arith.constant -1.000000e+00 : f32
    %cst_204 = arith.constant 4.000000e+00 : f32
    %655 = vector.broadcast %cst_203 : f32 to vector<1x128xf32>
    %656 = arith.maximumf %655, %653 : vector<1x128xf32>
    %657 = vector.broadcast %cst_204 : f32 to vector<1x128xf32>
    %658 = arith.minimumf %657, %656 : vector<1x128xf32>
    %659 = arith.addf %658, %529 : vector<1x128xf32>
    %660 = vector.broadcast %652 : vector<1x128xf32> to vector<32x128xf32>
    %661 = vector.broadcast %527 : vector<32x1xf32> to vector<32x128xf32>
    %662 = arith.subf %660, %661 : vector<32x128xf32>
    %663 = math.absf %662 : vector<32x128xf32>
    %cst_205 = arith.constant 1.000000e+00 : f32
    %664 = vector.broadcast %cst_205 : f32 to vector<32x128xf32>
    %665 = arith.subf %664, %663 : vector<32x128xf32>
    %cst_206 = arith.constant 0.000000e+00 : f32
    %666 = vector.broadcast %cst_206 : f32 to vector<32x128xf32>
    %667 = arith.maximumf %665, %666 : vector<32x128xf32>
    %668 = vector.broadcast %659 : vector<1x128xf32> to vector<32x128xf32>
    %669 = vector.broadcast %526 : vector<32x1xf32> to vector<32x128xf32>
    %670 = arith.subf %668, %669 : vector<32x128xf32>
    %671 = math.absf %670 : vector<32x128xf32>
    %cst_207 = arith.constant 1.000000e+00 : f32
    %672 = vector.broadcast %cst_207 : f32 to vector<32x128xf32>
    %673 = arith.subf %672, %671 : vector<32x128xf32>
    %cst_208 = arith.constant 0.000000e+00 : f32
    %674 = vector.broadcast %cst_208 : f32 to vector<32x128xf32>
    %675 = arith.maximumf %673, %674 : vector<32x128xf32>
    %676 = arith.mulf %667, %675 : vector<32x128xf32>
    %cst_209 = arith.constant dense<0.000000e+00> : vector<4x128xf32>
    %677 = tpu.matmul %650, %676, %cst_209 {dimension_numbers = #tpu.dot_dimension_numbers<[1], [0], [0], [1], [0, 0, 1, 1], [], []>} : vector<4x32xf32>, vector<32x128xf32>, vector<4x128xf32> -> vector<4x128xf32>
    %678 = vector.broadcast %654 : vector<1x128xf32> to vector<4x128xf32>
    %679 = arith.mulf %678, %677 : vector<4x128xf32>
    %680 = arith.addf %651, %679 : vector<4x128xf32>
    %681 = vector.extract_strided_slice %517 {offsets = [10, 0], sizes = [1, 128], strides = [1, 1]} : vector<32x128xf32> to vector<1x128xf32>
    %682 = vector.extract_strided_slice %517 {offsets = [26, 0], sizes = [1, 128], strides = [1, 1]} : vector<32x128xf32> to vector<1x128xf32>
    %683 = vector.extract_strided_slice %10 {offsets = [26, 0], sizes = [1, 128], strides = [1, 1]} : vector<32x128xf32> to vector<1x128xf32>
    %cst_210 = arith.constant -1.000000e+00 : f32
    %cst_211 = arith.constant 4.000000e+00 : f32
    %684 = vector.broadcast %cst_210 : f32 to vector<1x128xf32>
    %685 = arith.maximumf %684, %682 : vector<1x128xf32>
    %686 = vector.broadcast %cst_211 : f32 to vector<1x128xf32>
    %687 = arith.minimumf %686, %685 : vector<1x128xf32>
    %688 = arith.addf %687, %529 : vector<1x128xf32>
    %689 = vector.broadcast %681 : vector<1x128xf32> to vector<32x128xf32>
    %690 = vector.broadcast %527 : vector<32x1xf32> to vector<32x128xf32>
    %691 = arith.subf %689, %690 : vector<32x128xf32>
    %692 = math.absf %691 : vector<32x128xf32>
    %cst_212 = arith.constant 1.000000e+00 : f32
    %693 = vector.broadcast %cst_212 : f32 to vector<32x128xf32>
    %694 = arith.subf %693, %692 : vector<32x128xf32>
    %cst_213 = arith.constant 0.000000e+00 : f32
    %695 = vector.broadcast %cst_213 : f32 to vector<32x128xf32>
    %696 = arith.maximumf %694, %695 : vector<32x128xf32>
    %697 = vector.broadcast %688 : vector<1x128xf32> to vector<32x128xf32>
    %698 = vector.broadcast %526 : vector<32x1xf32> to vector<32x128xf32>
    %699 = arith.subf %697, %698 : vector<32x128xf32>
    %700 = math.absf %699 : vector<32x128xf32>
    %cst_214 = arith.constant 1.000000e+00 : f32
    %701 = vector.broadcast %cst_214 : f32 to vector<32x128xf32>
    %702 = arith.subf %701, %700 : vector<32x128xf32>
    %cst_215 = arith.constant 0.000000e+00 : f32
    %703 = vector.broadcast %cst_215 : f32 to vector<32x128xf32>
    %704 = arith.maximumf %702, %703 : vector<32x128xf32>
    %705 = arith.mulf %696, %704 : vector<32x128xf32>
    %cst_216 = arith.constant dense<0.000000e+00> : vector<4x128xf32>
    %706 = tpu.matmul %650, %705, %cst_216 {dimension_numbers = #tpu.dot_dimension_numbers<[1], [0], [0], [1], [0, 0, 1, 1], [], []>} : vector<4x32xf32>, vector<32x128xf32>, vector<4x128xf32> -> vector<4x128xf32>
    %707 = vector.broadcast %683 : vector<1x128xf32> to vector<4x128xf32>
    %708 = arith.mulf %707, %706 : vector<4x128xf32>
    %709 = arith.addf %680, %708 : vector<4x128xf32>
    %710 = vector.extract_strided_slice %525 {offsets = [12, 0], sizes = [4, 32], strides = [1, 1]} : vector<32x32xf32> to vector<4x32xf32>
    %cst_217 = arith.constant 0.000000e+00 : f32
    %711 = vector.broadcast %cst_217 : f32 to vector<4x128xf32>
    %712 = vector.extract_strided_slice %517 {offsets = [3, 0], sizes = [1, 128], strides = [1, 1]} : vector<32x128xf32> to vector<1x128xf32>
    %713 = vector.extract_strided_slice %517 {offsets = [19, 0], sizes = [1, 128], strides = [1, 1]} : vector<32x128xf32> to vector<1x128xf32>
    %714 = vector.extract_strided_slice %10 {offsets = [19, 0], sizes = [1, 128], strides = [1, 1]} : vector<32x128xf32> to vector<1x128xf32>
    %cst_218 = arith.constant -1.000000e+00 : f32
    %cst_219 = arith.constant 4.000000e+00 : f32
    %715 = vector.broadcast %cst_218 : f32 to vector<1x128xf32>
    %716 = arith.maximumf %715, %713 : vector<1x128xf32>
    %717 = vector.broadcast %cst_219 : f32 to vector<1x128xf32>
    %718 = arith.minimumf %717, %716 : vector<1x128xf32>
    %719 = arith.addf %718, %529 : vector<1x128xf32>
    %720 = vector.broadcast %712 : vector<1x128xf32> to vector<32x128xf32>
    %721 = vector.broadcast %527 : vector<32x1xf32> to vector<32x128xf32>
    %722 = arith.subf %720, %721 : vector<32x128xf32>
    %723 = math.absf %722 : vector<32x128xf32>
    %cst_220 = arith.constant 1.000000e+00 : f32
    %724 = vector.broadcast %cst_220 : f32 to vector<32x128xf32>
    %725 = arith.subf %724, %723 : vector<32x128xf32>
    %cst_221 = arith.constant 0.000000e+00 : f32
    %726 = vector.broadcast %cst_221 : f32 to vector<32x128xf32>
    %727 = arith.maximumf %725, %726 : vector<32x128xf32>
    %728 = vector.broadcast %719 : vector<1x128xf32> to vector<32x128xf32>
    %729 = vector.broadcast %526 : vector<32x1xf32> to vector<32x128xf32>
    %730 = arith.subf %728, %729 : vector<32x128xf32>
    %731 = math.absf %730 : vector<32x128xf32>
    %cst_222 = arith.constant 1.000000e+00 : f32
    %732 = vector.broadcast %cst_222 : f32 to vector<32x128xf32>
    %733 = arith.subf %732, %731 : vector<32x128xf32>
    %cst_223 = arith.constant 0.000000e+00 : f32
    %734 = vector.broadcast %cst_223 : f32 to vector<32x128xf32>
    %735 = arith.maximumf %733, %734 : vector<32x128xf32>
    %736 = arith.mulf %727, %735 : vector<32x128xf32>
    %cst_224 = arith.constant dense<0.000000e+00> : vector<4x128xf32>
    %737 = tpu.matmul %710, %736, %cst_224 {dimension_numbers = #tpu.dot_dimension_numbers<[1], [0], [0], [1], [0, 0, 1, 1], [], []>} : vector<4x32xf32>, vector<32x128xf32>, vector<4x128xf32> -> vector<4x128xf32>
    %738 = vector.broadcast %714 : vector<1x128xf32> to vector<4x128xf32>
    %739 = arith.mulf %738, %737 : vector<4x128xf32>
    %740 = arith.addf %711, %739 : vector<4x128xf32>
    %741 = vector.extract_strided_slice %517 {offsets = [11, 0], sizes = [1, 128], strides = [1, 1]} : vector<32x128xf32> to vector<1x128xf32>
    %742 = vector.extract_strided_slice %517 {offsets = [27, 0], sizes = [1, 128], strides = [1, 1]} : vector<32x128xf32> to vector<1x128xf32>
    %743 = vector.extract_strided_slice %10 {offsets = [27, 0], sizes = [1, 128], strides = [1, 1]} : vector<32x128xf32> to vector<1x128xf32>
    %cst_225 = arith.constant -1.000000e+00 : f32
    %cst_226 = arith.constant 4.000000e+00 : f32
    %744 = vector.broadcast %cst_225 : f32 to vector<1x128xf32>
    %745 = arith.maximumf %744, %742 : vector<1x128xf32>
    %746 = vector.broadcast %cst_226 : f32 to vector<1x128xf32>
    %747 = arith.minimumf %746, %745 : vector<1x128xf32>
    %748 = arith.addf %747, %529 : vector<1x128xf32>
    %749 = vector.broadcast %741 : vector<1x128xf32> to vector<32x128xf32>
    %750 = vector.broadcast %527 : vector<32x1xf32> to vector<32x128xf32>
    %751 = arith.subf %749, %750 : vector<32x128xf32>
    %752 = math.absf %751 : vector<32x128xf32>
    %cst_227 = arith.constant 1.000000e+00 : f32
    %753 = vector.broadcast %cst_227 : f32 to vector<32x128xf32>
    %754 = arith.subf %753, %752 : vector<32x128xf32>
    %cst_228 = arith.constant 0.000000e+00 : f32
    %755 = vector.broadcast %cst_228 : f32 to vector<32x128xf32>
    %756 = arith.maximumf %754, %755 : vector<32x128xf32>
    %757 = vector.broadcast %748 : vector<1x128xf32> to vector<32x128xf32>
    %758 = vector.broadcast %526 : vector<32x1xf32> to vector<32x128xf32>
    %759 = arith.subf %757, %758 : vector<32x128xf32>
    %760 = math.absf %759 : vector<32x128xf32>
    %cst_229 = arith.constant 1.000000e+00 : f32
    %761 = vector.broadcast %cst_229 : f32 to vector<32x128xf32>
    %762 = arith.subf %761, %760 : vector<32x128xf32>
    %cst_230 = arith.constant 0.000000e+00 : f32
    %763 = vector.broadcast %cst_230 : f32 to vector<32x128xf32>
    %764 = arith.maximumf %762, %763 : vector<32x128xf32>
    %765 = arith.mulf %756, %764 : vector<32x128xf32>
    %cst_231 = arith.constant dense<0.000000e+00> : vector<4x128xf32>
    %766 = tpu.matmul %710, %765, %cst_231 {dimension_numbers = #tpu.dot_dimension_numbers<[1], [0], [0], [1], [0, 0, 1, 1], [], []>} : vector<4x32xf32>, vector<32x128xf32>, vector<4x128xf32> -> vector<4x128xf32>
    %767 = vector.broadcast %743 : vector<1x128xf32> to vector<4x128xf32>
    %768 = arith.mulf %767, %766 : vector<4x128xf32>
    %769 = arith.addf %740, %768 : vector<4x128xf32>
    %770 = vector.extract_strided_slice %525 {offsets = [16, 0], sizes = [4, 32], strides = [1, 1]} : vector<32x32xf32> to vector<4x32xf32>
    %cst_232 = arith.constant 0.000000e+00 : f32
    %771 = vector.broadcast %cst_232 : f32 to vector<4x128xf32>
    %772 = vector.extract_strided_slice %517 {offsets = [4, 0], sizes = [1, 128], strides = [1, 1]} : vector<32x128xf32> to vector<1x128xf32>
    %773 = vector.extract_strided_slice %517 {offsets = [20, 0], sizes = [1, 128], strides = [1, 1]} : vector<32x128xf32> to vector<1x128xf32>
    %774 = vector.extract_strided_slice %10 {offsets = [20, 0], sizes = [1, 128], strides = [1, 1]} : vector<32x128xf32> to vector<1x128xf32>
    %cst_233 = arith.constant -1.000000e+00 : f32
    %cst_234 = arith.constant 4.000000e+00 : f32
    %775 = vector.broadcast %cst_233 : f32 to vector<1x128xf32>
    %776 = arith.maximumf %775, %773 : vector<1x128xf32>
    %777 = vector.broadcast %cst_234 : f32 to vector<1x128xf32>
    %778 = arith.minimumf %777, %776 : vector<1x128xf32>
    %779 = arith.addf %778, %529 : vector<1x128xf32>
    %780 = vector.broadcast %772 : vector<1x128xf32> to vector<32x128xf32>
    %781 = vector.broadcast %527 : vector<32x1xf32> to vector<32x128xf32>
    %782 = arith.subf %780, %781 : vector<32x128xf32>
    %783 = math.absf %782 : vector<32x128xf32>
    %cst_235 = arith.constant 1.000000e+00 : f32
    %784 = vector.broadcast %cst_235 : f32 to vector<32x128xf32>
    %785 = arith.subf %784, %783 : vector<32x128xf32>
    %cst_236 = arith.constant 0.000000e+00 : f32
    %786 = vector.broadcast %cst_236 : f32 to vector<32x128xf32>
    %787 = arith.maximumf %785, %786 : vector<32x128xf32>
    %788 = vector.broadcast %779 : vector<1x128xf32> to vector<32x128xf32>
    %789 = vector.broadcast %526 : vector<32x1xf32> to vector<32x128xf32>
    %790 = arith.subf %788, %789 : vector<32x128xf32>
    %791 = math.absf %790 : vector<32x128xf32>
    %cst_237 = arith.constant 1.000000e+00 : f32
    %792 = vector.broadcast %cst_237 : f32 to vector<32x128xf32>
    %793 = arith.subf %792, %791 : vector<32x128xf32>
    %cst_238 = arith.constant 0.000000e+00 : f32
    %794 = vector.broadcast %cst_238 : f32 to vector<32x128xf32>
    %795 = arith.maximumf %793, %794 : vector<32x128xf32>
    %796 = arith.mulf %787, %795 : vector<32x128xf32>
    %cst_239 = arith.constant dense<0.000000e+00> : vector<4x128xf32>
    %797 = tpu.matmul %770, %796, %cst_239 {dimension_numbers = #tpu.dot_dimension_numbers<[1], [0], [0], [1], [0, 0, 1, 1], [], []>} : vector<4x32xf32>, vector<32x128xf32>, vector<4x128xf32> -> vector<4x128xf32>
    %798 = vector.broadcast %774 : vector<1x128xf32> to vector<4x128xf32>
    %799 = arith.mulf %798, %797 : vector<4x128xf32>
    %800 = arith.addf %771, %799 : vector<4x128xf32>
    %801 = vector.extract_strided_slice %517 {offsets = [12, 0], sizes = [1, 128], strides = [1, 1]} : vector<32x128xf32> to vector<1x128xf32>
    %802 = vector.extract_strided_slice %517 {offsets = [28, 0], sizes = [1, 128], strides = [1, 1]} : vector<32x128xf32> to vector<1x128xf32>
    %803 = vector.extract_strided_slice %10 {offsets = [28, 0], sizes = [1, 128], strides = [1, 1]} : vector<32x128xf32> to vector<1x128xf32>
    %cst_240 = arith.constant -1.000000e+00 : f32
    %cst_241 = arith.constant 4.000000e+00 : f32
    %804 = vector.broadcast %cst_240 : f32 to vector<1x128xf32>
    %805 = arith.maximumf %804, %802 : vector<1x128xf32>
    %806 = vector.broadcast %cst_241 : f32 to vector<1x128xf32>
    %807 = arith.minimumf %806, %805 : vector<1x128xf32>
    %808 = arith.addf %807, %529 : vector<1x128xf32>
    %809 = vector.broadcast %801 : vector<1x128xf32> to vector<32x128xf32>
    %810 = vector.broadcast %527 : vector<32x1xf32> to vector<32x128xf32>
    %811 = arith.subf %809, %810 : vector<32x128xf32>
    %812 = math.absf %811 : vector<32x128xf32>
    %cst_242 = arith.constant 1.000000e+00 : f32
    %813 = vector.broadcast %cst_242 : f32 to vector<32x128xf32>
    %814 = arith.subf %813, %812 : vector<32x128xf32>
    %cst_243 = arith.constant 0.000000e+00 : f32
    %815 = vector.broadcast %cst_243 : f32 to vector<32x128xf32>
    %816 = arith.maximumf %814, %815 : vector<32x128xf32>
    %817 = vector.broadcast %808 : vector<1x128xf32> to vector<32x128xf32>
    %818 = vector.broadcast %526 : vector<32x1xf32> to vector<32x128xf32>
    %819 = arith.subf %817, %818 : vector<32x128xf32>
    %820 = math.absf %819 : vector<32x128xf32>
    %cst_244 = arith.constant 1.000000e+00 : f32
    %821 = vector.broadcast %cst_244 : f32 to vector<32x128xf32>
    %822 = arith.subf %821, %820 : vector<32x128xf32>
    %cst_245 = arith.constant 0.000000e+00 : f32
    %823 = vector.broadcast %cst_245 : f32 to vector<32x128xf32>
    %824 = arith.maximumf %822, %823 : vector<32x128xf32>
    %825 = arith.mulf %816, %824 : vector<32x128xf32>
    %cst_246 = arith.constant dense<0.000000e+00> : vector<4x128xf32>
    %826 = tpu.matmul %770, %825, %cst_246 {dimension_numbers = #tpu.dot_dimension_numbers<[1], [0], [0], [1], [0, 0, 1, 1], [], []>} : vector<4x32xf32>, vector<32x128xf32>, vector<4x128xf32> -> vector<4x128xf32>
    %827 = vector.broadcast %803 : vector<1x128xf32> to vector<4x128xf32>
    %828 = arith.mulf %827, %826 : vector<4x128xf32>
    %829 = arith.addf %800, %828 : vector<4x128xf32>
    %830 = vector.extract_strided_slice %525 {offsets = [20, 0], sizes = [4, 32], strides = [1, 1]} : vector<32x32xf32> to vector<4x32xf32>
    %cst_247 = arith.constant 0.000000e+00 : f32
    %831 = vector.broadcast %cst_247 : f32 to vector<4x128xf32>
    %832 = vector.extract_strided_slice %517 {offsets = [5, 0], sizes = [1, 128], strides = [1, 1]} : vector<32x128xf32> to vector<1x128xf32>
    %833 = vector.extract_strided_slice %517 {offsets = [21, 0], sizes = [1, 128], strides = [1, 1]} : vector<32x128xf32> to vector<1x128xf32>
    %834 = vector.extract_strided_slice %10 {offsets = [21, 0], sizes = [1, 128], strides = [1, 1]} : vector<32x128xf32> to vector<1x128xf32>
    %cst_248 = arith.constant -1.000000e+00 : f32
    %cst_249 = arith.constant 4.000000e+00 : f32
    %835 = vector.broadcast %cst_248 : f32 to vector<1x128xf32>
    %836 = arith.maximumf %835, %833 : vector<1x128xf32>
    %837 = vector.broadcast %cst_249 : f32 to vector<1x128xf32>
    %838 = arith.minimumf %837, %836 : vector<1x128xf32>
    %839 = arith.addf %838, %529 : vector<1x128xf32>
    %840 = vector.broadcast %832 : vector<1x128xf32> to vector<32x128xf32>
    %841 = vector.broadcast %527 : vector<32x1xf32> to vector<32x128xf32>
    %842 = arith.subf %840, %841 : vector<32x128xf32>
    %843 = math.absf %842 : vector<32x128xf32>
    %cst_250 = arith.constant 1.000000e+00 : f32
    %844 = vector.broadcast %cst_250 : f32 to vector<32x128xf32>
    %845 = arith.subf %844, %843 : vector<32x128xf32>
    %cst_251 = arith.constant 0.000000e+00 : f32
    %846 = vector.broadcast %cst_251 : f32 to vector<32x128xf32>
    %847 = arith.maximumf %845, %846 : vector<32x128xf32>
    %848 = vector.broadcast %839 : vector<1x128xf32> to vector<32x128xf32>
    %849 = vector.broadcast %526 : vector<32x1xf32> to vector<32x128xf32>
    %850 = arith.subf %848, %849 : vector<32x128xf32>
    %851 = math.absf %850 : vector<32x128xf32>
    %cst_252 = arith.constant 1.000000e+00 : f32
    %852 = vector.broadcast %cst_252 : f32 to vector<32x128xf32>
    %853 = arith.subf %852, %851 : vector<32x128xf32>
    %cst_253 = arith.constant 0.000000e+00 : f32
    %854 = vector.broadcast %cst_253 : f32 to vector<32x128xf32>
    %855 = arith.maximumf %853, %854 : vector<32x128xf32>
    %856 = arith.mulf %847, %855 : vector<32x128xf32>
    %cst_254 = arith.constant dense<0.000000e+00> : vector<4x128xf32>
    %857 = tpu.matmul %830, %856, %cst_254 {dimension_numbers = #tpu.dot_dimension_numbers<[1], [0], [0], [1], [0, 0, 1, 1], [], []>} : vector<4x32xf32>, vector<32x128xf32>, vector<4x128xf32> -> vector<4x128xf32>
    %858 = vector.broadcast %834 : vector<1x128xf32> to vector<4x128xf32>
    %859 = arith.mulf %858, %857 : vector<4x128xf32>
    %860 = arith.addf %831, %859 : vector<4x128xf32>
    %861 = vector.extract_strided_slice %517 {offsets = [13, 0], sizes = [1, 128], strides = [1, 1]} : vector<32x128xf32> to vector<1x128xf32>
    %862 = vector.extract_strided_slice %517 {offsets = [29, 0], sizes = [1, 128], strides = [1, 1]} : vector<32x128xf32> to vector<1x128xf32>
    %863 = vector.extract_strided_slice %10 {offsets = [29, 0], sizes = [1, 128], strides = [1, 1]} : vector<32x128xf32> to vector<1x128xf32>
    %cst_255 = arith.constant -1.000000e+00 : f32
    %cst_256 = arith.constant 4.000000e+00 : f32
    %864 = vector.broadcast %cst_255 : f32 to vector<1x128xf32>
    %865 = arith.maximumf %864, %862 : vector<1x128xf32>
    %866 = vector.broadcast %cst_256 : f32 to vector<1x128xf32>
    %867 = arith.minimumf %866, %865 : vector<1x128xf32>
    %868 = arith.addf %867, %529 : vector<1x128xf32>
    %869 = vector.broadcast %861 : vector<1x128xf32> to vector<32x128xf32>
    %870 = vector.broadcast %527 : vector<32x1xf32> to vector<32x128xf32>
    %871 = arith.subf %869, %870 : vector<32x128xf32>
    %872 = math.absf %871 : vector<32x128xf32>
    %cst_257 = arith.constant 1.000000e+00 : f32
    %873 = vector.broadcast %cst_257 : f32 to vector<32x128xf32>
    %874 = arith.subf %873, %872 : vector<32x128xf32>
    %cst_258 = arith.constant 0.000000e+00 : f32
    %875 = vector.broadcast %cst_258 : f32 to vector<32x128xf32>
    %876 = arith.maximumf %874, %875 : vector<32x128xf32>
    %877 = vector.broadcast %868 : vector<1x128xf32> to vector<32x128xf32>
    %878 = vector.broadcast %526 : vector<32x1xf32> to vector<32x128xf32>
    %879 = arith.subf %877, %878 : vector<32x128xf32>
    %880 = math.absf %879 : vector<32x128xf32>
    %cst_259 = arith.constant 1.000000e+00 : f32
    %881 = vector.broadcast %cst_259 : f32 to vector<32x128xf32>
    %882 = arith.subf %881, %880 : vector<32x128xf32>
    %cst_260 = arith.constant 0.000000e+00 : f32
    %883 = vector.broadcast %cst_260 : f32 to vector<32x128xf32>
    %884 = arith.maximumf %882, %883 : vector<32x128xf32>
    %885 = arith.mulf %876, %884 : vector<32x128xf32>
    %cst_261 = arith.constant dense<0.000000e+00> : vector<4x128xf32>
    %886 = tpu.matmul %830, %885, %cst_261 {dimension_numbers = #tpu.dot_dimension_numbers<[1], [0], [0], [1], [0, 0, 1, 1], [], []>} : vector<4x32xf32>, vector<32x128xf32>, vector<4x128xf32> -> vector<4x128xf32>
    %887 = vector.broadcast %863 : vector<1x128xf32> to vector<4x128xf32>
    %888 = arith.mulf %887, %886 : vector<4x128xf32>
    %889 = arith.addf %860, %888 : vector<4x128xf32>
    %890 = vector.extract_strided_slice %525 {offsets = [24, 0], sizes = [4, 32], strides = [1, 1]} : vector<32x32xf32> to vector<4x32xf32>
    %cst_262 = arith.constant 0.000000e+00 : f32
    %891 = vector.broadcast %cst_262 : f32 to vector<4x128xf32>
    %892 = vector.extract_strided_slice %517 {offsets = [6, 0], sizes = [1, 128], strides = [1, 1]} : vector<32x128xf32> to vector<1x128xf32>
    %893 = vector.extract_strided_slice %517 {offsets = [22, 0], sizes = [1, 128], strides = [1, 1]} : vector<32x128xf32> to vector<1x128xf32>
    %894 = vector.extract_strided_slice %10 {offsets = [22, 0], sizes = [1, 128], strides = [1, 1]} : vector<32x128xf32> to vector<1x128xf32>
    %cst_263 = arith.constant -1.000000e+00 : f32
    %cst_264 = arith.constant 4.000000e+00 : f32
    %895 = vector.broadcast %cst_263 : f32 to vector<1x128xf32>
    %896 = arith.maximumf %895, %893 : vector<1x128xf32>
    %897 = vector.broadcast %cst_264 : f32 to vector<1x128xf32>
    %898 = arith.minimumf %897, %896 : vector<1x128xf32>
    %899 = arith.addf %898, %529 : vector<1x128xf32>
    %900 = vector.broadcast %892 : vector<1x128xf32> to vector<32x128xf32>
    %901 = vector.broadcast %527 : vector<32x1xf32> to vector<32x128xf32>
    %902 = arith.subf %900, %901 : vector<32x128xf32>
    %903 = math.absf %902 : vector<32x128xf32>
    %cst_265 = arith.constant 1.000000e+00 : f32
    %904 = vector.broadcast %cst_265 : f32 to vector<32x128xf32>
    %905 = arith.subf %904, %903 : vector<32x128xf32>
    %cst_266 = arith.constant 0.000000e+00 : f32
    %906 = vector.broadcast %cst_266 : f32 to vector<32x128xf32>
    %907 = arith.maximumf %905, %906 : vector<32x128xf32>
    %908 = vector.broadcast %899 : vector<1x128xf32> to vector<32x128xf32>
    %909 = vector.broadcast %526 : vector<32x1xf32> to vector<32x128xf32>
    %910 = arith.subf %908, %909 : vector<32x128xf32>
    %911 = math.absf %910 : vector<32x128xf32>
    %cst_267 = arith.constant 1.000000e+00 : f32
    %912 = vector.broadcast %cst_267 : f32 to vector<32x128xf32>
    %913 = arith.subf %912, %911 : vector<32x128xf32>
    %cst_268 = arith.constant 0.000000e+00 : f32
    %914 = vector.broadcast %cst_268 : f32 to vector<32x128xf32>
    %915 = arith.maximumf %913, %914 : vector<32x128xf32>
    %916 = arith.mulf %907, %915 : vector<32x128xf32>
    %cst_269 = arith.constant dense<0.000000e+00> : vector<4x128xf32>
    %917 = tpu.matmul %890, %916, %cst_269 {dimension_numbers = #tpu.dot_dimension_numbers<[1], [0], [0], [1], [0, 0, 1, 1], [], []>} : vector<4x32xf32>, vector<32x128xf32>, vector<4x128xf32> -> vector<4x128xf32>
    %918 = vector.broadcast %894 : vector<1x128xf32> to vector<4x128xf32>
    %919 = arith.mulf %918, %917 : vector<4x128xf32>
    %920 = arith.addf %891, %919 : vector<4x128xf32>
    %921 = vector.extract_strided_slice %517 {offsets = [14, 0], sizes = [1, 128], strides = [1, 1]} : vector<32x128xf32> to vector<1x128xf32>
    %922 = vector.extract_strided_slice %517 {offsets = [30, 0], sizes = [1, 128], strides = [1, 1]} : vector<32x128xf32> to vector<1x128xf32>
    %923 = vector.extract_strided_slice %10 {offsets = [30, 0], sizes = [1, 128], strides = [1, 1]} : vector<32x128xf32> to vector<1x128xf32>
    %cst_270 = arith.constant -1.000000e+00 : f32
    %cst_271 = arith.constant 4.000000e+00 : f32
    %924 = vector.broadcast %cst_270 : f32 to vector<1x128xf32>
    %925 = arith.maximumf %924, %922 : vector<1x128xf32>
    %926 = vector.broadcast %cst_271 : f32 to vector<1x128xf32>
    %927 = arith.minimumf %926, %925 : vector<1x128xf32>
    %928 = arith.addf %927, %529 : vector<1x128xf32>
    %929 = vector.broadcast %921 : vector<1x128xf32> to vector<32x128xf32>
    %930 = vector.broadcast %527 : vector<32x1xf32> to vector<32x128xf32>
    %931 = arith.subf %929, %930 : vector<32x128xf32>
    %932 = math.absf %931 : vector<32x128xf32>
    %cst_272 = arith.constant 1.000000e+00 : f32
    %933 = vector.broadcast %cst_272 : f32 to vector<32x128xf32>
    %934 = arith.subf %933, %932 : vector<32x128xf32>
    %cst_273 = arith.constant 0.000000e+00 : f32
    %935 = vector.broadcast %cst_273 : f32 to vector<32x128xf32>
    %936 = arith.maximumf %934, %935 : vector<32x128xf32>
    %937 = vector.broadcast %928 : vector<1x128xf32> to vector<32x128xf32>
    %938 = vector.broadcast %526 : vector<32x1xf32> to vector<32x128xf32>
    %939 = arith.subf %937, %938 : vector<32x128xf32>
    %940 = math.absf %939 : vector<32x128xf32>
    %cst_274 = arith.constant 1.000000e+00 : f32
    %941 = vector.broadcast %cst_274 : f32 to vector<32x128xf32>
    %942 = arith.subf %941, %940 : vector<32x128xf32>
    %cst_275 = arith.constant 0.000000e+00 : f32
    %943 = vector.broadcast %cst_275 : f32 to vector<32x128xf32>
    %944 = arith.maximumf %942, %943 : vector<32x128xf32>
    %945 = arith.mulf %936, %944 : vector<32x128xf32>
    %cst_276 = arith.constant dense<0.000000e+00> : vector<4x128xf32>
    %946 = tpu.matmul %890, %945, %cst_276 {dimension_numbers = #tpu.dot_dimension_numbers<[1], [0], [0], [1], [0, 0, 1, 1], [], []>} : vector<4x32xf32>, vector<32x128xf32>, vector<4x128xf32> -> vector<4x128xf32>
    %947 = vector.broadcast %923 : vector<1x128xf32> to vector<4x128xf32>
    %948 = arith.mulf %947, %946 : vector<4x128xf32>
    %949 = arith.addf %920, %948 : vector<4x128xf32>
    %950 = vector.extract_strided_slice %525 {offsets = [28, 0], sizes = [4, 32], strides = [1, 1]} : vector<32x32xf32> to vector<4x32xf32>
    %cst_277 = arith.constant 0.000000e+00 : f32
    %951 = vector.broadcast %cst_277 : f32 to vector<4x128xf32>
    %952 = vector.extract_strided_slice %517 {offsets = [7, 0], sizes = [1, 128], strides = [1, 1]} : vector<32x128xf32> to vector<1x128xf32>
    %953 = vector.extract_strided_slice %517 {offsets = [23, 0], sizes = [1, 128], strides = [1, 1]} : vector<32x128xf32> to vector<1x128xf32>
    %954 = vector.extract_strided_slice %10 {offsets = [23, 0], sizes = [1, 128], strides = [1, 1]} : vector<32x128xf32> to vector<1x128xf32>
    %cst_278 = arith.constant -1.000000e+00 : f32
    %cst_279 = arith.constant 4.000000e+00 : f32
    %955 = vector.broadcast %cst_278 : f32 to vector<1x128xf32>
    %956 = arith.maximumf %955, %953 : vector<1x128xf32>
    %957 = vector.broadcast %cst_279 : f32 to vector<1x128xf32>
    %958 = arith.minimumf %957, %956 : vector<1x128xf32>
    %959 = arith.addf %958, %529 : vector<1x128xf32>
    %960 = vector.broadcast %952 : vector<1x128xf32> to vector<32x128xf32>
    %961 = vector.broadcast %527 : vector<32x1xf32> to vector<32x128xf32>
    %962 = arith.subf %960, %961 : vector<32x128xf32>
    %963 = math.absf %962 : vector<32x128xf32>
    %cst_280 = arith.constant 1.000000e+00 : f32
    %964 = vector.broadcast %cst_280 : f32 to vector<32x128xf32>
    %965 = arith.subf %964, %963 : vector<32x128xf32>
    %cst_281 = arith.constant 0.000000e+00 : f32
    %966 = vector.broadcast %cst_281 : f32 to vector<32x128xf32>
    %967 = arith.maximumf %965, %966 : vector<32x128xf32>
    %968 = vector.broadcast %959 : vector<1x128xf32> to vector<32x128xf32>
    %969 = vector.broadcast %526 : vector<32x1xf32> to vector<32x128xf32>
    %970 = arith.subf %968, %969 : vector<32x128xf32>
    %971 = math.absf %970 : vector<32x128xf32>
    %cst_282 = arith.constant 1.000000e+00 : f32
    %972 = vector.broadcast %cst_282 : f32 to vector<32x128xf32>
    %973 = arith.subf %972, %971 : vector<32x128xf32>
    %cst_283 = arith.constant 0.000000e+00 : f32
    %974 = vector.broadcast %cst_283 : f32 to vector<32x128xf32>
    %975 = arith.maximumf %973, %974 : vector<32x128xf32>
    %976 = arith.mulf %967, %975 : vector<32x128xf32>
    %cst_284 = arith.constant dense<0.000000e+00> : vector<4x128xf32>
    %977 = tpu.matmul %950, %976, %cst_284 {dimension_numbers = #tpu.dot_dimension_numbers<[1], [0], [0], [1], [0, 0, 1, 1], [], []>} : vector<4x32xf32>, vector<32x128xf32>, vector<4x128xf32> -> vector<4x128xf32>
    %978 = vector.broadcast %954 : vector<1x128xf32> to vector<4x128xf32>
    %979 = arith.mulf %978, %977 : vector<4x128xf32>
    %980 = arith.addf %951, %979 : vector<4x128xf32>
    %981 = vector.extract_strided_slice %517 {offsets = [15, 0], sizes = [1, 128], strides = [1, 1]} : vector<32x128xf32> to vector<1x128xf32>
    %982 = vector.extract_strided_slice %517 {offsets = [31, 0], sizes = [1, 128], strides = [1, 1]} : vector<32x128xf32> to vector<1x128xf32>
    %983 = vector.extract_strided_slice %10 {offsets = [31, 0], sizes = [1, 128], strides = [1, 1]} : vector<32x128xf32> to vector<1x128xf32>
    %cst_285 = arith.constant -1.000000e+00 : f32
    %cst_286 = arith.constant 4.000000e+00 : f32
    %984 = vector.broadcast %cst_285 : f32 to vector<1x128xf32>
    %985 = arith.maximumf %984, %982 : vector<1x128xf32>
    %986 = vector.broadcast %cst_286 : f32 to vector<1x128xf32>
    %987 = arith.minimumf %986, %985 : vector<1x128xf32>
    %988 = arith.addf %987, %529 : vector<1x128xf32>
    %989 = vector.broadcast %981 : vector<1x128xf32> to vector<32x128xf32>
    %990 = vector.broadcast %527 : vector<32x1xf32> to vector<32x128xf32>
    %991 = arith.subf %989, %990 : vector<32x128xf32>
    %992 = math.absf %991 : vector<32x128xf32>
    %cst_287 = arith.constant 1.000000e+00 : f32
    %993 = vector.broadcast %cst_287 : f32 to vector<32x128xf32>
    %994 = arith.subf %993, %992 : vector<32x128xf32>
    %cst_288 = arith.constant 0.000000e+00 : f32
    %995 = vector.broadcast %cst_288 : f32 to vector<32x128xf32>
    %996 = arith.maximumf %994, %995 : vector<32x128xf32>
    %997 = vector.broadcast %988 : vector<1x128xf32> to vector<32x128xf32>
    %998 = vector.broadcast %526 : vector<32x1xf32> to vector<32x128xf32>
    %999 = arith.subf %997, %998 : vector<32x128xf32>
    %1000 = math.absf %999 : vector<32x128xf32>
    %cst_289 = arith.constant 1.000000e+00 : f32
    %1001 = vector.broadcast %cst_289 : f32 to vector<32x128xf32>
    %1002 = arith.subf %1001, %1000 : vector<32x128xf32>
    %cst_290 = arith.constant 0.000000e+00 : f32
    %1003 = vector.broadcast %cst_290 : f32 to vector<32x128xf32>
    %1004 = arith.maximumf %1002, %1003 : vector<32x128xf32>
    %1005 = arith.mulf %996, %1004 : vector<32x128xf32>
    %cst_291 = arith.constant dense<0.000000e+00> : vector<4x128xf32>
    %1006 = tpu.matmul %950, %1005, %cst_291 {dimension_numbers = #tpu.dot_dimension_numbers<[1], [0], [0], [1], [0, 0, 1, 1], [], []>} : vector<4x32xf32>, vector<32x128xf32>, vector<4x128xf32> -> vector<4x128xf32>
    %1007 = vector.broadcast %983 : vector<1x128xf32> to vector<4x128xf32>
    %1008 = arith.mulf %1007, %1006 : vector<4x128xf32>
    %1009 = arith.addf %980, %1008 : vector<4x128xf32>
    %1010 = tpu.concatenate %589, %649, %709, %769, %829, %889, %949, %1009 in 0 : vector<4x128xf32>, vector<4x128xf32>, vector<4x128xf32>, vector<4x128xf32>, vector<4x128xf32>, vector<4x128xf32>, vector<4x128xf32>, vector<4x128xf32> -> vector<32x128xf32>
    %1011 = arith.addf %511, %1010 : vector<32x128xf32>
    %c0_292 = arith.constant 0 : index
    %c0_293 = arith.constant 0 : index
    %1012 = vector.load %arg10[%c0_292, %c0_293] : memref<32x32xf32, #tpu.memory_space<vmem>>, vector<32x32xf32>
    %cst_294 = arith.constant dense<0.000000e+00> : vector<32x128xf32>
    %1013 = tpu.matmul %1012, %1011, %cst_294 {dimension_numbers = #tpu.dot_dimension_numbers<[1], [0], [0], [1], [0, 0, 1, 1], [], []>} : vector<32x32xf32>, vector<32x128xf32>, vector<32x128xf32> -> vector<32x128xf32>
    %c0_295 = arith.constant 0 : index
    %c0_296 = arith.constant 0 : index
    %1014 = vector.load %arg11[%c0_295, %c0_296] : memref<32x1xf32, #tpu.memory_space<vmem>>, vector<32x1xf32>
    %1015 = vector.broadcast %1014 : vector<32x1xf32> to vector<32x128xf32>
    %1016 = arith.addf %1013, %1015 : vector<32x128xf32>
    %c0_297 = arith.constant 0 : index
    %c0_298 = arith.constant 0 : index
    %1017 = vector.load %arg17[%c0_297, %c0_298] : memref<32x128xf32, #tpu.memory_space<vmem>>, vector<32x128xf32>
    tpu.vector_store %arg17[%c0_297, %c0_298], %1016 {strides = array<i32>} : memref<32x128xf32, #tpu.memory_space<vmem>>, vector<32x128xf32>,
    return
  }
  func.func @transform_0(%arg0: i32) -> (i32, i32) {
    %c0_i32 = arith.constant 0 : i32
    %c0_i32_0 = arith.constant 0 : i32
    %c0_i32_1 = arith.constant 0 : i32
    return %c0_i32, %c0_i32_0 : i32, i32
  }
  func.func @transform_1(%arg0: i32) -> (i32, i32, i32) {
    %c0_i32 = arith.constant 0 : i32
    %c0_i32_0 = arith.constant 0 : i32
    %c0_i32_1 = arith.constant 0 : i32
    %c0_i32_2 = arith.constant 0 : i32
    return %c0_i32, %c0_i32_0, %c0_i32_1 : i32, i32, i32
  }
  func.func @transform_2(%arg0: i32) -> (i32, i32) {
    %c0_i32 = arith.constant 0 : i32
    %c0_i32_0 = arith.constant 0 : i32
    %c0_i32_1 = arith.constant 0 : i32
    return %c0_i32, %c0_i32_0 : i32, i32
  }
  func.func @transform_3(%arg0: i32) -> (i32, i32) {
    %c0_i32 = arith.constant 0 : i32
    %c0_i32_0 = arith.constant 0 : i32
    %c0_i32_1 = arith.constant 0 : i32
    return %c0_i32, %c0_i32_0 : i32, i32
  }
  func.func @transform_4(%arg0: i32) -> (i32, i32, i32) {
    %c0_i32 = arith.constant 0 : i32
    %c0_i32_0 = arith.constant 0 : i32
    %c0_i32_1 = arith.constant 0 : i32
    %c0_i32_2 = arith.constant 0 : i32
    return %c0_i32, %c0_i32_0, %c0_i32_1 : i32, i32, i32
  }
  func.func @transform_5(%arg0: i32) -> (i32, i32, i32) {
    %c0_i32 = arith.constant 0 : i32
    %c0_i32_0 = arith.constant 0 : i32
    %c0_i32_1 = arith.constant 0 : i32
    %c0_i32_2 = arith.constant 0 : i32
    return %c0_i32, %c0_i32_0, %c0_i32_1 : i32, i32, i32
  }
  func.func @transform_6(%arg0: i32) -> (i32, i32, i32) {
    %c0_i32 = arith.constant 0 : i32
    %c0_i32_0 = arith.constant 0 : i32
    %c0_i32_1 = arith.constant 0 : i32
    %c0_i32_2 = arith.constant 0 : i32
    return %c0_i32, %c0_i32_0, %c0_i32_1 : i32, i32, i32
  }
  func.func @transform_7(%arg0: i32) -> (i32, i32) {
    %c0_i32 = arith.constant 0 : i32
    %c0_i32_0 = arith.constant 0 : i32
    %c0_i32_1 = arith.constant 0 : i32
    return %c0_i32, %c0_i32_0 : i32, i32
  }
  func.func @transform_8(%arg0: i32) -> (i32, i32) {
    %c0_i32 = arith.constant 0 : i32
    %c0_i32_0 = arith.constant 0 : i32
    %c0_i32_1 = arith.constant 0 : i32
    return %c0_i32, %c0_i32_0 : i32, i32
  }
  func.func @transform_9(%arg0: i32) -> (i32, i32) {
    %c0_i32 = arith.constant 0 : i32
    %c0_i32_0 = arith.constant 0 : i32
    %c0_i32_1 = arith.constant 0 : i32
    return %c0_i32, %c0_i32_0 : i32, i32
  }
  func.func @transform_10(%arg0: i32) -> (i32, i32) {
    %c0_i32 = arith.constant 0 : i32
    %c0_i32_0 = arith.constant 0 : i32
    %c0_i32_1 = arith.constant 0 : i32
    return %c0_i32, %c0_i32_0 : i32, i32
  }
  func.func @transform_11(%arg0: i32) -> (i32, i32) {
    %c0_i32 = arith.constant 0 : i32
    %c0_i32_0 = arith.constant 0 : i32
    %c0_i32_1 = arith.constant 0 : i32
    return %c0_i32, %c0_i32_0 : i32, i32
  }
  func.func @transform_12(%arg0: i32) -> (i32, i32) {
    %c0_i32 = arith.constant 0 : i32
    %c0_i32_0 = arith.constant 0 : i32
    %c0_i32_1 = arith.constant 0 : i32
    return %c0_i32, %c0_i32_0 : i32, i32
  }
  func.func @transform_13(%arg0: i32) -> (i32, i32) {
    %c0_i32 = arith.constant 0 : i32
    %c0_i32_0 = arith.constant 0 : i32
    %c0_i32_1 = arith.constant 0 : i32
    return %c0_i32, %c0_i32_0 : i32, i32
  }
  func.func @transform_14(%arg0: i32) -> (i32, i32) {
    %c0_i32 = arith.constant 0 : i32
    %c0_i32_0 = arith.constant 0 : i32
    %c0_i32_1 = arith.constant 0 : i32
    return %c0_i32, %c0_i32_0 : i32, i32
  }
  func.func @transform_15(%arg0: i32) -> (i32, i32, i32) {
    %c0_i32 = arith.constant 0 : i32
    %c0_i32_0 = arith.constant 0 : i32
    %c0_i32_1 = arith.constant 0 : i32
    %c0_i32_2 = arith.constant 0 : i32
    return %c0_i32, %c0_i32_0, %c0_i32_1 : i32, i32, i32
  }
  func.func @transform_16(%arg0: i32) -> (i32, i32) {
    %c0_i32 = arith.constant 0 : i32
    %c0_i32_0 = arith.constant 0 : i32
    %c0_i32_1 = arith.constant 0 : i32
    return %c0_i32, %c0_i32_0 : i32, i32
  }
}

</mosaic_0001>

<llo_original>
// kernel: tpu_custom_call.1
$region0: #{tpu_custom_call.1}
  #allocation0 [shape = 'u32[]', space=smem, size = 0x4, offset = 0x4, fixed_abs, tag = 'smem constant byte address 0x4 - core index']
  #allocation1 [shape = 'u32[72,128]{1,0:T(1,128)}', space=vmem, size = 0x9000, scoped, tag = 'internal scratch']
  %s0 = inlined_call_operand.vmem [shape: f32[32,128], index: 0, kind: input, shape index: {}]
  %s1 = inlined_call_operand.vmem [shape: f32[2,32,128], index: 1, kind: input, shape index: {}]
  %s2 = inlined_call_operand.vmem [shape: f32[32,128], index: 2, kind: input, shape index: {}]
  %s3 = inlined_call_operand.vmem [shape: f32[32,32], index: 3, kind: input, shape index: {}]
  %s4 = inlined_call_operand.vmem [shape: f32[2,32,32], index: 4, kind: input, shape index: {}]
  %s5 = inlined_call_operand.vmem [shape: f32[2,32,32], index: 5, kind: input, shape index: {}]
  %s6 = inlined_call_operand.vmem [shape: f32[2,32,1], index: 6, kind: input, shape index: {}]
  %s7 = inlined_call_operand.vmem [shape: f32[32,32], index: 7, kind: input, shape index: {}]
  %s8 = inlined_call_operand.vmem [shape: f32[32,1], index: 8, kind: input, shape index: {}]
  %s9 = inlined_call_operand.vmem [shape: f32[32,32], index: 9, kind: input, shape index: {}]
  %s10 = inlined_call_operand.vmem [shape: f32[32,1], index: 10, kind: input, shape index: {}]
  %s11 = inlined_call_operand.vmem [shape: f32[128,1], index: 11, kind: input, shape index: {}]
  %s12 = inlined_call_operand.vmem [shape: f32[128,1], index: 12, kind: input, shape index: {}]
  %s13 = inlined_call_operand.vmem [shape: f32[32,1], index: 13, kind: input, shape index: {}]
  %s14 = inlined_call_operand.vmem [shape: f32[32,1], index: 14, kind: input, shape index: {}]
  %s15 = inlined_call_operand.vmem [shape: f32[2,1,128], index: 15, kind: input, shape index: {}]
  %s16 = inlined_call_operand.hbm [shape: f32[32,128], index: 16, kind: output, shape index: {}]
  %s17 = sld [smem:[#allocation0]]
  $region74: #{tpu_custom_call.1} parent=0
    _
  %s19 = ssub.s32 1, %s17
  %s20 = scalar_select 0, %s19, %s17
  $region1: #{tpu_custom_call.1} parent=0
    #allocation2 [shape = 'u8[16384]{0}', space=vmem, size = 0x4000, scoped, tag = 'output window, operand 0, single buffered']
    #allocation3 [shape = 's32[1]{0}', space=sflag, size = 0x4, scoped, tag = 'scoped memory for tpu_custom_call.1']
    %21 = vsyncpa [#allocation3], 0
    // Predicated region
    $region2: #{tpu_custom_call.1} parent=1 // pred_check
      _
    $region3: #{tpu_custom_call.1} parent=1 // pred_check_branch
      %23 = sbr.rel (0) target = $region5
    $region4: #{tpu_custom_call.1} parent=1 // pred_region
      _
    $region5: #{tpu_custom_call.1} parent=1 // pred_fallthru
      _
    // Predicated region
    $region6: #{tpu_custom_call.1} parent=1 // pred_check
      _
    $region7: #{tpu_custom_call.1} parent=1 // pred_check_branch
      %25 = sbr.rel (0) target = $region9
    $region8: #{tpu_custom_call.1} parent=1 // pred_region
      _
    $region9: #{tpu_custom_call.1} parent=1 // pred_fallthru
      _
    // Predicated region
    $region10: #{tpu_custom_call.1} parent=1 // pred_check
      _
    $region11: #{tpu_custom_call.1} parent=1 // pred_check_branch
      %27 = sbr.rel (0) target = $region13
    $region12: #{tpu_custom_call.1} parent=1 // pred_region
      _
    $region13: #{tpu_custom_call.1} parent=1 // pred_fallthru
      _
    // Predicated region
    $region14: #{tpu_custom_call.1} parent=1 // pred_check
      _
    $region15: #{tpu_custom_call.1} parent=1 // pred_check_branch
      %29 = sbr.rel (0) target = $region17
    $region16: #{tpu_custom_call.1} parent=1 // pred_region
      _
    $region17: #{tpu_custom_call.1} parent=1 // pred_fallthru
      _
    // Predicated region
    $region18: #{tpu_custom_call.1} parent=1 // pred_check
      _
    $region19: #{tpu_custom_call.1} parent=1 // pred_check_branch
      %31 = sbr.rel (0) target = $region21
    $region20: #{tpu_custom_call.1} parent=1 // pred_region
      _
    $region21: #{tpu_custom_call.1} parent=1 // pred_fallthru
      _
    // Predicated region
    $region22: #{tpu_custom_call.1} parent=1 // pred_check
      _
    $region23: #{tpu_custom_call.1} parent=1 // pred_check_branch
      %33 = sbr.rel (0) target = $region25
    $region24: #{tpu_custom_call.1} parent=1 // pred_region
      _
    $region25: #{tpu_custom_call.1} parent=1 // pred_fallthru
      _
    // Predicated region
    $region26: #{tpu_custom_call.1} parent=1 // pred_check
      _
    $region27: #{tpu_custom_call.1} parent=1 // pred_check_branch
      %35 = sbr.rel (0) target = $region29
    $region28: #{tpu_custom_call.1} parent=1 // pred_region
      _
    $region29: #{tpu_custom_call.1} parent=1 // pred_fallthru
      _
    // Predicated region
    $region30: #{tpu_custom_call.1} parent=1 // pred_check
      _
    $region31: #{tpu_custom_call.1} parent=1 // pred_check_branch
      %37 = sbr.rel (0) target = $region33
    $region32: #{tpu_custom_call.1} parent=1 // pred_region
      _
    $region33: #{tpu_custom_call.1} parent=1 // pred_fallthru
      _
    // Predicated region
    $region34: #{tpu_custom_call.1} parent=1 // pred_check
      _
    $region35: #{tpu_custom_call.1} parent=1 // pred_check_branch
      %39 = sbr.rel (0) target = $region37
    $region36: #{tpu_custom_call.1} parent=1 // pred_region
      _
    $region37: #{tpu_custom_call.1} parent=1 // pred_fallthru
      _
    // Predicated region
    $region38: #{tpu_custom_call.1} parent=1 // pred_check
      _
    $region39: #{tpu_custom_call.1} parent=1 // pred_check_branch
      %41 = sbr.rel (0) target = $region41
    $region40: #{tpu_custom_call.1} parent=1 // pred_region
      _
    $region41: #{tpu_custom_call.1} parent=1 // pred_fallthru
      _
    // Predicated region
    $region42: #{tpu_custom_call.1} parent=1 // pred_check
      _
    $region43: #{tpu_custom_call.1} parent=1 // pred_check_branch
      %43 = sbr.rel (0) target = $region45
    $region44: #{tpu_custom_call.1} parent=1 // pred_region
      _
    $region45: #{tpu_custom_call.1} parent=1 // pred_fallthru
      _
    // Predicated region
    $region46: #{tpu_custom_call.1} parent=1 // pred_check
      _
    $region47: #{tpu_custom_call.1} parent=1 // pred_check_branch
      %45 = sbr.rel (0) target = $region49
    $region48: #{tpu_custom_call.1} parent=1 // pred_region
      _
    $region49: #{tpu_custom_call.1} parent=1 // pred_fallthru
      _
    // Predicated region
    $region50: #{tpu_custom_call.1} parent=1 // pred_check
      _
    $region51: #{tpu_custom_call.1} parent=1 // pred_check_branch
      %47 = sbr.rel (0) target = $region53
    $region52: #{tpu_custom_call.1} parent=1 // pred_region
      _
    $region53: #{tpu_custom_call.1} parent=1 // pred_fallthru
      _
    // Predicated region
    $region54: #{tpu_custom_call.1} parent=1 // pred_check
      _
    $region55: #{tpu_custom_call.1} parent=1 // pred_check_branch
      %49 = sbr.rel (0) target = $region57
    $region56: #{tpu_custom_call.1} parent=1 // pred_region
      _
    $region57: #{tpu_custom_call.1} parent=1 // pred_fallthru
      _
    // Predicated region
    $region58: #{tpu_custom_call.1} parent=1 // pred_check
      _
    $region59: #{tpu_custom_call.1} parent=1 // pred_check_branch
      %51 = sbr.rel (0) target = $region61
    $region60: #{tpu_custom_call.1} parent=1 // pred_region
      _
    $region61: #{tpu_custom_call.1} parent=1 // pred_fallthru
      _
    // Predicated region
    $region62: #{tpu_custom_call.1} parent=1 // pred_check
      _
    $region63: #{tpu_custom_call.1} parent=1 // pred_check_branch
      %53 = sbr.rel (0) target = $region65
    $region64: #{tpu_custom_call.1} parent=1 // pred_region
      _
    $region65: #{tpu_custom_call.1} parent=1 // pred_fallthru
      _
    %v54 = vld [vmem:[%s0] sm:$0xff]
    %v55 = vld [vmem:[%s0 + $0x8] sm:$0xff]
    %v56 = vld [vmem:[%s0 + $0x10] sm:$0xff]
    %v57 = vld [vmem:[%s0 + $0x18] sm:$0xff]
    %v58 = vld [vmem:[%s7] sm:$0xff]
    %v59 = vld [vmem:[%s7 + $0x8] sm:$0xff]
    %v60 = vld [vmem:[%s7 + $0x10] sm:$0xff]
    %v61 = vld [vmem:[%s7 + $0x18] sm:$0xff]
    %v62 = vld [vmem:[%s8] sm:$0xff]
    %v63 = vld [vmem:[%s8 + $0x8] sm:$0xff]
    %v64 = vld [vmem:[%s8 + $0x10] sm:$0xff]
    %v65 = vld [vmem:[%s8 + $0x18] sm:$0xff]
    %67 = vset.pattern.permute.xlu0 0
    %68 = vperm.xlu0 %67, %v62
    %v69 = vpop.permute.xlu0 %68
    %72 = vset.pattern.permute.xlu0 0
    %73 = vperm.xlu0 %72, %v63
    %v74 = vpop.permute.xlu0 %73
    %77 = vset.pattern.permute.xlu0 0
    %78 = vperm.xlu0 %77, %v64
    %v79 = vpop.permute.xlu0 %78
    %82 = vset.pattern.permute.xlu0 0
    %83 = vperm.xlu0 %82, %v65
    %v84 = vpop.permute.xlu0 %83
    %vm86 = vcmask 261120
    %v88 = vsel %vm86, %v58, 0
    %v91 = vsel %vm86, %v59, 0
    %v94 = vsel %vm86, %v60, 0
    %v97 = vsel %vm86, %v61, 0
    %99 = vmatpush.msra.mxu0 0.0
    %100 = vmatpush.msra.mxu0 0.0
    %101 = vmatpush.msra.mxu0 0.0
    %102 = vmatpush.msra.mxu0 0.0
    %103 = vmatpush.msra.mxu0 0.0
    %104 = vmatpush.msra.mxu0 0.0
    %105 = vmatpush.msra.mxu0 0.0
    %106 = vmatpush.msra.mxu0 0.0
    %107 = vmatpush.msra.mxu0 0.0
    %108 = vmatpush.msra.mxu0 0.0
    %109 = vmatpush.msra.mxu0 0.0
    %110 = vmatpush.msra.mxu0 0.0
    %111 = vmatpush.msra.mxu0 %v57
    %112 = vmatpush.msra.mxu0 %v56
    %113 = vmatpush.msra.mxu0 %v55
    %114 = vmatpush.msra.mxu0 %v54
    %115 = vmatmul.f32.gmra.mxu0 %v88
    %v116 = vpop.f32.mrf.mxu0
    %v117 = vadd.f32 %v69, %v116
    %118 = vmatmul.f32.gmra.mxu0 %v91
    %v119 = vpop.f32.mrf.mxu0
    %v120 = vadd.f32 %v74, %v119
    %121 = vmatmul.f32.gmra.mxu0 %v94
    %v122 = vpop.f32.mrf.mxu0
    %v123 = vadd.f32 %v79, %v122
    %124 = vmatmul.f32.gmra.mxu0 %v97
    %v125 = vpop.f32.mrf.mxu0
    %v126 = vadd.f32 %v84, %v125
    %127 = vdwg.mxu0
    %v128 = vxor.u32 %v117, 2147483648
    %v129 = vxor.u32 %v120, 2147483648
    %v130 = vxor.u32 %v123, 2147483648
    %v131 = vxor.u32 %v126, 2147483648
    %v132 = vmul.f32 %v128, 1.442695
    %v133 = vpow.pop %v132
    %v134 = vmul.f32 %v129, 1.442695
    %v135 = vpow.pop %v134
    %v136 = vmul.f32 %v130, 1.442695
    %v137 = vpow.pop %v136
    %v138 = vmul.f32 %v131, 1.442695
    %v139 = vpow.pop %v138
    %v140 = vadd.f32 %v133, 1.0
    %v141 = vadd.f32 %v135, 1.0
    %v142 = vadd.f32 %v137, 1.0
    %v143 = vadd.f32 %v139, 1.0
    %v144 = vrcp.pop %v140
    %v145 = vmul.f32 %v140, %v144
    %v146 = vsub.f32 1.0, %v145
    %v147 = vmul.f32 %v144, %v146
    %v148 = vadd.f32 %v144, %v147
    %vm149 = vweird.f32 %v140
    %vm150 = vweird.f32 %v144
    %vm151 = vmor %vm149, %vm150
    %v152 = vsel %vm151, %v144, %v148
    %v153 = vand.u32 2147483647, %v140
    %vm154 = vcmp.eq.f32.partialorder %v153, 8.507059e+37
    %v155 = vand.u32 %v140, 2147483648
    %v156 = vor.u32 1.1754944e-38, %v155
    %v157 = vsel %vm154, %v156, %v152
    %v158 = vmul.f32 1.0, %v157
    %v159 = vrcp.pop %v141
    %v160 = vmul.f32 %v141, %v159
    %v161 = vsub.f32 1.0, %v160
    %v162 = vmul.f32 %v159, %v161
    %v163 = vadd.f32 %v159, %v162
    %vm164 = vweird.f32 %v141
    %vm165 = vweird.f32 %v159
    %vm166 = vmor %vm164, %vm165
    %v167 = vsel %vm166, %v159, %v163
    %v168 = vand.u32 2147483647, %v141
    %vm169 = vcmp.eq.f32.partialorder %v168, 8.507059e+37
    %v170 = vand.u32 %v141, 2147483648
    %v171 = vor.u32 1.1754944e-38, %v170
    %v172 = vsel %vm169, %v171, %v167
    %v173 = vmul.f32 1.0, %v172
    %v174 = vrcp.pop %v142
    %v175 = vmul.f32 %v142, %v174
    %v176 = vsub.f32 1.0, %v175
    %v177 = vmul.f32 %v174, %v176
    %v178 = vadd.f32 %v174, %v177
    %vm179 = vweird.f32 %v142
    %vm180 = vweird.f32 %v174
    %vm181 = vmor %vm179, %vm180
    %v182 = vsel %vm181, %v174, %v178
    %v183 = vand.u32 2147483647, %v142
    %vm184 = vcmp.eq.f32.partialorder %v183, 8.507059e+37
    %v185 = vand.u32 %v142, 2147483648
    %v186 = vor.u32 1.1754944e-38, %v185
    %v187 = vsel %vm184, %v186, %v182
    %v188 = vmul.f32 1.0, %v187
    %v189 = vrcp.pop %v143
    %v190 = vmul.f32 %v143, %v189
    %v191 = vsub.f32 1.0, %v190
    %v192 = vmul.f32 %v189, %v191
    %v193 = vadd.f32 %v189, %v192
    %vm194 = vweird.f32 %v143
    %vm195 = vweird.f32 %v189
    %vm196 = vmor %vm194, %vm195
    %v197 = vsel %vm196, %v189, %v193
    %v198 = vand.u32 2147483647, %v143
    %vm199 = vcmp.eq.f32.partialorder %v198, 8.507059e+37
    %v200 = vand.u32 %v143, 2147483648
    %v201 = vor.u32 1.1754944e-38, %v200
    %v202 = vsel %vm199, %v201, %v197
    %v203 = vmul.f32 1.0, %v202
    %v204 = vld [vmem:[%s4] sm:$0xff]
    %v205 = vld [vmem:[%s4 + $0x8] sm:$0xff]
    %v206 = vld [vmem:[%s4 + $0x10] sm:$0xff]
    %v207 = vld [vmem:[%s4 + $0x18] sm:$0xff]
    %v208 = vld [vmem:[%s1] sm:$0xff]
    %v209 = vld [vmem:[%s1 + $0x8] sm:$0xff]
    %v210 = vld [vmem:[%s1 + $0x10] sm:$0xff]
    %v211 = vld [vmem:[%s1 + $0x18] sm:$0xff]
    %v213 = vsel %vm86, %v204, 0
    %v216 = vsel %vm86, %v205, 0
    %v219 = vsel %vm86, %v206, 0
    %v222 = vsel %vm86, %v207, 0
    %224 = vmatpush.msra.mxu0 0.0
    %225 = vmatpush.msra.mxu0 0.0
    %226 = vmatpush.msra.mxu0 0.0
    %227 = vmatpush.msra.mxu0 0.0
    %228 = vmatpush.msra.mxu0 0.0
    %229 = vmatpush.msra.mxu0 0.0
    %230 = vmatpush.msra.mxu0 0.0
    %231 = vmatpush.msra.mxu0 0.0
    %232 = vmatpush.msra.mxu0 0.0
    %233 = vmatpush.msra.mxu0 0.0
    %234 = vmatpush.msra.mxu0 0.0
    %235 = vmatpush.msra.mxu0 0.0
    %236 = vmatpush.msra.mxu0 %v57
    %237 = vmatpush.msra.mxu0 %v56
    %238 = vmatpush.msra.mxu0 %v55
    %239 = vmatpush.msra.mxu0 %v54
    %240 = vmatmul.f32.gmra.mxu0 %v213
    %v241 = vpop.f32.mrf.mxu0
    %v242 = vadd.f32 %v208, %v241
    %243 = vmatmul.f32.gmra.mxu0 %v216
    %v244 = vpop.f32.mrf.mxu0
    %v245 = vadd.f32 %v209, %v244
    %246 = vmatmul.f32.gmra.mxu0 %v219
    %v247 = vpop.f32.mrf.mxu0
    %v248 = vadd.f32 %v210, %v247
    %249 = vmatmul.f32.gmra.mxu0 %v222
    %v250 = vpop.f32.mrf.mxu0
    %v251 = vadd.f32 %v211, %v250
    %252 = vdwg.mxu0
    %v253 = vld [vmem:[%s5] sm:$0xff]
    %v254 = vld [vmem:[%s5 + $0x8] sm:$0xff]
    %v255 = vld [vmem:[%s5 + $0x10] sm:$0xff]
    %v256 = vld [vmem:[%s5 + $0x18] sm:$0xff]
    %v257 = vld [vmem:[%s2] sm:$0xff]
    %v258 = vld [vmem:[%s2 + $0x8] sm:$0xff]
    %v259 = vld [vmem:[%s2 + $0x10] sm:$0xff]
    %v260 = vld [vmem:[%s2 + $0x18] sm:$0xff]
    %v261 = vld [vmem:[%s6] sm:$0xff]
    %v262 = vld [vmem:[%s6 + $0x8] sm:$0xff]
    %v263 = vld [vmem:[%s6 + $0x10] sm:$0xff]
    %v264 = vld [vmem:[%s6 + $0x18] sm:$0xff]
    %266 = vset.pattern.permute.xlu0 0
    %267 = vperm.xlu0 %266, %v261
    %v268 = vpop.permute.xlu0 %267
    %271 = vset.pattern.permute.xlu0 0
    %272 = vperm.xlu0 %271, %v262
    %v273 = vpop.permute.xlu0 %272
    %276 = vset.pattern.permute.xlu0 0
    %277 = vperm.xlu0 %276, %v263
    %v278 = vpop.permute.xlu0 %277
    %281 = vset.pattern.permute.xlu0 0
    %282 = vperm.xlu0 %281, %v264
    %v283 = vpop.permute.xlu0 %282
    %v286 = vsel %vm86, %v253, 0
    %v289 = vsel %vm86, %v254, 0
    %v292 = vsel %vm86, %v255, 0
    %v295 = vsel %vm86, %v256, 0
    %297 = vmatpush.msra.mxu0 0.0
    %298 = vmatpush.msra.mxu0 0.0
    %299 = vmatpush.msra.mxu0 0.0
    %300 = vmatpush.msra.mxu0 0.0
    %301 = vmatpush.msra.mxu0 0.0
    %302 = vmatpush.msra.mxu0 0.0
    %303 = vmatpush.msra.mxu0 0.0
    %304 = vmatpush.msra.mxu0 0.0
    %305 = vmatpush.msra.mxu0 0.0
    %306 = vmatpush.msra.mxu0 0.0
    %307 = vmatpush.msra.mxu0 0.0
    %308 = vmatpush.msra.mxu0 0.0
    %309 = vmatpush.msra.mxu0 %v260
    %310 = vmatpush.msra.mxu0 %v259
    %311 = vmatpush.msra.mxu0 %v258
    %312 = vmatpush.msra.mxu0 %v257
    %313 = vmatmul.f32.gmra.mxu0 %v286
    %v314 = vpop.f32.mrf.mxu0
    %v315 = vadd.f32 %v268, %v314
    %316 = vmatmul.f32.gmra.mxu0 %v289
    %v317 = vpop.f32.mrf.mxu0
    %v318 = vadd.f32 %v273, %v317
    %319 = vmatmul.f32.gmra.mxu0 %v292
    %v320 = vpop.f32.mrf.mxu0
    %v321 = vadd.f32 %v278, %v320
    %322 = vmatmul.f32.gmra.mxu0 %v295
    %v323 = vpop.f32.mrf.mxu0
    %v324 = vadd.f32 %v283, %v323
    %325 = vdwg.mxu0
    %v326 = vld [vmem:[%s11] sm:$0xff]
    %v327 = vld [vmem:[%s11 + $0x8] sm:$0xff]
    %v328 = vld [vmem:[%s11 + $0x10] sm:$0xff]
    %v329 = vld [vmem:[%s11 + $0x18] sm:$0xff]
    %v330 = vld [vmem:[%s11 + $0x20] sm:$0xff]
    %v331 = vld [vmem:[%s11 + $0x28] sm:$0xff]
    %v332 = vld [vmem:[%s11 + $0x30] sm:$0xff]
    %v333 = vld [vmem:[%s11 + $0x38] sm:$0xff]
    %v334 = vld [vmem:[%s11 + $0x40] sm:$0xff]
    %v335 = vld [vmem:[%s11 + $0x48] sm:$0xff]
    %v336 = vld [vmem:[%s11 + $0x50] sm:$0xff]
    %v337 = vld [vmem:[%s11 + $0x58] sm:$0xff]
    %v338 = vld [vmem:[%s11 + $0x60] sm:$0xff]
    %v339 = vld [vmem:[%s11 + $0x68] sm:$0xff]
    %v340 = vld [vmem:[%s11 + $0x70] sm:$0xff]
    %v341 = vld [vmem:[%s11 + $0x78] sm:$0xff]
    %v342 = vld [vmem:[%s12] sm:$0xff]
    %v343 = vld [vmem:[%s12 + $0x8] sm:$0xff]
    %v344 = vld [vmem:[%s12 + $0x10] sm:$0xff]
    %v345 = vld [vmem:[%s12 + $0x18] sm:$0xff]
    %v346 = vld [vmem:[%s12 + $0x20] sm:$0xff]
    %v347 = vld [vmem:[%s12 + $0x28] sm:$0xff]
    %v348 = vld [vmem:[%s12 + $0x30] sm:$0xff]
    %v349 = vld [vmem:[%s12 + $0x38] sm:$0xff]
    %v350 = vld [vmem:[%s12 + $0x40] sm:$0xff]
    %v351 = vld [vmem:[%s12 + $0x48] sm:$0xff]
    %v352 = vld [vmem:[%s12 + $0x50] sm:$0xff]
    %v353 = vld [vmem:[%s12 + $0x58] sm:$0xff]
    %v354 = vld [vmem:[%s12 + $0x60] sm:$0xff]
    %v355 = vld [vmem:[%s12 + $0x68] sm:$0xff]
    %v356 = vld [vmem:[%s12 + $0x70] sm:$0xff]
    %v357 = vld [vmem:[%s12 + $0x78] sm:$0xff]
    %v358 = vld [vmem:[%s15] sm:$0x1]
    %v359 = vmax.f32 %v248, -1.0
    %v360 = vmin.f32 %v359, 8.0
    %v361 = vadd.f32 %v360, %v358
    %v362 = vperm.slane %v242, 0
    %364 = vset.pattern.permute.xlu0 0
    %365 = vperm.xlu0 %364, %v342
    %v366 = vpop.permute.xlu0 %365
    %369 = vset.pattern.permute.xlu0 0
    %370 = vperm.xlu0 %369, %v343
    %v371 = vpop.permute.xlu0 %370
    %374 = vset.pattern.permute.xlu0 0
    %375 = vperm.xlu0 %374, %v344
    %v376 = vpop.permute.xlu0 %375
    %379 = vset.pattern.permute.xlu0 0
    %380 = vperm.xlu0 %379, %v345
    %v381 = vpop.permute.xlu0 %380
    %384 = vset.pattern.permute.xlu0 0
    %385 = vperm.xlu0 %384, %v346
    %v386 = vpop.permute.xlu0 %385
    %389 = vset.pattern.permute.xlu0 0
    %390 = vperm.xlu0 %389, %v347
    %v391 = vpop.permute.xlu0 %390
    %394 = vset.pattern.permute.xlu0 0
    %395 = vperm.xlu0 %394, %v348
    %v396 = vpop.permute.xlu0 %395
    %399 = vset.pattern.permute.xlu0 0
    %400 = vperm.xlu0 %399, %v349
    %v401 = vpop.permute.xlu0 %400
    %404 = vset.pattern.permute.xlu0 0
    %405 = vperm.xlu0 %404, %v350
    %v406 = vpop.permute.xlu0 %405
    %409 = vset.pattern.permute.xlu0 0
    %410 = vperm.xlu0 %409, %v351
    %v411 = vpop.permute.xlu0 %410
    %414 = vset.pattern.permute.xlu0 0
    %415 = vperm.xlu0 %414, %v352
    %v416 = vpop.permute.xlu0 %415
    %419 = vset.pattern.permute.xlu0 0
    %420 = vperm.xlu0 %419, %v353
    %v421 = vpop.permute.xlu0 %420
    %424 = vset.pattern.permute.xlu0 0
    %425 = vperm.xlu0 %424, %v354
    %v426 = vpop.permute.xlu0 %425
    %429 = vset.pattern.permute.xlu0 0
    %430 = vperm.xlu0 %429, %v355
    %v431 = vpop.permute.xlu0 %430
    %434 = vset.pattern.permute.xlu0 0
    %435 = vperm.xlu0 %434, %v356
    %v436 = vpop.permute.xlu0 %435
    %439 = vset.pattern.permute.xlu0 0
    %440 = vperm.xlu0 %439, %v357
    %v441 = vpop.permute.xlu0 %440
    %v443 = vsub.f32 %v362, %v366
    %v444 = vsub.f32 %v362, %v371
    %v445 = vsub.f32 %v362, %v376
    %v446 = vsub.f32 %v362, %v381
    %v447 = vsub.f32 %v362, %v386
    %v448 = vsub.f32 %v362, %v391
    %v449 = vsub.f32 %v362, %v396
    %v450 = vsub.f32 %v362, %v401
    %v451 = vsub.f32 %v362, %v406
    %v452 = vsub.f32 %v362, %v411
    %v453 = vsub.f32 %v362, %v416
    %v454 = vsub.f32 %v362, %v421
    %v455 = vsub.f32 %v362, %v426
    %v456 = vsub.f32 %v362, %v431
    %v457 = vsub.f32 %v362, %v436
    %v458 = vsub.f32 %v362, %v441
    %v459 = vand.u32 2147483647, %v443
    %v460 = vand.u32 2147483647, %v444
    %v461 = vand.u32 2147483647, %v445
    %v462 = vand.u32 2147483647, %v446
    %v463 = vand.u32 2147483647, %v447
    %v464 = vand.u32 2147483647, %v448
    %v465 = vand.u32 2147483647, %v449
    %v466 = vand.u32 2147483647, %v450
    %v467 = vand.u32 2147483647, %v451
    %v468 = vand.u32 2147483647, %v452
    %v469 = vand.u32 2147483647, %v453
    %v470 = vand.u32 2147483647, %v454
    %v471 = vand.u32 2147483647, %v455
    %v472 = vand.u32 2147483647, %v456
    %v473 = vand.u32 2147483647, %v457
    %v474 = vand.u32 2147483647, %v458
    %v475 = vsub.f32 1.0, %v459
    %v476 = vsub.f32 1.0, %v460
    %v477 = vsub.f32 1.0, %v461
    %v478 = vsub.f32 1.0, %v462
    %v479 = vsub.f32 1.0, %v463
    %v480 = vsub.f32 1.0, %v464
    %v481 = vsub.f32 1.0, %v465
    %v482 = vsub.f32 1.0, %v466
    %v483 = vsub.f32 1.0, %v467
    %v484 = vsub.f32 1.0, %v468
    %v485 = vsub.f32 1.0, %v469
    %v486 = vsub.f32 1.0, %v470
    %v487 = vsub.f32 1.0, %v471
    %v488 = vsub.f32 1.0, %v472
    %v489 = vsub.f32 1.0, %v473
    %v490 = vsub.f32 1.0, %v474
    %v491 = vmax.f32 %v475, 0.0
    %v492 = vmax.f32 %v476, 0.0
    %v493 = vmax.f32 %v477, 0.0
    %v494 = vmax.f32 %v478, 0.0
    %v495 = vmax.f32 %v479, 0.0
    %v496 = vmax.f32 %v480, 0.0
    %v497 = vmax.f32 %v481, 0.0
    %v498 = vmax.f32 %v482, 0.0
    %v499 = vmax.f32 %v483, 0.0
    %v500 = vmax.f32 %v484, 0.0
    %v501 = vmax.f32 %v485, 0.0
    %v502 = vmax.f32 %v486, 0.0
    %v503 = vmax.f32 %v487, 0.0
    %v504 = vmax.f32 %v488, 0.0
    %v505 = vmax.f32 %v489, 0.0
    %v506 = vmax.f32 %v490, 0.0
    %v507 = vperm.slane %v361, 0
    %509 = vset.pattern.permute.xlu0 0
    %510 = vperm.xlu0 %509, %v326
    %v511 = vpop.permute.xlu0 %510
    %514 = vset.pattern.permute.xlu0 0
    %515 = vperm.xlu0 %514, %v327
    %v516 = vpop.permute.xlu0 %515
    %519 = vset.pattern.permute.xlu0 0
    %520 = vperm.xlu0 %519, %v328
    %v521 = vpop.permute.xlu0 %520
    %524 = vset.pattern.permute.xlu0 0
    %525 = vperm.xlu0 %524, %v329
    %v526 = vpop.permute.xlu0 %525
    %529 = vset.pattern.permute.xlu0 0
    %530 = vperm.xlu0 %529, %v330
    %v531 = vpop.permute.xlu0 %530
    %534 = vset.pattern.permute.xlu0 0
    %535 = vperm.xlu0 %534, %v331
    %v536 = vpop.permute.xlu0 %535
    %539 = vset.pattern.permute.xlu0 0
    %540 = vperm.xlu0 %539, %v332
    %v541 = vpop.permute.xlu0 %540
    %544 = vset.pattern.permute.xlu0 0
    %545 = vperm.xlu0 %544, %v333
    %v546 = vpop.permute.xlu0 %545
    %549 = vset.pattern.permute.xlu0 0
    %550 = vperm.xlu0 %549, %v334
    %v551 = vpop.permute.xlu0 %550
    %554 = vset.pattern.permute.xlu0 0
    %555 = vperm.xlu0 %554, %v335
    %v556 = vpop.permute.xlu0 %555
    %559 = vset.pattern.permute.xlu0 0
    %560 = vperm.xlu0 %559, %v336
    %v561 = vpop.permute.xlu0 %560
    %564 = vset.pattern.permute.xlu0 0
    %565 = vperm.xlu0 %564, %v337
    %v566 = vpop.permute.xlu0 %565
    %569 = vset.pattern.permute.xlu0 0
    %570 = vperm.xlu0 %569, %v338
    %v571 = vpop.permute.xlu0 %570
    %574 = vset.pattern.permute.xlu0 0
    %575 = vperm.xlu0 %574, %v339
    %v576 = vpop.permute.xlu0 %575
    %579 = vset.pattern.permute.xlu0 0
    %580 = vperm.xlu0 %579, %v340
    %v581 = vpop.permute.xlu0 %580
    %584 = vset.pattern.permute.xlu0 0
    %585 = vperm.xlu0 %584, %v341
    %v586 = vpop.permute.xlu0 %585
    %v588 = vsub.f32 %v507, %v511
    %v589 = vsub.f32 %v507, %v516
    %v590 = vsub.f32 %v507, %v521
    %v591 = vsub.f32 %v507, %v526
    %v592 = vsub.f32 %v507, %v531
    %v593 = vsub.f32 %v507, %v536
    %v594 = vsub.f32 %v507, %v541
    %v595 = vsub.f32 %v507, %v546
    %v596 = vsub.f32 %v507, %v551
    %v597 = vsub.f32 %v507, %v556
    %v598 = vsub.f32 %v507, %v561
    %v599 = vsub.f32 %v507, %v566
    %v600 = vsub.f32 %v507, %v571
    %v601 = vsub.f32 %v507, %v576
    %v602 = vsub.f32 %v507, %v581
    %v603 = vsub.f32 %v507, %v586
    %v604 = vand.u32 2147483647, %v588
    %v605 = vand.u32 2147483647, %v589
    %v606 = vand.u32 2147483647, %v590
    %v607 = vand.u32 2147483647, %v591
    %v608 = vand.u32 2147483647, %v592
    %v609 = vand.u32 2147483647, %v593
    %v610 = vand.u32 2147483647, %v594
    %v611 = vand.u32 2147483647, %v595
    %v612 = vand.u32 2147483647, %v596
    %v613 = vand.u32 2147483647, %v597
    %v614 = vand.u32 2147483647, %v598
    %v615 = vand.u32 2147483647, %v599
    %v616 = vand.u32 2147483647, %v600
    %v617 = vand.u32 2147483647, %v601
    %v618 = vand.u32 2147483647, %v602
    %v619 = vand.u32 2147483647, %v603
    %v620 = vsub.f32 1.0, %v604
    %v621 = vsub.f32 1.0, %v605
    %v622 = vsub.f32 1.0, %v606
    %v623 = vsub.f32 1.0, %v607
    %v624 = vsub.f32 1.0, %v608
    %v625 = vsub.f32 1.0, %v609
    %v626 = vsub.f32 1.0, %v610
    %v627 = vsub.f32 1.0, %v611
    %v628 = vsub.f32 1.0, %v612
    %v629 = vsub.f32 1.0, %v613
    %v630 = vsub.f32 1.0, %v614
    %v631 = vsub.f32 1.0, %v615
    %v632 = vsub.f32 1.0, %v616
    %v633 = vsub.f32 1.0, %v617
    %v634 = vsub.f32 1.0, %v618
    %v635 = vsub.f32 1.0, %v619
    %v636 = vmax.f32 %v620, 0.0
    %v637 = vmax.f32 %v621, 0.0
    %v638 = vmax.f32 %v622, 0.0
    %v639 = vmax.f32 %v623, 0.0
    %v640 = vmax.f32 %v624, 0.0
    %v641 = vmax.f32 %v625, 0.0
    %v642 = vmax.f32 %v626, 0.0
    %v643 = vmax.f32 %v627, 0.0
    %v644 = vmax.f32 %v628, 0.0
    %v645 = vmax.f32 %v629, 0.0
    %v646 = vmax.f32 %v630, 0.0
    %v647 = vmax.f32 %v631, 0.0
    %v648 = vmax.f32 %v632, 0.0
    %v649 = vmax.f32 %v633, 0.0
    %v650 = vmax.f32 %v634, 0.0
    %v651 = vmax.f32 %v635, 0.0
    %v652 = vmul.f32 %v491, %v636
    %v653 = vmul.f32 %v492, %v637
    %v654 = vmul.f32 %v493, %v638
    %v655 = vmul.f32 %v494, %v639
    %v656 = vmul.f32 %v495, %v640
    %v657 = vmul.f32 %v496, %v641
    %v658 = vmul.f32 %v497, %v642
    %v659 = vmul.f32 %v498, %v643
    %v660 = vmul.f32 %v499, %v644
    %v661 = vmul.f32 %v500, %v645
    %v662 = vmul.f32 %v501, %v646
    %v663 = vmul.f32 %v502, %v647
    %v664 = vmul.f32 %v503, %v648
    %v665 = vmul.f32 %v504, %v649
    %v666 = vmul.f32 %v505, %v650
    %v667 = vmul.f32 %v506, %v651
    %668 = vmatpush.msra.mxu0 %v667
    %669 = vmatpush.msra.mxu0 %v666
    %670 = vmatpush.msra.mxu0 %v665
    %671 = vmatpush.msra.mxu0 %v664
    %672 = vmatpush.msra.mxu0 %v663
    %673 = vmatpush.msra.mxu0 %v662
    %674 = vmatpush.msra.mxu0 %v661
    %675 = vmatpush.msra.mxu0 %v660
    %676 = vmatpush.msra.mxu0 %v659
    %677 = vmatpush.msra.mxu0 %v658
    %678 = vmatpush.msra.mxu0 %v657
    %679 = vmatpush.msra.mxu0 %v656
    %680 = vmatpush.msra.mxu0 %v655
    %681 = vmatpush.msra.mxu0 %v654
    %682 = vmatpush.msra.mxu0 %v653
    %683 = vmatpush.msra.mxu0 %v652
    %684 = vmatmul.f32.gmra.mxu0 %v315
    %v685 = vpop.f32.mrf.mxu0
    %v686 = vadd.f32 0.0, %v685
    %687 = vdwg.mxu0
    %v688 = vperm.slane %v158, 0
    %v689 = vmul.f32 %v688, %v686
    %v690 = vadd.f32 %v689, 0.0
    %v691 = vmax.f32 %v251, -1.0
    %v692 = vmin.f32 %v691, 8.0
    %v693 = vadd.f32 %v692, %v358
    %v694 = vperm.slane %v245, 0
    %v695 = vsub.f32 %v694, %v366
    %v696 = vsub.f32 %v694, %v371
    %v697 = vsub.f32 %v694, %v376
    %v698 = vsub.f32 %v694, %v381
    %v699 = vsub.f32 %v694, %v386
    %v700 = vsub.f32 %v694, %v391
    %v701 = vsub.f32 %v694, %v396
    %v702 = vsub.f32 %v694, %v401
    %v703 = vsub.f32 %v694, %v406
    %v704 = vsub.f32 %v694, %v411
    %v705 = vsub.f32 %v694, %v416
    %v706 = vsub.f32 %v694, %v421
    %v707 = vsub.f32 %v694, %v426
    %v708 = vsub.f32 %v694, %v431
    %v709 = vsub.f32 %v694, %v436
    %v710 = vsub.f32 %v694, %v441
    %v711 = vand.u32 2147483647, %v695
    %v712 = vand.u32 2147483647, %v696
    %v713 = vand.u32 2147483647, %v697
    %v714 = vand.u32 2147483647, %v698
    %v715 = vand.u32 2147483647, %v699
    %v716 = vand.u32 2147483647, %v700
    %v717 = vand.u32 2147483647, %v701
    %v718 = vand.u32 2147483647, %v702
    %v719 = vand.u32 2147483647, %v703
    %v720 = vand.u32 2147483647, %v704
    %v721 = vand.u32 2147483647, %v705
    %v722 = vand.u32 2147483647, %v706
    %v723 = vand.u32 2147483647, %v707
    %v724 = vand.u32 2147483647, %v708
    %v725 = vand.u32 2147483647, %v709
    %v726 = vand.u32 2147483647, %v710
    %v727 = vsub.f32 1.0, %v711
    %v728 = vsub.f32 1.0, %v712
    %v729 = vsub.f32 1.0, %v713
    %v730 = vsub.f32 1.0, %v714
    %v731 = vsub.f32 1.0, %v715
    %v732 = vsub.f32 1.0, %v716
    %v733 = vsub.f32 1.0, %v717
    %v734 = vsub.f32 1.0, %v718
    %v735 = vsub.f32 1.0, %v719
    %v736 = vsub.f32 1.0, %v720
    %v737 = vsub.f32 1.0, %v721
    %v738 = vsub.f32 1.0, %v722
    %v739 = vsub.f32 1.0, %v723
    %v740 = vsub.f32 1.0, %v724
    %v741 = vsub.f32 1.0, %v725
    %v742 = vsub.f32 1.0, %v726
    %v743 = vmax.f32 %v727, 0.0
    %v744 = vmax.f32 %v728, 0.0
    %v745 = vmax.f32 %v729, 0.0
    %v746 = vmax.f32 %v730, 0.0
    %v747 = vmax.f32 %v731, 0.0
    %v748 = vmax.f32 %v732, 0.0
    %v749 = vmax.f32 %v733, 0.0
    %v750 = vmax.f32 %v734, 0.0
    %v751 = vmax.f32 %v735, 0.0
    %v752 = vmax.f32 %v736, 0.0
    %v753 = vmax.f32 %v737, 0.0
    %v754 = vmax.f32 %v738, 0.0
    %v755 = vmax.f32 %v739, 0.0
    %v756 = vmax.f32 %v740, 0.0
    %v757 = vmax.f32 %v741, 0.0
    %v758 = vmax.f32 %v742, 0.0
    %v759 = vperm.slane %v693, 0
    %v760 = vsub.f32 %v759, %v511
    %v761 = vsub.f32 %v759, %v516
    %v762 = vsub.f32 %v759, %v521
    %v763 = vsub.f32 %v759, %v526
    %v764 = vsub.f32 %v759, %v531
    %v765 = vsub.f32 %v759, %v536
    %v766 = vsub.f32 %v759, %v541
    %v767 = vsub.f32 %v759, %v546
    %v768 = vsub.f32 %v759, %v551
    %v769 = vsub.f32 %v759, %v556
    %v770 = vsub.f32 %v759, %v561
    %v771 = vsub.f32 %v759, %v566
    %v772 = vsub.f32 %v759, %v571
    %v773 = vsub.f32 %v759, %v576
    %v774 = vsub.f32 %v759, %v581
    %v775 = vsub.f32 %v759, %v586
    %v776 = vand.u32 2147483647, %v760
    %v777 = vand.u32 2147483647, %v761
    %v778 = vand.u32 2147483647, %v762
    %v779 = vand.u32 2147483647, %v763
    %v780 = vand.u32 2147483647, %v764
    %v781 = vand.u32 2147483647, %v765
    %v782 = vand.u32 2147483647, %v766
    %v783 = vand.u32 2147483647, %v767
    %v784 = vand.u32 2147483647, %v768
    %v785 = vand.u32 2147483647, %v769
    %v786 = vand.u32 2147483647, %v770
    %v787 = vand.u32 2147483647, %v771
    %v788 = vand.u32 2147483647, %v772
    %v789 = vand.u32 2147483647, %v773
    %v790 = vand.u32 2147483647, %v774
    %v791 = vand.u32 2147483647, %v775
    %v792 = vsub.f32 1.0, %v776
    %v793 = vsub.f32 1.0, %v777
    %v794 = vsub.f32 1.0, %v778
    %v795 = vsub.f32 1.0, %v779
    %v796 = vsub.f32 1.0, %v780
    %v797 = vsub.f32 1.0, %v781
    %v798 = vsub.f32 1.0, %v782
    %v799 = vsub.f32 1.0, %v783
    %v800 = vsub.f32 1.0, %v784
    %v801 = vsub.f32 1.0, %v785
    %v802 = vsub.f32 1.0, %v786
    %v803 = vsub.f32 1.0, %v787
    %v804 = vsub.f32 1.0, %v788
    %v805 = vsub.f32 1.0, %v789
    %v806 = vsub.f32 1.0, %v790
    %v807 = vsub.f32 1.0, %v791
    %v808 = vmax.f32 %v792, 0.0
    %v809 = vmax.f32 %v793, 0.0
    %v810 = vmax.f32 %v794, 0.0
    %v811 = vmax.f32 %v795, 0.0
    %v812 = vmax.f32 %v796, 0.0
    %v813 = vmax.f32 %v797, 0.0
    %v814 = vmax.f32 %v798, 0.0
    %v815 = vmax.f32 %v799, 0.0
    %v816 = vmax.f32 %v800, 0.0
    %v817 = vmax.f32 %v801, 0.0
    %v818 = vmax.f32 %v802, 0.0
    %v819 = vmax.f32 %v803, 0.0
    %v820 = vmax.f32 %v804, 0.0
    %v821 = vmax.f32 %v805, 0.0
    %v822 = vmax.f32 %v806, 0.0
    %v823 = vmax.f32 %v807, 0.0
    %v824 = vmul.f32 %v743, %v808
    %v825 = vmul.f32 %v744, %v809
    %v826 = vmul.f32 %v745, %v810
    %v827 = vmul.f32 %v746, %v811
    %v828 = vmul.f32 %v747, %v812
    %v829 = vmul.f32 %v748, %v813
    %v830 = vmul.f32 %v749, %v814
    %v831 = vmul.f32 %v750, %v815
    %v832 = vmul.f32 %v751, %v816
    %v833 = vmul.f32 %v752, %v817
    %v834 = vmul.f32 %v753, %v818
    %v835 = vmul.f32 %v754, %v819
    %v836 = vmul.f32 %v755, %v820
    %v837 = vmul.f32 %v756, %v821
    %v838 = vmul.f32 %v757, %v822
    %v839 = vmul.f32 %v758, %v823
    %840 = vmatpush.msra.mxu0 %v839
    %841 = vmatpush.msra.mxu0 %v838
    %842 = vmatpush.msra.mxu0 %v837
    %843 = vmatpush.msra.mxu0 %v836
    %844 = vmatpush.msra.mxu0 %v835
    %845 = vmatpush.msra.mxu0 %v834
    %846 = vmatpush.msra.mxu0 %v833
    %847 = vmatpush.msra.mxu0 %v832
    %848 = vmatpush.msra.mxu0 %v831
    %849 = vmatpush.msra.mxu0 %v830
    %850 = vmatpush.msra.mxu0 %v829
    %851 = vmatpush.msra.mxu0 %v828
    %852 = vmatpush.msra.mxu0 %v827
    %853 = vmatpush.msra.mxu0 %v826
    %854 = vmatpush.msra.mxu0 %v825
    %855 = vmatpush.msra.mxu0 %v824
    %856 = vmatmul.f32.gmra.mxu0 %v315
    %v857 = vpop.f32.mrf.mxu0
    %v858 = vadd.f32 0.0, %v857
    %859 = vdwg.mxu0
    %v860 = vperm.slane %v173, 0
    %v861 = vmul.f32 %v860, %v858
    %v862 = vadd.f32 %v690, %v861
    %v864 = vperm.slane %v358, 0
    %v866 = vadd.f32 %v360, %v864
    %v867 = vperm.slane %v242, 1
    %v868 = vsub.f32 %v867, %v366
    %v869 = vsub.f32 %v867, %v371
    %v870 = vsub.f32 %v867, %v376
    %v871 = vsub.f32 %v867, %v381
    %v872 = vsub.f32 %v867, %v386
    %v873 = vsub.f32 %v867, %v391
    %v874 = vsub.f32 %v867, %v396
    %v875 = vsub.f32 %v867, %v401
    %v876 = vsub.f32 %v867, %v406
    %v877 = vsub.f32 %v867, %v411
    %v878 = vsub.f32 %v867, %v416
    %v879 = vsub.f32 %v867, %v421
    %v880 = vsub.f32 %v867, %v426
    %v881 = vsub.f32 %v867, %v431
    %v882 = vsub.f32 %v867, %v436
    %v883 = vsub.f32 %v867, %v441
    %v884 = vand.u32 2147483647, %v868
    %v885 = vand.u32 2147483647, %v869
    %v886 = vand.u32 2147483647, %v870
    %v887 = vand.u32 2147483647, %v871
    %v888 = vand.u32 2147483647, %v872
    %v889 = vand.u32 2147483647, %v873
    %v890 = vand.u32 2147483647, %v874
    %v891 = vand.u32 2147483647, %v875
    %v892 = vand.u32 2147483647, %v876
    %v893 = vand.u32 2147483647, %v877
    %v894 = vand.u32 2147483647, %v878
    %v895 = vand.u32 2147483647, %v879
    %v896 = vand.u32 2147483647, %v880
    %v897 = vand.u32 2147483647, %v881
    %v898 = vand.u32 2147483647, %v882
    %v899 = vand.u32 2147483647, %v883
    %v900 = vsub.f32 1.0, %v884
    %v901 = vsub.f32 1.0, %v885
    %v902 = vsub.f32 1.0, %v886
    %v903 = vsub.f32 1.0, %v887
    %v904 = vsub.f32 1.0, %v888
    %v905 = vsub.f32 1.0, %v889
    %v906 = vsub.f32 1.0, %v890
    %v907 = vsub.f32 1.0, %v891
    %v908 = vsub.f32 1.0, %v892
    %v909 = vsub.f32 1.0, %v893
    %v910 = vsub.f32 1.0, %v894
    %v911 = vsub.f32 1.0, %v895
    %v912 = vsub.f32 1.0, %v896
    %v913 = vsub.f32 1.0, %v897
    %v914 = vsub.f32 1.0, %v898
    %v915 = vsub.f32 1.0, %v899
    %v916 = vmax.f32 %v900, 0.0
    %v917 = vmax.f32 %v901, 0.0
    %v918 = vmax.f32 %v902, 0.0
    %v919 = vmax.f32 %v903, 0.0
    %v920 = vmax.f32 %v904, 0.0
    %v921 = vmax.f32 %v905, 0.0
    %v922 = vmax.f32 %v906, 0.0
    %v923 = vmax.f32 %v907, 0.0
    %v924 = vmax.f32 %v908, 0.0
    %v925 = vmax.f32 %v909, 0.0
    %v926 = vmax.f32 %v910, 0.0
    %v927 = vmax.f32 %v911, 0.0
    %v928 = vmax.f32 %v912, 0.0
    %v929 = vmax.f32 %v913, 0.0
    %v930 = vmax.f32 %v914, 0.0
    %v931 = vmax.f32 %v915, 0.0
    %v932 = vperm.slane %v866, 1
    %v933 = vsub.f32 %v932, %v511
    %v934 = vsub.f32 %v932, %v516
    %v935 = vsub.f32 %v932, %v521
    %v936 = vsub.f32 %v932, %v526
    %v937 = vsub.f32 %v932, %v531
    %v938 = vsub.f32 %v932, %v536
    %v939 = vsub.f32 %v932, %v541
    %v940 = vsub.f32 %v932, %v546
    %v941 = vsub.f32 %v932, %v551
    %v942 = vsub.f32 %v932, %v556
    %v943 = vsub.f32 %v932, %v561
    %v944 = vsub.f32 %v932, %v566
    %v945 = vsub.f32 %v932, %v571
    %v946 = vsub.f32 %v932, %v576
    %v947 = vsub.f32 %v932, %v581
    %v948 = vsub.f32 %v932, %v586
    %v949 = vand.u32 2147483647, %v933
    %v950 = vand.u32 2147483647, %v934
    %v951 = vand.u32 2147483647, %v935
    %v952 = vand.u32 2147483647, %v936
    %v953 = vand.u32 2147483647, %v937
    %v954 = vand.u32 2147483647, %v938
    %v955 = vand.u32 2147483647, %v939
    %v956 = vand.u32 2147483647, %v940
    %v957 = vand.u32 2147483647, %v941
    %v958 = vand.u32 2147483647, %v942
    %v959 = vand.u32 2147483647, %v943
    %v960 = vand.u32 2147483647, %v944
    %v961 = vand.u32 2147483647, %v945
    %v962 = vand.u32 2147483647, %v946
    %v963 = vand.u32 2147483647, %v947
    %v964 = vand.u32 2147483647, %v948
    %v965 = vsub.f32 1.0, %v949
    %v966 = vsub.f32 1.0, %v950
    %v967 = vsub.f32 1.0, %v951
    %v968 = vsub.f32 1.0, %v952
    %v969 = vsub.f32 1.0, %v953
    %v970 = vsub.f32 1.0, %v954
    %v971 = vsub.f32 1.0, %v955
    %v972 = vsub.f32 1.0, %v956
    %v973 = vsub.f32 1.0, %v957
    %v974 = vsub.f32 1.0, %v958
    %v975 = vsub.f32 1.0, %v959
    %v976 = vsub.f32 1.0, %v960
    %v977 = vsub.f32 1.0, %v961
    %v978 = vsub.f32 1.0, %v962
    %v979 = vsub.f32 1.0, %v963
    %v980 = vsub.f32 1.0, %v964
    %v981 = vmax.f32 %v965, 0.0
    %v982 = vmax.f32 %v966, 0.0
    %v983 = vmax.f32 %v967, 0.0
    %v984 = vmax.f32 %v968, 0.0
    %v985 = vmax.f32 %v969, 0.0
    %v986 = vmax.f32 %v970, 0.0
    %v987 = vmax.f32 %v971, 0.0
    %v988 = vmax.f32 %v972, 0.0
    %v989 = vmax.f32 %v973, 0.0
    %v990 = vmax.f32 %v974, 0.0
    %v991 = vmax.f32 %v975, 0.0
    %v992 = vmax.f32 %v976, 0.0
    %v993 = vmax.f32 %v977, 0.0
    %v994 = vmax.f32 %v978, 0.0
    %v995 = vmax.f32 %v979, 0.0
    %v996 = vmax.f32 %v980, 0.0
    %v997 = vmul.f32 %v916, %v981
    %v998 = vmul.f32 %v917, %v982
    %v999 = vmul.f32 %v918, %v983
    %v1000 = vmul.f32 %v919, %v984
    %v1001 = vmul.f32 %v920, %v985
    %v1002 = vmul.f32 %v921, %v986
    %v1003 = vmul.f32 %v922, %v987
    %v1004 = vmul.f32 %v923, %v988
    %v1005 = vmul.f32 %v924, %v989
    %v1006 = vmul.f32 %v925, %v990
    %v1007 = vmul.f32 %v926, %v991
    %v1008 = vmul.f32 %v927, %v992
    %v1009 = vmul.f32 %v928, %v993
    %v1010 = vmul.f32 %v929, %v994
    %v1011 = vmul.f32 %v930, %v995
    %v1012 = vmul.f32 %v931, %v996
    %v1014 = vrot.slane %v315, 4
    %1016 = vmatpush.msra.mxu0 %v1012
    %1017 = vmatpush.msra.mxu0 %v1011
    %1018 = vmatpush.msra.mxu0 %v1010
    %1019 = vmatpush.msra.mxu0 %v1009
    %1020 = vmatpush.msra.mxu0 %v1008
    %1021 = vmatpush.msra.mxu0 %v1007
    %1022 = vmatpush.msra.mxu0 %v1006
    %1023 = vmatpush.msra.mxu0 %v1005
    %1024 = vmatpush.msra.mxu0 %v1004
    %1025 = vmatpush.msra.mxu0 %v1003
    %1026 = vmatpush.msra.mxu0 %v1002
    %1027 = vmatpush.msra.mxu0 %v1001
    %1028 = vmatpush.msra.mxu0 %v1000
    %1029 = vmatpush.msra.mxu0 %v999
    %1030 = vmatpush.msra.mxu0 %v998
    %1031 = vmatpush.msra.mxu0 %v997
    %1032 = vmatmul.f32.gmra.mxu0 %v1014
    %v1033 = vpop.f32.mrf.mxu0
    %v1034 = vadd.f32 0.0, %v1033
    %1035 = vdwg.mxu0
    %v1036 = vperm.slane %v158, 1
    %v1037 = vmul.f32 %v1036, %v1034
    %v1038 = vadd.f32 %v1037, 0.0
    %v1039 = vadd.f32 %v692, %v864
    %v1040 = vperm.slane %v245, 1
    %v1041 = vsub.f32 %v1040, %v366
    %v1042 = vsub.f32 %v1040, %v371
    %v1043 = vsub.f32 %v1040, %v376
    %v1044 = vsub.f32 %v1040, %v381
    %v1045 = vsub.f32 %v1040, %v386
    %v1046 = vsub.f32 %v1040, %v391
    %v1047 = vsub.f32 %v1040, %v396
    %v1048 = vsub.f32 %v1040, %v401
    %v1049 = vsub.f32 %v1040, %v406
    %v1050 = vsub.f32 %v1040, %v411
    %v1051 = vsub.f32 %v1040, %v416
    %v1052 = vsub.f32 %v1040, %v421
    %v1053 = vsub.f32 %v1040, %v426
    %v1054 = vsub.f32 %v1040, %v431
    %v1055 = vsub.f32 %v1040, %v436
    %v1056 = vsub.f32 %v1040, %v441
    %v1057 = vand.u32 2147483647, %v1041
    %v1058 = vand.u32 2147483647, %v1042
    %v1059 = vand.u32 2147483647, %v1043
    %v1060 = vand.u32 2147483647, %v1044
    %v1061 = vand.u32 2147483647, %v1045
    %v1062 = vand.u32 2147483647, %v1046
    %v1063 = vand.u32 2147483647, %v1047
    %v1064 = vand.u32 2147483647, %v1048
    %v1065 = vand.u32 2147483647, %v1049
    %v1066 = vand.u32 2147483647, %v1050
    %v1067 = vand.u32 2147483647, %v1051
    %v1068 = vand.u32 2147483647, %v1052
    %v1069 = vand.u32 2147483647, %v1053
    %v1070 = vand.u32 2147483647, %v1054
    %v1071 = vand.u32 2147483647, %v1055
    %v1072 = vand.u32 2147483647, %v1056
    %v1073 = vsub.f32 1.0, %v1057
    %v1074 = vsub.f32 1.0, %v1058
    %v1075 = vsub.f32 1.0, %v1059
    %v1076 = vsub.f32 1.0, %v1060
    %v1077 = vsub.f32 1.0, %v1061
    %v1078 = vsub.f32 1.0, %v1062
    %v1079 = vsub.f32 1.0, %v1063
    %v1080 = vsub.f32 1.0, %v1064
    %v1081 = vsub.f32 1.0, %v1065
    %v1082 = vsub.f32 1.0, %v1066
    %v1083 = vsub.f32 1.0, %v1067
    %v1084 = vsub.f32 1.0, %v1068
    %v1085 = vsub.f32 1.0, %v1069
    %v1086 = vsub.f32 1.0, %v1070
    %v1087 = vsub.f32 1.0, %v1071
    %v1088 = vsub.f32 1.0, %v1072
    %v1089 = vmax.f32 %v1073, 0.0
    %v1090 = vmax.f32 %v1074, 0.0
    %v1091 = vmax.f32 %v1075, 0.0
    %v1092 = vmax.f32 %v1076, 0.0
    %v1093 = vmax.f32 %v1077, 0.0
    %v1094 = vmax.f32 %v1078, 0.0
    %v1095 = vmax.f32 %v1079, 0.0
    %v1096 = vmax.f32 %v1080, 0.0
    %v1097 = vmax.f32 %v1081, 0.0
    %v1098 = vmax.f32 %v1082, 0.0
    %v1099 = vmax.f32 %v1083, 0.0
    %v1100 = vmax.f32 %v1084, 0.0
    %v1101 = vmax.f32 %v1085, 0.0
    %v1102 = vmax.f32 %v1086, 0.0
    %v1103 = vmax.f32 %v1087, 0.0
    %v1104 = vmax.f32 %v1088, 0.0
    %v1105 = vperm.slane %v1039, 1
    %v1106 = vsub.f32 %v1105, %v511
    %v1107 = vsub.f32 %v1105, %v516
    %v1108 = vsub.f32 %v1105, %v521
    %v1109 = vsub.f32 %v1105, %v526
    %v1110 = vsub.f32 %v1105, %v531
    %v1111 = vsub.f32 %v1105, %v536
    %v1112 = vsub.f32 %v1105, %v541
    %v1113 = vsub.f32 %v1105, %v546
    %v1114 = vsub.f32 %v1105, %v551
    %v1115 = vsub.f32 %v1105, %v556
    %v1116 = vsub.f32 %v1105, %v561
    %v1117 = vsub.f32 %v1105, %v566
    %v1118 = vsub.f32 %v1105, %v571
    %v1119 = vsub.f32 %v1105, %v576
    %v1120 = vsub.f32 %v1105, %v581
    %v1121 = vsub.f32 %v1105, %v586
    %v1122 = vand.u32 2147483647, %v1106
    %v1123 = vand.u32 2147483647, %v1107
    %v1124 = vand.u32 2147483647, %v1108
    %v1125 = vand.u32 2147483647, %v1109
    %v1126 = vand.u32 2147483647, %v1110
    %v1127 = vand.u32 2147483647, %v1111
    %v1128 = vand.u32 2147483647, %v1112
    %v1129 = vand.u32 2147483647, %v1113
    %v1130 = vand.u32 2147483647, %v1114
    %v1131 = vand.u32 2147483647, %v1115
    %v1132 = vand.u32 2147483647, %v1116
    %v1133 = vand.u32 2147483647, %v1117
    %v1134 = vand.u32 2147483647, %v1118
    %v1135 = vand.u32 2147483647, %v1119
    %v1136 = vand.u32 2147483647, %v1120
    %v1137 = vand.u32 2147483647, %v1121
    %v1138 = vsub.f32 1.0, %v1122
    %v1139 = vsub.f32 1.0, %v1123
    %v1140 = vsub.f32 1.0, %v1124
    %v1141 = vsub.f32 1.0, %v1125
    %v1142 = vsub.f32 1.0, %v1126
    %v1143 = vsub.f32 1.0, %v1127
    %v1144 = vsub.f32 1.0, %v1128
    %v1145 = vsub.f32 1.0, %v1129
    %v1146 = vsub.f32 1.0, %v1130
    %v1147 = vsub.f32 1.0, %v1131
    %v1148 = vsub.f32 1.0, %v1132
    %v1149 = vsub.f32 1.0, %v1133
    %v1150 = vsub.f32 1.0, %v1134
    %v1151 = vsub.f32 1.0, %v1135
    %v1152 = vsub.f32 1.0, %v1136
    %v1153 = vsub.f32 1.0, %v1137
    %v1154 = vmax.f32 %v1138, 0.0
    %v1155 = vmax.f32 %v1139, 0.0
    %v1156 = vmax.f32 %v1140, 0.0
    %v1157 = vmax.f32 %v1141, 0.0
    %v1158 = vmax.f32 %v1142, 0.0
    %v1159 = vmax.f32 %v1143, 0.0
    %v1160 = vmax.f32 %v1144, 0.0
    %v1161 = vmax.f32 %v1145, 0.0
    %v1162 = vmax.f32 %v1146, 0.0
    %v1163 = vmax.f32 %v1147, 0.0
    %v1164 = vmax.f32 %v1148, 0.0
    %v1165 = vmax.f32 %v1149, 0.0
    %v1166 = vmax.f32 %v1150, 0.0
    %v1167 = vmax.f32 %v1151, 0.0
    %v1168 = vmax.f32 %v1152, 0.0
    %v1169 = vmax.f32 %v1153, 0.0
    %v1170 = vmul.f32 %v1089, %v1154
    %v1171 = vmul.f32 %v1090, %v1155
    %v1172 = vmul.f32 %v1091, %v1156
    %v1173 = vmul.f32 %v1092, %v1157
    %v1174 = vmul.f32 %v1093, %v1158
    %v1175 = vmul.f32 %v1094, %v1159
    %v1176 = vmul.f32 %v1095, %v1160
    %v1177 = vmul.f32 %v1096, %v1161
    %v1178 = vmul.f32 %v1097, %v1162
    %v1179 = vmul.f32 %v1098, %v1163
    %v1180 = vmul.f32 %v1099, %v1164
    %v1181 = vmul.f32 %v1100, %v1165
    %v1182 = vmul.f32 %v1101, %v1166
    %v1183 = vmul.f32 %v1102, %v1167
    %v1184 = vmul.f32 %v1103, %v1168
    %v1185 = vmul.f32 %v1104, %v1169
    %1186 = vmatpush.msra.mxu0 %v1185
    %1187 = vmatpush.msra.mxu0 %v1184
    %1188 = vmatpush.msra.mxu0 %v1183
    %1189 = vmatpush.msra.mxu0 %v1182
    %1190 = vmatpush.msra.mxu0 %v1181
    %1191 = vmatpush.msra.mxu0 %v1180
    %1192 = vmatpush.msra.mxu0 %v1179
    %1193 = vmatpush.msra.mxu0 %v1178
    %1194 = vmatpush.msra.mxu0 %v1177
    %1195 = vmatpush.msra.mxu0 %v1176
    %1196 = vmatpush.msra.mxu0 %v1175
    %1197 = vmatpush.msra.mxu0 %v1174
    %1198 = vmatpush.msra.mxu0 %v1173
    %1199 = vmatpush.msra.mxu0 %v1172
    %1200 = vmatpush.msra.mxu0 %v1171
    %1201 = vmatpush.msra.mxu0 %v1170
    %1202 = vmatmul.f32.gmra.mxu0 %v1014
    %v1203 = vpop.f32.mrf.mxu0
    %v1204 = vadd.f32 0.0, %v1203
    %1205 = vdwg.mxu0
    %v1206 = vperm.slane %v173, 1
    %v1207 = vmul.f32 %v1206, %v1204
    %v1208 = vadd.f32 %v1038, %v1207
    %v1209 = vperm.slane %v242, 2
    %v1210 = vsub.f32 %v1209, %v366
    %v1211 = vsub.f32 %v1209, %v371
    %v1212 = vsub.f32 %v1209, %v376
    %v1213 = vsub.f32 %v1209, %v381
    %v1214 = vsub.f32 %v1209, %v386
    %v1215 = vsub.f32 %v1209, %v391
    %v1216 = vsub.f32 %v1209, %v396
    %v1217 = vsub.f32 %v1209, %v401
    %v1218 = vsub.f32 %v1209, %v406
    %v1219 = vsub.f32 %v1209, %v411
    %v1220 = vsub.f32 %v1209, %v416
    %v1221 = vsub.f32 %v1209, %v421
    %v1222 = vsub.f32 %v1209, %v426
    %v1223 = vsub.f32 %v1209, %v431
    %v1224 = vsub.f32 %v1209, %v436
    %v1225 = vsub.f32 %v1209, %v441
    %v1226 = vand.u32 2147483647, %v1210
    %v1227 = vand.u32 2147483647, %v1211
    %v1228 = vand.u32 2147483647, %v1212
    %v1229 = vand.u32 2147483647, %v1213
    %v1230 = vand.u32 2147483647, %v1214
    %v1231 = vand.u32 2147483647, %v1215
    %v1232 = vand.u32 2147483647, %v1216
    %v1233 = vand.u32 2147483647, %v1217
    %v1234 = vand.u32 2147483647, %v1218
    %v1235 = vand.u32 2147483647, %v1219
    %v1236 = vand.u32 2147483647, %v1220
    %v1237 = vand.u32 2147483647, %v1221
    %v1238 = vand.u32 2147483647, %v1222
    %v1239 = vand.u32 2147483647, %v1223
    %v1240 = vand.u32 2147483647, %v1224
    %v1241 = vand.u32 2147483647, %v1225
    %v1242 = vsub.f32 1.0, %v1226
    %v1243 = vsub.f32 1.0, %v1227
    %v1244 = vsub.f32 1.0, %v1228
    %v1245 = vsub.f32 1.0, %v1229
    %v1246 = vsub.f32 1.0, %v1230
    %v1247 = vsub.f32 1.0, %v1231
    %v1248 = vsub.f32 1.0, %v1232
    %v1249 = vsub.f32 1.0, %v1233
    %v1250 = vsub.f32 1.0, %v1234
    %v1251 = vsub.f32 1.0, %v1235
    %v1252 = vsub.f32 1.0, %v1236
    %v1253 = vsub.f32 1.0, %v1237
    %v1254 = vsub.f32 1.0, %v1238
    %v1255 = vsub.f32 1.0, %v1239
    %v1256 = vsub.f32 1.0, %v1240
    %v1257 = vsub.f32 1.0, %v1241
    %v1258 = vmax.f32 %v1242, 0.0
    %v1259 = vmax.f32 %v1243, 0.0
    %v1260 = vmax.f32 %v1244, 0.0
    %v1261 = vmax.f32 %v1245, 0.0
    %v1262 = vmax.f32 %v1246, 0.0
    %v1263 = vmax.f32 %v1247, 0.0
    %v1264 = vmax.f32 %v1248, 0.0
    %v1265 = vmax.f32 %v1249, 0.0
    %v1266 = vmax.f32 %v1250, 0.0
    %v1267 = vmax.f32 %v1251, 0.0
    %v1268 = vmax.f32 %v1252, 0.0
    %v1269 = vmax.f32 %v1253, 0.0
    %v1270 = vmax.f32 %v1254, 0.0
    %v1271 = vmax.f32 %v1255, 0.0
    %v1272 = vmax.f32 %v1256, 0.0
    %v1273 = vmax.f32 %v1257, 0.0
    %v1274 = vperm.slane %v866, 2
    %v1275 = vsub.f32 %v1274, %v511
    %v1276 = vsub.f32 %v1274, %v516
    %v1277 = vsub.f32 %v1274, %v521
    %v1278 = vsub.f32 %v1274, %v526
    %v1279 = vsub.f32 %v1274, %v531
    %v1280 = vsub.f32 %v1274, %v536
    %v1281 = vsub.f32 %v1274, %v541
    %v1282 = vsub.f32 %v1274, %v546
    %v1283 = vsub.f32 %v1274, %v551
    %v1284 = vsub.f32 %v1274, %v556
    %v1285 = vsub.f32 %v1274, %v561
    %v1286 = vsub.f32 %v1274, %v566
    %v1287 = vsub.f32 %v1274, %v571
    %v1288 = vsub.f32 %v1274, %v576
    %v1289 = vsub.f32 %v1274, %v581
    %v1290 = vsub.f32 %v1274, %v586
    %v1291 = vand.u32 2147483647, %v1275
    %v1292 = vand.u32 2147483647, %v1276
    %v1293 = vand.u32 2147483647, %v1277
    %v1294 = vand.u32 2147483647, %v1278
    %v1295 = vand.u32 2147483647, %v1279
    %v1296 = vand.u32 2147483647, %v1280
    %v1297 = vand.u32 2147483647, %v1281
    %v1298 = vand.u32 2147483647, %v1282
    %v1299 = vand.u32 2147483647, %v1283
    %v1300 = vand.u32 2147483647, %v1284
    %v1301 = vand.u32 2147483647, %v1285
    %v1302 = vand.u32 2147483647, %v1286
    %v1303 = vand.u32 2147483647, %v1287
    %v1304 = vand.u32 2147483647, %v1288
    %v1305 = vand.u32 2147483647, %v1289
    %v1306 = vand.u32 2147483647, %v1290
    %v1307 = vsub.f32 1.0, %v1291
    %v1308 = vsub.f32 1.0, %v1292
    %v1309 = vsub.f32 1.0, %v1293
    %v1310 = vsub.f32 1.0, %v1294
    %v1311 = vsub.f32 1.0, %v1295
    %v1312 = vsub.f32 1.0, %v1296
    %v1313 = vsub.f32 1.0, %v1297
    %v1314 = vsub.f32 1.0, %v1298
    %v1315 = vsub.f32 1.0, %v1299
    %v1316 = vsub.f32 1.0, %v1300
    %v1317 = vsub.f32 1.0, %v1301
    %v1318 = vsub.f32 1.0, %v1302
    %v1319 = vsub.f32 1.0, %v1303
    %v1320 = vsub.f32 1.0, %v1304
    %v1321 = vsub.f32 1.0, %v1305
    %v1322 = vsub.f32 1.0, %v1306
    %v1323 = vmax.f32 %v1307, 0.0
    %v1324 = vmax.f32 %v1308, 0.0
    %v1325 = vmax.f32 %v1309, 0.0
    %v1326 = vmax.f32 %v1310, 0.0
    %v1327 = vmax.f32 %v1311, 0.0
    %v1328 = vmax.f32 %v1312, 0.0
    %v1329 = vmax.f32 %v1313, 0.0
    %v1330 = vmax.f32 %v1314, 0.0
    %v1331 = vmax.f32 %v1315, 0.0
    %v1332 = vmax.f32 %v1316, 0.0
    %v1333 = vmax.f32 %v1317, 0.0
    %v1334 = vmax.f32 %v1318, 0.0
    %v1335 = vmax.f32 %v1319, 0.0
    %v1336 = vmax.f32 %v1320, 0.0
    %v1337 = vmax.f32 %v1321, 0.0
    %v1338 = vmax.f32 %v1322, 0.0
    %v1339 = vmul.f32 %v1258, %v1323
    %v1340 = vmul.f32 %v1259, %v1324
    %v1341 = vmul.f32 %v1260, %v1325
    %v1342 = vmul.f32 %v1261, %v1326
    %v1343 = vmul.f32 %v1262, %v1327
    %v1344 = vmul.f32 %v1263, %v1328
    %v1345 = vmul.f32 %v1264, %v1329
    %v1346 = vmul.f32 %v1265, %v1330
    %v1347 = vmul.f32 %v1266, %v1331
    %v1348 = vmul.f32 %v1267, %v1332
    %v1349 = vmul.f32 %v1268, %v1333
    %v1350 = vmul.f32 %v1269, %v1334
    %v1351 = vmul.f32 %v1270, %v1335
    %v1352 = vmul.f32 %v1271, %v1336
    %v1353 = vmul.f32 %v1272, %v1337
    %v1354 = vmul.f32 %v1273, %v1338
    %1355 = vmatpush.msra.mxu0 %v1354
    %1356 = vmatpush.msra.mxu0 %v1353
    %1357 = vmatpush.msra.mxu0 %v1352
    %1358 = vmatpush.msra.mxu0 %v1351
    %1359 = vmatpush.msra.mxu0 %v1350
    %1360 = vmatpush.msra.mxu0 %v1349
    %1361 = vmatpush.msra.mxu0 %v1348
    %1362 = vmatpush.msra.mxu0 %v1347
    %1363 = vmatpush.msra.mxu0 %v1346
    %1364 = vmatpush.msra.mxu0 %v1345
    %1365 = vmatpush.msra.mxu0 %v1344
    %1366 = vmatpush.msra.mxu0 %v1343
    %1367 = vmatpush.msra.mxu0 %v1342
    %1368 = vmatpush.msra.mxu0 %v1341
    %1369 = vmatpush.msra.mxu0 %v1340
    %1370 = vmatpush.msra.mxu0 %v1339
    %1371 = vmatmul.f32.gmra.mxu0 %v318
    %v1372 = vpop.f32.mrf.mxu0
    %v1373 = vadd.f32 0.0, %v1372
    %1374 = vdwg.mxu0
    %v1375 = vperm.slane %v158, 2
    %v1376 = vmul.f32 %v1375, %v1373
    %v1377 = vadd.f32 %v1376, 0.0
    %v1378 = vperm.slane %v245, 2
    %v1379 = vsub.f32 %v1378, %v366
    %v1380 = vsub.f32 %v1378, %v371
    %v1381 = vsub.f32 %v1378, %v376
    %v1382 = vsub.f32 %v1378, %v381
    %v1383 = vsub.f32 %v1378, %v386
    %v1384 = vsub.f32 %v1378, %v391
    %v1385 = vsub.f32 %v1378, %v396
    %v1386 = vsub.f32 %v1378, %v401
    %v1387 = vsub.f32 %v1378, %v406
    %v1388 = vsub.f32 %v1378, %v411
    %v1389 = vsub.f32 %v1378, %v416
    %v1390 = vsub.f32 %v1378, %v421
    %v1391 = vsub.f32 %v1378, %v426
    %v1392 = vsub.f32 %v1378, %v431
    %v1393 = vsub.f32 %v1378, %v436
    %v1394 = vsub.f32 %v1378, %v441
    %v1395 = vand.u32 2147483647, %v1379
    %v1396 = vand.u32 2147483647, %v1380
    %v1397 = vand.u32 2147483647, %v1381
    %v1398 = vand.u32 2147483647, %v1382
    %v1399 = vand.u32 2147483647, %v1383
    %v1400 = vand.u32 2147483647, %v1384
    %v1401 = vand.u32 2147483647, %v1385
    %v1402 = vand.u32 2147483647, %v1386
    %v1403 = vand.u32 2147483647, %v1387
    %v1404 = vand.u32 2147483647, %v1388
    %v1405 = vand.u32 2147483647, %v1389
    %v1406 = vand.u32 2147483647, %v1390
    %v1407 = vand.u32 2147483647, %v1391
    %v1408 = vand.u32 2147483647, %v1392
    %v1409 = vand.u32 2147483647, %v1393
    %v1410 = vand.u32 2147483647, %v1394
    %v1411 = vsub.f32 1.0, %v1395
    %v1412 = vsub.f32 1.0, %v1396
    %v1413 = vsub.f32 1.0, %v1397
    %v1414 = vsub.f32 1.0, %v1398
    %v1415 = vsub.f32 1.0, %v1399
    %v1416 = vsub.f32 1.0, %v1400
    %v1417 = vsub.f32 1.0, %v1401
    %v1418 = vsub.f32 1.0, %v1402
    %v1419 = vsub.f32 1.0, %v1403
    %v1420 = vsub.f32 1.0, %v1404
    %v1421 = vsub.f32 1.0, %v1405
    %v1422 = vsub.f32 1.0, %v1406
    %v1423 = vsub.f32 1.0, %v1407
    %v1424 = vsub.f32 1.0, %v1408
    %v1425 = vsub.f32 1.0, %v1409
    %v1426 = vsub.f32 1.0, %v1410
    %v1427 = vmax.f32 %v1411, 0.0
    %v1428 = vmax.f32 %v1412, 0.0
    %v1429 = vmax.f32 %v1413, 0.0
    %v1430 = vmax.f32 %v1414, 0.0
    %v1431 = vmax.f32 %v1415, 0.0
    %v1432 = vmax.f32 %v1416, 0.0
    %v1433 = vmax.f32 %v1417, 0.0
    %v1434 = vmax.f32 %v1418, 0.0
    %v1435 = vmax.f32 %v1419, 0.0
    %v1436 = vmax.f32 %v1420, 0.0
    %v1437 = vmax.f32 %v1421, 0.0
    %v1438 = vmax.f32 %v1422, 0.0
    %v1439 = vmax.f32 %v1423, 0.0
    %v1440 = vmax.f32 %v1424, 0.0
    %v1441 = vmax.f32 %v1425, 0.0
    %v1442 = vmax.f32 %v1426, 0.0
    %v1443 = vperm.slane %v1039, 2
    %v1444 = vsub.f32 %v1443, %v511
    %v1445 = vsub.f32 %v1443, %v516
    %v1446 = vsub.f32 %v1443, %v521
    %v1447 = vsub.f32 %v1443, %v526
    %v1448 = vsub.f32 %v1443, %v531
    %v1449 = vsub.f32 %v1443, %v536
    %v1450 = vsub.f32 %v1443, %v541
    %v1451 = vsub.f32 %v1443, %v546
    %v1452 = vsub.f32 %v1443, %v551
    %v1453 = vsub.f32 %v1443, %v556
    %v1454 = vsub.f32 %v1443, %v561
    %v1455 = vsub.f32 %v1443, %v566
    %v1456 = vsub.f32 %v1443, %v571
    %v1457 = vsub.f32 %v1443, %v576
    %v1458 = vsub.f32 %v1443, %v581
    %v1459 = vsub.f32 %v1443, %v586
    %v1460 = vand.u32 2147483647, %v1444
    %v1461 = vand.u32 2147483647, %v1445
    %v1462 = vand.u32 2147483647, %v1446
    %v1463 = vand.u32 2147483647, %v1447
    %v1464 = vand.u32 2147483647, %v1448
    %v1465 = vand.u32 2147483647, %v1449
    %v1466 = vand.u32 2147483647, %v1450
    %v1467 = vand.u32 2147483647, %v1451
    %v1468 = vand.u32 2147483647, %v1452
    %v1469 = vand.u32 2147483647, %v1453
    %v1470 = vand.u32 2147483647, %v1454
    %v1471 = vand.u32 2147483647, %v1455
    %v1472 = vand.u32 2147483647, %v1456
    %v1473 = vand.u32 2147483647, %v1457
    %v1474 = vand.u32 2147483647, %v1458
    %v1475 = vand.u32 2147483647, %v1459
    %v1476 = vsub.f32 1.0, %v1460
    %v1477 = vsub.f32 1.0, %v1461
    %v1478 = vsub.f32 1.0, %v1462
    %v1479 = vsub.f32 1.0, %v1463
    %v1480 = vsub.f32 1.0, %v1464
    %v1481 = vsub.f32 1.0, %v1465
    %v1482 = vsub.f32 1.0, %v1466
    %v1483 = vsub.f32 1.0, %v1467
    %v1484 = vsub.f32 1.0, %v1468
    %v1485 = vsub.f32 1.0, %v1469
    %v1486 = vsub.f32 1.0, %v1470
    %v1487 = vsub.f32 1.0, %v1471
    %v1488 = vsub.f32 1.0, %v1472
    %v1489 = vsub.f32 1.0, %v1473
    %v1490 = vsub.f32 1.0, %v1474
    %v1491 = vsub.f32 1.0, %v1475
    %v1492 = vmax.f32 %v1476, 0.0
    %v1493 = vmax.f32 %v1477, 0.0
    %v1494 = vmax.f32 %v1478, 0.0
    %v1495 = vmax.f32 %v1479, 0.0
    %v1496 = vmax.f32 %v1480, 0.0
    %v1497 = vmax.f32 %v1481, 0.0
    %v1498 = vmax.f32 %v1482, 0.0
    %v1499 = vmax.f32 %v1483, 0.0
    %v1500 = vmax.f32 %v1484, 0.0
    %v1501 = vmax.f32 %v1485, 0.0
    %v1502 = vmax.f32 %v1486, 0.0
    %v1503 = vmax.f32 %v1487, 0.0
    %v1504 = vmax.f32 %v1488, 0.0
    %v1505 = vmax.f32 %v1489, 0.0
    %v1506 = vmax.f32 %v1490, 0.0
    %v1507 = vmax.f32 %v1491, 0.0
    %v1508 = vmul.f32 %v1427, %v1492
    %v1509 = vmul.f32 %v1428, %v1493
    %v1510 = vmul.f32 %v1429, %v1494
    %v1511 = vmul.f32 %v1430, %v1495
    %v1512 = vmul.f32 %v1431, %v1496
    %v1513 = vmul.f32 %v1432, %v1497
    %v1514 = vmul.f32 %v1433, %v1498
    %v1515 = vmul.f32 %v1434, %v1499
    %v1516 = vmul.f32 %v1435, %v1500
    %v1517 = vmul.f32 %v1436, %v1501
    %v1518 = vmul.f32 %v1437, %v1502
    %v1519 = vmul.f32 %v1438, %v1503
    %v1520 = vmul.f32 %v1439, %v1504
    %v1521 = vmul.f32 %v1440, %v1505
    %v1522 = vmul.f32 %v1441, %v1506
    %v1523 = vmul.f32 %v1442, %v1507
    %1524 = vmatpush.msra.mxu0 %v1523
    %1525 = vmatpush.msra.mxu0 %v1522
    %1526 = vmatpush.msra.mxu0 %v1521
    %1527 = vmatpush.msra.mxu0 %v1520
    %1528 = vmatpush.msra.mxu0 %v1519
    %1529 = vmatpush.msra.mxu0 %v1518
    %1530 = vmatpush.msra.mxu0 %v1517
    %1531 = vmatpush.msra.mxu0 %v1516
    %1532 = vmatpush.msra.mxu0 %v1515
    %1533 = vmatpush.msra.mxu0 %v1514
    %1534 = vmatpush.msra.mxu0 %v1513
    %1535 = vmatpush.msra.mxu0 %v1512
    %1536 = vmatpush.msra.mxu0 %v1511
    %1537 = vmatpush.msra.mxu0 %v1510
    %1538 = vmatpush.msra.mxu0 %v1509
    %1539 = vmatpush.msra.mxu0 %v1508
    %1540 = vmatmul.f32.gmra.mxu0 %v318
    %v1541 = vpop.f32.mrf.mxu0
    %v1542 = vadd.f32 0.0, %v1541
    %1543 = vdwg.mxu0
    %v1544 = vperm.slane %v173, 2
    %v1545 = vmul.f32 %v1544, %v1542
    %v1546 = vadd.f32 %v1377, %v1545
    %v1547 = vperm.slane %v242, 3
    %v1548 = vsub.f32 %v1547, %v366
    %v1549 = vsub.f32 %v1547, %v371
    %v1550 = vsub.f32 %v1547, %v376
    %v1551 = vsub.f32 %v1547, %v381
    %v1552 = vsub.f32 %v1547, %v386
    %v1553 = vsub.f32 %v1547, %v391
    %v1554 = vsub.f32 %v1547, %v396
    %v1555 = vsub.f32 %v1547, %v401
    %v1556 = vsub.f32 %v1547, %v406
    %v1557 = vsub.f32 %v1547, %v411
    %v1558 = vsub.f32 %v1547, %v416
    %v1559 = vsub.f32 %v1547, %v421
    %v1560 = vsub.f32 %v1547, %v426
    %v1561 = vsub.f32 %v1547, %v431
    %v1562 = vsub.f32 %v1547, %v436
    %v1563 = vsub.f32 %v1547, %v441
    %v1564 = vand.u32 2147483647, %v1548
    %v1565 = vand.u32 2147483647, %v1549
    %v1566 = vand.u32 2147483647, %v1550
    %v1567 = vand.u32 2147483647, %v1551
    %v1568 = vand.u32 2147483647, %v1552
    %v1569 = vand.u32 2147483647, %v1553
    %v1570 = vand.u32 2147483647, %v1554
    %v1571 = vand.u32 2147483647, %v1555
    %v1572 = vand.u32 2147483647, %v1556
    %v1573 = vand.u32 2147483647, %v1557
    %v1574 = vand.u32 2147483647, %v1558
    %v1575 = vand.u32 2147483647, %v1559
    %v1576 = vand.u32 2147483647, %v1560
    %v1577 = vand.u32 2147483647, %v1561
    %v1578 = vand.u32 2147483647, %v1562
    %v1579 = vand.u32 2147483647, %v1563
    %v1580 = vsub.f32 1.0, %v1564
    %v1581 = vsub.f32 1.0, %v1565
    %v1582 = vsub.f32 1.0, %v1566
    %v1583 = vsub.f32 1.0, %v1567
    %v1584 = vsub.f32 1.0, %v1568
    %v1585 = vsub.f32 1.0, %v1569
    %v1586 = vsub.f32 1.0, %v1570
    %v1587 = vsub.f32 1.0, %v1571
    %v1588 = vsub.f32 1.0, %v1572
    %v1589 = vsub.f32 1.0, %v1573
    %v1590 = vsub.f32 1.0, %v1574
    %v1591 = vsub.f32 1.0, %v1575
    %v1592 = vsub.f32 1.0, %v1576
    %v1593 = vsub.f32 1.0, %v1577
    %v1594 = vsub.f32 1.0, %v1578
    %v1595 = vsub.f32 1.0, %v1579
    %v1596 = vmax.f32 %v1580, 0.0
    %v1597 = vmax.f32 %v1581, 0.0
    %v1598 = vmax.f32 %v1582, 0.0
    %v1599 = vmax.f32 %v1583, 0.0
    %v1600 = vmax.f32 %v1584, 0.0
    %v1601 = vmax.f32 %v1585, 0.0
    %v1602 = vmax.f32 %v1586, 0.0
    %v1603 = vmax.f32 %v1587, 0.0
    %v1604 = vmax.f32 %v1588, 0.0
    %v1605 = vmax.f32 %v1589, 0.0
    %v1606 = vmax.f32 %v1590, 0.0
    %v1607 = vmax.f32 %v1591, 0.0
    %v1608 = vmax.f32 %v1592, 0.0
    %v1609 = vmax.f32 %v1593, 0.0
    %v1610 = vmax.f32 %v1594, 0.0
    %v1611 = vmax.f32 %v1595, 0.0
    %v1612 = vperm.slane %v866, 3
    %v1613 = vsub.f32 %v1612, %v511
    %v1614 = vsub.f32 %v1612, %v516
    %v1615 = vsub.f32 %v1612, %v521
    %v1616 = vsub.f32 %v1612, %v526
    %v1617 = vsub.f32 %v1612, %v531
    %v1618 = vsub.f32 %v1612, %v536
    %v1619 = vsub.f32 %v1612, %v541
    %v1620 = vsub.f32 %v1612, %v546
    %v1621 = vsub.f32 %v1612, %v551
    %v1622 = vsub.f32 %v1612, %v556
    %v1623 = vsub.f32 %v1612, %v561
    %v1624 = vsub.f32 %v1612, %v566
    %v1625 = vsub.f32 %v1612, %v571
    %v1626 = vsub.f32 %v1612, %v576
    %v1627 = vsub.f32 %v1612, %v581
    %v1628 = vsub.f32 %v1612, %v586
    %v1629 = vand.u32 2147483647, %v1613
    %v1630 = vand.u32 2147483647, %v1614
    %v1631 = vand.u32 2147483647, %v1615
    %v1632 = vand.u32 2147483647, %v1616
    %v1633 = vand.u32 2147483647, %v1617
    %v1634 = vand.u32 2147483647, %v1618
    %v1635 = vand.u32 2147483647, %v1619
    %v1636 = vand.u32 2147483647, %v1620
    %v1637 = vand.u32 2147483647, %v1621
    %v1638 = vand.u32 2147483647, %v1622
    %v1639 = vand.u32 2147483647, %v1623
    %v1640 = vand.u32 2147483647, %v1624
    %v1641 = vand.u32 2147483647, %v1625
    %v1642 = vand.u32 2147483647, %v1626
    %v1643 = vand.u32 2147483647, %v1627
    %v1644 = vand.u32 2147483647, %v1628
    %v1645 = vsub.f32 1.0, %v1629
    %v1646 = vsub.f32 1.0, %v1630
    %v1647 = vsub.f32 1.0, %v1631
    %v1648 = vsub.f32 1.0, %v1632
    %v1649 = vsub.f32 1.0, %v1633
    %v1650 = vsub.f32 1.0, %v1634
    %v1651 = vsub.f32 1.0, %v1635
    %v1652 = vsub.f32 1.0, %v1636
    %v1653 = vsub.f32 1.0, %v1637
    %v1654 = vsub.f32 1.0, %v1638
    %v1655 = vsub.f32 1.0, %v1639
    %v1656 = vsub.f32 1.0, %v1640
    %v1657 = vsub.f32 1.0, %v1641
    %v1658 = vsub.f32 1.0, %v1642
    %v1659 = vsub.f32 1.0, %v1643
    %v1660 = vsub.f32 1.0, %v1644
    %v1661 = vmax.f32 %v1645, 0.0
    %v1662 = vmax.f32 %v1646, 0.0
    %v1663 = vmax.f32 %v1647, 0.0
    %v1664 = vmax.f32 %v1648, 0.0
    %v1665 = vmax.f32 %v1649, 0.0
    %v1666 = vmax.f32 %v1650, 0.0
    %v1667 = vmax.f32 %v1651, 0.0
    %v1668 = vmax.f32 %v1652, 0.0
    %v1669 = vmax.f32 %v1653, 0.0
    %v1670 = vmax.f32 %v1654, 0.0
    %v1671 = vmax.f32 %v1655, 0.0
    %v1672 = vmax.f32 %v1656, 0.0
    %v1673 = vmax.f32 %v1657, 0.0
    %v1674 = vmax.f32 %v1658, 0.0
    %v1675 = vmax.f32 %v1659, 0.0
    %v1676 = vmax.f32 %v1660, 0.0
    %v1677 = vmul.f32 %v1596, %v1661
    %v1678 = vmul.f32 %v1597, %v1662
    %v1679 = vmul.f32 %v1598, %v1663
    %v1680 = vmul.f32 %v1599, %v1664
    %v1681 = vmul.f32 %v1600, %v1665
    %v1682 = vmul.f32 %v1601, %v1666
    %v1683 = vmul.f32 %v1602, %v1667
    %v1684 = vmul.f32 %v1603, %v1668
    %v1685 = vmul.f32 %v1604, %v1669
    %v1686 = vmul.f32 %v1605, %v1670
    %v1687 = vmul.f32 %v1606, %v1671
    %v1688 = vmul.f32 %v1607, %v1672
    %v1689 = vmul.f32 %v1608, %v1673
    %v1690 = vmul.f32 %v1609, %v1674
    %v1691 = vmul.f32 %v1610, %v1675
    %v1692 = vmul.f32 %v1611, %v1676
    %v1694 = vrot.slane %v318, 4
    %1696 = vmatpush.msra.mxu0 %v1692
    %1697 = vmatpush.msra.mxu0 %v1691
    %1698 = vmatpush.msra.mxu0 %v1690
    %1699 = vmatpush.msra.mxu0 %v1689
    %1700 = vmatpush.msra.mxu0 %v1688
    %1701 = vmatpush.msra.mxu0 %v1687
    %1702 = vmatpush.msra.mxu0 %v1686
    %1703 = vmatpush.msra.mxu0 %v1685
    %1704 = vmatpush.msra.mxu0 %v1684
    %1705 = vmatpush.msra.mxu0 %v1683
    %1706 = vmatpush.msra.mxu0 %v1682
    %1707 = vmatpush.msra.mxu0 %v1681
    %1708 = vmatpush.msra.mxu0 %v1680
    %1709 = vmatpush.msra.mxu0 %v1679
    %1710 = vmatpush.msra.mxu0 %v1678
    %1711 = vmatpush.msra.mxu0 %v1677
    %1712 = vmatmul.f32.gmra.mxu0 %v1694
    %v1713 = vpop.f32.mrf.mxu0
    %v1714 = vadd.f32 0.0, %v1713
    %1715 = vdwg.mxu0
    %v1716 = vperm.slane %v158, 3
    %v1717 = vmul.f32 %v1716, %v1714
    %v1718 = vadd.f32 %v1717, 0.0
    %v1719 = vperm.slane %v245, 3
    %v1720 = vsub.f32 %v1719, %v366
    %v1721 = vsub.f32 %v1719, %v371
    %v1722 = vsub.f32 %v1719, %v376
    %v1723 = vsub.f32 %v1719, %v381
    %v1724 = vsub.f32 %v1719, %v386
    %v1725 = vsub.f32 %v1719, %v391
    %v1726 = vsub.f32 %v1719, %v396
    %v1727 = vsub.f32 %v1719, %v401
    %v1728 = vsub.f32 %v1719, %v406
    %v1729 = vsub.f32 %v1719, %v411
    %v1730 = vsub.f32 %v1719, %v416
    %v1731 = vsub.f32 %v1719, %v421
    %v1732 = vsub.f32 %v1719, %v426
    %v1733 = vsub.f32 %v1719, %v431
    %v1734 = vsub.f32 %v1719, %v436
    %v1735 = vsub.f32 %v1719, %v441
    %v1736 = vand.u32 2147483647, %v1720
    %v1737 = vand.u32 2147483647, %v1721
    %v1738 = vand.u32 2147483647, %v1722
    %v1739 = vand.u32 2147483647, %v1723
    %v1740 = vand.u32 2147483647, %v1724
    %v1741 = vand.u32 2147483647, %v1725
    %v1742 = vand.u32 2147483647, %v1726
    %v1743 = vand.u32 2147483647, %v1727
    %v1744 = vand.u32 2147483647, %v1728
    %v1745 = vand.u32 2147483647, %v1729
    %v1746 = vand.u32 2147483647, %v1730
    %v1747 = vand.u32 2147483647, %v1731
    %v1748 = vand.u32 2147483647, %v1732
    %v1749 = vand.u32 2147483647, %v1733
    %v1750 = vand.u32 2147483647, %v1734
    %v1751 = vand.u32 2147483647, %v1735
    %v1752 = vsub.f32 1.0, %v1736
    %v1753 = vsub.f32 1.0, %v1737
    %v1754 = vsub.f32 1.0, %v1738
    %v1755 = vsub.f32 1.0, %v1739
    %v1756 = vsub.f32 1.0, %v1740
    %v1757 = vsub.f32 1.0, %v1741
    %v1758 = vsub.f32 1.0, %v1742
    %v1759 = vsub.f32 1.0, %v1743
    %v1760 = vsub.f32 1.0, %v1744
    %v1761 = vsub.f32 1.0, %v1745
    %v1762 = vsub.f32 1.0, %v1746
    %v1763 = vsub.f32 1.0, %v1747
    %v1764 = vsub.f32 1.0, %v1748
    %v1765 = vsub.f32 1.0, %v1749
    %v1766 = vsub.f32 1.0, %v1750
    %v1767 = vsub.f32 1.0, %v1751
    %v1768 = vmax.f32 %v1752, 0.0
    %v1769 = vmax.f32 %v1753, 0.0
    %v1770 = vmax.f32 %v1754, 0.0
    %v1771 = vmax.f32 %v1755, 0.0
    %v1772 = vmax.f32 %v1756, 0.0
    %v1773 = vmax.f32 %v1757, 0.0
    %v1774 = vmax.f32 %v1758, 0.0
    %v1775 = vmax.f32 %v1759, 0.0
    %v1776 = vmax.f32 %v1760, 0.0
    %v1777 = vmax.f32 %v1761, 0.0
    %v1778 = vmax.f32 %v1762, 0.0
    %v1779 = vmax.f32 %v1763, 0.0
    %v1780 = vmax.f32 %v1764, 0.0
    %v1781 = vmax.f32 %v1765, 0.0
    %v1782 = vmax.f32 %v1766, 0.0
    %v1783 = vmax.f32 %v1767, 0.0
    %v1784 = vperm.slane %v1039, 3
    %v1785 = vsub.f32 %v1784, %v511
    %v1786 = vsub.f32 %v1784, %v516
    %v1787 = vsub.f32 %v1784, %v521
    %v1788 = vsub.f32 %v1784, %v526
    %v1789 = vsub.f32 %v1784, %v531
    %v1790 = vsub.f32 %v1784, %v536
    %v1791 = vsub.f32 %v1784, %v541
    %v1792 = vsub.f32 %v1784, %v546
    %v1793 = vsub.f32 %v1784, %v551
    %v1794 = vsub.f32 %v1784, %v556
    %v1795 = vsub.f32 %v1784, %v561
    %v1796 = vsub.f32 %v1784, %v566
    %v1797 = vsub.f32 %v1784, %v571
    %v1798 = vsub.f32 %v1784, %v576
    %v1799 = vsub.f32 %v1784, %v581
    %v1800 = vsub.f32 %v1784, %v586
    %v1801 = vand.u32 2147483647, %v1785
    %v1802 = vand.u32 2147483647, %v1786
    %v1803 = vand.u32 2147483647, %v1787
    %v1804 = vand.u32 2147483647, %v1788
    %v1805 = vand.u32 2147483647, %v1789
    %v1806 = vand.u32 2147483647, %v1790
    %v1807 = vand.u32 2147483647, %v1791
    %v1808 = vand.u32 2147483647, %v1792
    %v1809 = vand.u32 2147483647, %v1793
    %v1810 = vand.u32 2147483647, %v1794
    %v1811 = vand.u32 2147483647, %v1795
    %v1812 = vand.u32 2147483647, %v1796
    %v1813 = vand.u32 2147483647, %v1797
    %v1814 = vand.u32 2147483647, %v1798
    %v1815 = vand.u32 2147483647, %v1799
    %v1816 = vand.u32 2147483647, %v1800
    %v1817 = vsub.f32 1.0, %v1801
    %v1818 = vsub.f32 1.0, %v1802
    %v1819 = vsub.f32 1.0, %v1803
    %v1820 = vsub.f32 1.0, %v1804
    %v1821 = vsub.f32 1.0, %v1805
    %v1822 = vsub.f32 1.0, %v1806
    %v1823 = vsub.f32 1.0, %v1807
    %v1824 = vsub.f32 1.0, %v1808
    %v1825 = vsub.f32 1.0, %v1809
    %v1826 = vsub.f32 1.0, %v1810
    %v1827 = vsub.f32 1.0, %v1811
    %v1828 = vsub.f32 1.0, %v1812
    %v1829 = vsub.f32 1.0, %v1813
    %v1830 = vsub.f32 1.0, %v1814
    %v1831 = vsub.f32 1.0, %v1815
    %v1832 = vsub.f32 1.0, %v1816
    %v1833 = vmax.f32 %v1817, 0.0
    %v1834 = vmax.f32 %v1818, 0.0
    %v1835 = vmax.f32 %v1819, 0.0
    %v1836 = vmax.f32 %v1820, 0.0
    %v1837 = vmax.f32 %v1821, 0.0
    %v1838 = vmax.f32 %v1822, 0.0
    %v1839 = vmax.f32 %v1823, 0.0
    %v1840 = vmax.f32 %v1824, 0.0
    %v1841 = vmax.f32 %v1825, 0.0
    %v1842 = vmax.f32 %v1826, 0.0
    %v1843 = vmax.f32 %v1827, 0.0
    %v1844 = vmax.f32 %v1828, 0.0
    %v1845 = vmax.f32 %v1829, 0.0
    %v1846 = vmax.f32 %v1830, 0.0
    %v1847 = vmax.f32 %v1831, 0.0
    %v1848 = vmax.f32 %v1832, 0.0
    %v1849 = vmul.f32 %v1768, %v1833
    %v1850 = vmul.f32 %v1769, %v1834
    %v1851 = vmul.f32 %v1770, %v1835
    %v1852 = vmul.f32 %v1771, %v1836
    %v1853 = vmul.f32 %v1772, %v1837
    %v1854 = vmul.f32 %v1773, %v1838
    %v1855 = vmul.f32 %v1774, %v1839
    %v1856 = vmul.f32 %v1775, %v1840
    %v1857 = vmul.f32 %v1776, %v1841
    %v1858 = vmul.f32 %v1777, %v1842
    %v1859 = vmul.f32 %v1778, %v1843
    %v1860 = vmul.f32 %v1779, %v1844
    %v1861 = vmul.f32 %v1780, %v1845
    %v1862 = vmul.f32 %v1781, %v1846
    %v1863 = vmul.f32 %v1782, %v1847
    %v1864 = vmul.f32 %v1783, %v1848
    %1865 = vmatpush.msra.mxu0 %v1864
    %1866 = vmatpush.msra.mxu0 %v1863
    %1867 = vmatpush.msra.mxu0 %v1862
    %1868 = vmatpush.msra.mxu0 %v1861
    %1869 = vmatpush.msra.mxu0 %v1860
    %1870 = vmatpush.msra.mxu0 %v1859
    %1871 = vmatpush.msra.mxu0 %v1858
    %1872 = vmatpush.msra.mxu0 %v1857
    %1873 = vmatpush.msra.mxu0 %v1856
    %1874 = vmatpush.msra.mxu0 %v1855
    %1875 = vmatpush.msra.mxu0 %v1854
    %1876 = vmatpush.msra.mxu0 %v1853
    %1877 = vmatpush.msra.mxu0 %v1852
    %1878 = vmatpush.msra.mxu0 %v1851
    %1879 = vmatpush.msra.mxu0 %v1850
    %1880 = vmatpush.msra.mxu0 %v1849
    %1881 = vmatmul.f32.gmra.mxu0 %v1694
    %v1882 = vpop.f32.mrf.mxu0
    %v1883 = vadd.f32 0.0, %v1882
    %1884 = vdwg.mxu0
    %v1885 = vperm.slane %v173, 3
    %v1886 = vmul.f32 %v1885, %v1883
    %v1887 = vadd.f32 %v1718, %v1886
    %v1888 = vperm.slane %v242, 4
    %v1889 = vsub.f32 %v1888, %v366
    %v1890 = vsub.f32 %v1888, %v371
    %v1891 = vsub.f32 %v1888, %v376
    %v1892 = vsub.f32 %v1888, %v381
    %v1893 = vsub.f32 %v1888, %v386
    %v1894 = vsub.f32 %v1888, %v391
    %v1895 = vsub.f32 %v1888, %v396
    %v1896 = vsub.f32 %v1888, %v401
    %v1897 = vsub.f32 %v1888, %v406
    %v1898 = vsub.f32 %v1888, %v411
    %v1899 = vsub.f32 %v1888, %v416
    %v1900 = vsub.f32 %v1888, %v421
    %v1901 = vsub.f32 %v1888, %v426
    %v1902 = vsub.f32 %v1888, %v431
    %v1903 = vsub.f32 %v1888, %v436
    %v1904 = vsub.f32 %v1888, %v441
    %v1905 = vand.u32 2147483647, %v1889
    %v1906 = vand.u32 2147483647, %v1890
    %v1907 = vand.u32 2147483647, %v1891
    %v1908 = vand.u32 2147483647, %v1892
    %v1909 = vand.u32 2147483647, %v1893
    %v1910 = vand.u32 2147483647, %v1894
    %v1911 = vand.u32 2147483647, %v1895
    %v1912 = vand.u32 2147483647, %v1896
    %v1913 = vand.u32 2147483647, %v1897
    %v1914 = vand.u32 2147483647, %v1898
    %v1915 = vand.u32 2147483647, %v1899
    %v1916 = vand.u32 2147483647, %v1900
    %v1917 = vand.u32 2147483647, %v1901
    %v1918 = vand.u32 2147483647, %v1902
    %v1919 = vand.u32 2147483647, %v1903
    %v1920 = vand.u32 2147483647, %v1904
    %v1921 = vsub.f32 1.0, %v1905
    %v1922 = vsub.f32 1.0, %v1906
    %v1923 = vsub.f32 1.0, %v1907
    %v1924 = vsub.f32 1.0, %v1908
    %v1925 = vsub.f32 1.0, %v1909
    %v1926 = vsub.f32 1.0, %v1910
    %v1927 = vsub.f32 1.0, %v1911
    %v1928 = vsub.f32 1.0, %v1912
    %v1929 = vsub.f32 1.0, %v1913
    %v1930 = vsub.f32 1.0, %v1914
    %v1931 = vsub.f32 1.0, %v1915
    %v1932 = vsub.f32 1.0, %v1916
    %v1933 = vsub.f32 1.0, %v1917
    %v1934 = vsub.f32 1.0, %v1918
    %v1935 = vsub.f32 1.0, %v1919
    %v1936 = vsub.f32 1.0, %v1920
    %v1937 = vmax.f32 %v1921, 0.0
    %v1938 = vmax.f32 %v1922, 0.0
    %v1939 = vmax.f32 %v1923, 0.0
    %v1940 = vmax.f32 %v1924, 0.0
    %v1941 = vmax.f32 %v1925, 0.0
    %v1942 = vmax.f32 %v1926, 0.0
    %v1943 = vmax.f32 %v1927, 0.0
    %v1944 = vmax.f32 %v1928, 0.0
    %v1945 = vmax.f32 %v1929, 0.0
    %v1946 = vmax.f32 %v1930, 0.0
    %v1947 = vmax.f32 %v1931, 0.0
    %v1948 = vmax.f32 %v1932, 0.0
    %v1949 = vmax.f32 %v1933, 0.0
    %v1950 = vmax.f32 %v1934, 0.0
    %v1951 = vmax.f32 %v1935, 0.0
    %v1952 = vmax.f32 %v1936, 0.0
    %v1953 = vperm.slane %v866, 4
    %v1954 = vsub.f32 %v1953, %v511
    %v1955 = vsub.f32 %v1953, %v516
    %v1956 = vsub.f32 %v1953, %v521
    %v1957 = vsub.f32 %v1953, %v526
    %v1958 = vsub.f32 %v1953, %v531
    %v1959 = vsub.f32 %v1953, %v536
    %v1960 = vsub.f32 %v1953, %v541
    %v1961 = vsub.f32 %v1953, %v546
    %v1962 = vsub.f32 %v1953, %v551
    %v1963 = vsub.f32 %v1953, %v556
    %v1964 = vsub.f32 %v1953, %v561
    %v1965 = vsub.f32 %v1953, %v566
    %v1966 = vsub.f32 %v1953, %v571
    %v1967 = vsub.f32 %v1953, %v576
    %v1968 = vsub.f32 %v1953, %v581
    %v1969 = vsub.f32 %v1953, %v586
    %v1970 = vand.u32 2147483647, %v1954
    %v1971 = vand.u32 2147483647, %v1955
    %v1972 = vand.u32 2147483647, %v1956
    %v1973 = vand.u32 2147483647, %v1957
    %v1974 = vand.u32 2147483647, %v1958
    %v1975 = vand.u32 2147483647, %v1959
    %v1976 = vand.u32 2147483647, %v1960
    %v1977 = vand.u32 2147483647, %v1961
    %v1978 = vand.u32 2147483647, %v1962
    %v1979 = vand.u32 2147483647, %v1963
    %v1980 = vand.u32 2147483647, %v1964
    %v1981 = vand.u32 2147483647, %v1965
    %v1982 = vand.u32 2147483647, %v1966
    %v1983 = vand.u32 2147483647, %v1967
    %v1984 = vand.u32 2147483647, %v1968
    %v1985 = vand.u32 2147483647, %v1969
    %v1986 = vsub.f32 1.0, %v1970
    %v1987 = vsub.f32 1.0, %v1971
    %v1988 = vsub.f32 1.0, %v1972
    %v1989 = vsub.f32 1.0, %v1973
    %v1990 = vsub.f32 1.0, %v1974
    %v1991 = vsub.f32 1.0, %v1975
    %v1992 = vsub.f32 1.0, %v1976
    %v1993 = vsub.f32 1.0, %v1977
    %v1994 = vsub.f32 1.0, %v1978
    %v1995 = vsub.f32 1.0, %v1979
    %v1996 = vsub.f32 1.0, %v1980
    %v1997 = vsub.f32 1.0, %v1981
    %v1998 = vsub.f32 1.0, %v1982
    %v1999 = vsub.f32 1.0, %v1983
    %v2000 = vsub.f32 1.0, %v1984
    %v2001 = vsub.f32 1.0, %v1985
    %v2002 = vmax.f32 %v1986, 0.0
    %v2003 = vmax.f32 %v1987, 0.0
    %v2004 = vmax.f32 %v1988, 0.0
    %v2005 = vmax.f32 %v1989, 0.0
    %v2006 = vmax.f32 %v1990, 0.0
    %v2007 = vmax.f32 %v1991, 0.0
    %v2008 = vmax.f32 %v1992, 0.0
    %v2009 = vmax.f32 %v1993, 0.0
    %v2010 = vmax.f32 %v1994, 0.0
    %v2011 = vmax.f32 %v1995, 0.0
    %v2012 = vmax.f32 %v1996, 0.0
    %v2013 = vmax.f32 %v1997, 0.0
    %v2014 = vmax.f32 %v1998, 0.0
    %v2015 = vmax.f32 %v1999, 0.0
    %v2016 = vmax.f32 %v2000, 0.0
    %v2017 = vmax.f32 %v2001, 0.0
    %v2018 = vmul.f32 %v1937, %v2002
    %v2019 = vmul.f32 %v1938, %v2003
    %v2020 = vmul.f32 %v1939, %v2004
    %v2021 = vmul.f32 %v1940, %v2005
    %v2022 = vmul.f32 %v1941, %v2006
    %v2023 = vmul.f32 %v1942, %v2007
    %v2024 = vmul.f32 %v1943, %v2008
    %v2025 = vmul.f32 %v1944, %v2009
    %v2026 = vmul.f32 %v1945, %v2010
    %v2027 = vmul.f32 %v1946, %v2011
    %v2028 = vmul.f32 %v1947, %v2012
    %v2029 = vmul.f32 %v1948, %v2013
    %v2030 = vmul.f32 %v1949, %v2014
    %v2031 = vmul.f32 %v1950, %v2015
    %v2032 = vmul.f32 %v1951, %v2016
    %v2033 = vmul.f32 %v1952, %v2017
    %2034 = vmatpush.msra.mxu0 %v2033
    %2035 = vmatpush.msra.mxu0 %v2032
    %2036 = vmatpush.msra.mxu0 %v2031
    %2037 = vmatpush.msra.mxu0 %v2030
    %2038 = vmatpush.msra.mxu0 %v2029
    %2039 = vmatpush.msra.mxu0 %v2028
    %2040 = vmatpush.msra.mxu0 %v2027
    %2041 = vmatpush.msra.mxu0 %v2026
    %2042 = vmatpush.msra.mxu0 %v2025
    %2043 = vmatpush.msra.mxu0 %v2024
    %2044 = vmatpush.msra.mxu0 %v2023
    %2045 = vmatpush.msra.mxu0 %v2022
    %2046 = vmatpush.msra.mxu0 %v2021
    %2047 = vmatpush.msra.mxu0 %v2020
    %2048 = vmatpush.msra.mxu0 %v2019
    %2049 = vmatpush.msra.mxu0 %v2018
    %2050 = vmatmul.f32.gmra.mxu0 %v321
    %v2051 = vpop.f32.mrf.mxu0
    %v2052 = vadd.f32 0.0, %v2051
    %2053 = vdwg.mxu0
    %v2054 = vperm.slane %v158, 4
    %v2055 = vmul.f32 %v2054, %v2052
    %v2056 = vadd.f32 %v2055, 0.0
    %v2057 = vperm.slane %v245, 4
    %v2058 = vsub.f32 %v2057, %v366
    %v2059 = vsub.f32 %v2057, %v371
    %v2060 = vsub.f32 %v2057, %v376
    %v2061 = vsub.f32 %v2057, %v381
    %v2062 = vsub.f32 %v2057, %v386
    %v2063 = vsub.f32 %v2057, %v391
    %v2064 = vsub.f32 %v2057, %v396
    %v2065 = vsub.f32 %v2057, %v401
    %v2066 = vsub.f32 %v2057, %v406
    %v2067 = vsub.f32 %v2057, %v411
    %v2068 = vsub.f32 %v2057, %v416
    %v2069 = vsub.f32 %v2057, %v421
    %v2070 = vsub.f32 %v2057, %v426
    %v2071 = vsub.f32 %v2057, %v431
    %v2072 = vsub.f32 %v2057, %v436
    %v2073 = vsub.f32 %v2057, %v441
    %v2074 = vand.u32 2147483647, %v2058
    %v2075 = vand.u32 2147483647, %v2059
    %v2076 = vand.u32 2147483647, %v2060
    %v2077 = vand.u32 2147483647, %v2061
    %v2078 = vand.u32 2147483647, %v2062
    %v2079 = vand.u32 2147483647, %v2063
    %v2080 = vand.u32 2147483647, %v2064
    %v2081 = vand.u32 2147483647, %v2065
    %v2082 = vand.u32 2147483647, %v2066
    %v2083 = vand.u32 2147483647, %v2067
    %v2084 = vand.u32 2147483647, %v2068
    %v2085 = vand.u32 2147483647, %v2069
    %v2086 = vand.u32 2147483647, %v2070
    %v2087 = vand.u32 2147483647, %v2071
    %v2088 = vand.u32 2147483647, %v2072
    %v2089 = vand.u32 2147483647, %v2073
    %v2090 = vsub.f32 1.0, %v2074
    %v2091 = vsub.f32 1.0, %v2075
    %v2092 = vsub.f32 1.0, %v2076
    %v2093 = vsub.f32 1.0, %v2077
    %v2094 = vsub.f32 1.0, %v2078
    %v2095 = vsub.f32 1.0, %v2079
    %v2096 = vsub.f32 1.0, %v2080
    %v2097 = vsub.f32 1.0, %v2081
    %v2098 = vsub.f32 1.0, %v2082
    %v2099 = vsub.f32 1.0, %v2083
    %v2100 = vsub.f32 1.0, %v2084
    %v2101 = vsub.f32 1.0, %v2085
    %v2102 = vsub.f32 1.0, %v2086
    %v2103 = vsub.f32 1.0, %v2087
    %v2104 = vsub.f32 1.0, %v2088
    %v2105 = vsub.f32 1.0, %v2089
    %v2106 = vmax.f32 %v2090, 0.0
    %v2107 = vmax.f32 %v2091, 0.0
    %v2108 = vmax.f32 %v2092, 0.0
    %v2109 = vmax.f32 %v2093, 0.0
    %v2110 = vmax.f32 %v2094, 0.0
    %v2111 = vmax.f32 %v2095, 0.0
    %v2112 = vmax.f32 %v2096, 0.0
    %v2113 = vmax.f32 %v2097, 0.0
    %v2114 = vmax.f32 %v2098, 0.0
    %v2115 = vmax.f32 %v2099, 0.0
    %v2116 = vmax.f32 %v2100, 0.0
    %v2117 = vmax.f32 %v2101, 0.0
    %v2118 = vmax.f32 %v2102, 0.0
    %v2119 = vmax.f32 %v2103, 0.0
    %v2120 = vmax.f32 %v2104, 0.0
    %v2121 = vmax.f32 %v2105, 0.0
    %v2122 = vperm.slane %v1039, 4
    %v2123 = vsub.f32 %v2122, %v511
    %v2124 = vsub.f32 %v2122, %v516
    %v2125 = vsub.f32 %v2122, %v521
    %v2126 = vsub.f32 %v2122, %v526
    %v2127 = vsub.f32 %v2122, %v531
    %v2128 = vsub.f32 %v2122, %v536
    %v2129 = vsub.f32 %v2122, %v541
    %v2130 = vsub.f32 %v2122, %v546
    %v2131 = vsub.f32 %v2122, %v551
    %v2132 = vsub.f32 %v2122, %v556
    %v2133 = vsub.f32 %v2122, %v561
    %v2134 = vsub.f32 %v2122, %v566
    %v2135 = vsub.f32 %v2122, %v571
    %v2136 = vsub.f32 %v2122, %v576
    %v2137 = vsub.f32 %v2122, %v581
    %v2138 = vsub.f32 %v2122, %v586
    %v2139 = vand.u32 2147483647, %v2123
    %v2140 = vand.u32 2147483647, %v2124
    %v2141 = vand.u32 2147483647, %v2125
    %v2142 = vand.u32 2147483647, %v2126
    %v2143 = vand.u32 2147483647, %v2127
    %v2144 = vand.u32 2147483647, %v2128
    %v2145 = vand.u32 2147483647, %v2129
    %v2146 = vand.u32 2147483647, %v2130
    %v2147 = vand.u32 2147483647, %v2131
    %v2148 = vand.u32 2147483647, %v2132
    %v2149 = vand.u32 2147483647, %v2133
    %v2150 = vand.u32 2147483647, %v2134
    %v2151 = vand.u32 2147483647, %v2135
    %v2152 = vand.u32 2147483647, %v2136
    %v2153 = vand.u32 2147483647, %v2137
    %v2154 = vand.u32 2147483647, %v2138
    %v2155 = vsub.f32 1.0, %v2139
    %v2156 = vsub.f32 1.0, %v2140
    %v2157 = vsub.f32 1.0, %v2141
    %v2158 = vsub.f32 1.0, %v2142
    %v2159 = vsub.f32 1.0, %v2143
    %v2160 = vsub.f32 1.0, %v2144
    %v2161 = vsub.f32 1.0, %v2145
    %v2162 = vsub.f32 1.0, %v2146
    %v2163 = vsub.f32 1.0, %v2147
    %v2164 = vsub.f32 1.0, %v2148
    %v2165 = vsub.f32 1.0, %v2149
    %v2166 = vsub.f32 1.0, %v2150
    %v2167 = vsub.f32 1.0, %v2151
    %v2168 = vsub.f32 1.0, %v2152
    %v2169 = vsub.f32 1.0, %v2153
    %v2170 = vsub.f32 1.0, %v2154
    %v2171 = vmax.f32 %v2155, 0.0
    %v2172 = vmax.f32 %v2156, 0.0
    %v2173 = vmax.f32 %v2157, 0.0
    %v2174 = vmax.f32 %v2158, 0.0
    %v2175 = vmax.f32 %v2159, 0.0
    %v2176 = vmax.f32 %v2160, 0.0
    %v2177 = vmax.f32 %v2161, 0.0
    %v2178 = vmax.f32 %v2162, 0.0
    %v2179 = vmax.f32 %v2163, 0.0
    %v2180 = vmax.f32 %v2164, 0.0
    %v2181 = vmax.f32 %v2165, 0.0
    %v2182 = vmax.f32 %v2166, 0.0
    %v2183 = vmax.f32 %v2167, 0.0
    %v2184 = vmax.f32 %v2168, 0.0
    %v2185 = vmax.f32 %v2169, 0.0
    %v2186 = vmax.f32 %v2170, 0.0
    %v2187 = vmul.f32 %v2106, %v2171
    %v2188 = vmul.f32 %v2107, %v2172
    %v2189 = vmul.f32 %v2108, %v2173
    %v2190 = vmul.f32 %v2109, %v2174
    %v2191 = vmul.f32 %v2110, %v2175
    %v2192 = vmul.f32 %v2111, %v2176
    %v2193 = vmul.f32 %v2112, %v2177
    %v2194 = vmul.f32 %v2113, %v2178
    %v2195 = vmul.f32 %v2114, %v2179
    %v2196 = vmul.f32 %v2115, %v2180
    %v2197 = vmul.f32 %v2116, %v2181
    %v2198 = vmul.f32 %v2117, %v2182
    %v2199 = vmul.f32 %v2118, %v2183
    %v2200 = vmul.f32 %v2119, %v2184
    %v2201 = vmul.f32 %v2120, %v2185
    %v2202 = vmul.f32 %v2121, %v2186
    %2203 = vmatpush.msra.mxu0 %v2202
    %2204 = vmatpush.msra.mxu0 %v2201
    %2205 = vmatpush.msra.mxu0 %v2200
    %2206 = vmatpush.msra.mxu0 %v2199
    %2207 = vmatpush.msra.mxu0 %v2198
    %2208 = vmatpush.msra.mxu0 %v2197
    %2209 = vmatpush.msra.mxu0 %v2196
    %2210 = vmatpush.msra.mxu0 %v2195
    %2211 = vmatpush.msra.mxu0 %v2194
    %2212 = vmatpush.msra.mxu0 %v2193
    %2213 = vmatpush.msra.mxu0 %v2192
    %2214 = vmatpush.msra.mxu0 %v2191
    %2215 = vmatpush.msra.mxu0 %v2190
    %2216 = vmatpush.msra.mxu0 %v2189
    %2217 = vmatpush.msra.mxu0 %v2188
    %2218 = vmatpush.msra.mxu0 %v2187
    %2219 = vmatmul.f32.gmra.mxu0 %v321
    %v2220 = vpop.f32.mrf.mxu0
    %v2221 = vadd.f32 0.0, %v2220
    %2222 = vdwg.mxu0
    %v2223 = vperm.slane %v173, 4
    %v2224 = vmul.f32 %v2223, %v2221
    %v2225 = vadd.f32 %v2056, %v2224
    %v2226 = vperm.slane %v242, 5
    %v2227 = vsub.f32 %v2226, %v366
    %v2228 = vsub.f32 %v2226, %v371
    %v2229 = vsub.f32 %v2226, %v376
    %v2230 = vsub.f32 %v2226, %v381
    %v2231 = vsub.f32 %v2226, %v386
    %v2232 = vsub.f32 %v2226, %v391
    %v2233 = vsub.f32 %v2226, %v396
    %v2234 = vsub.f32 %v2226, %v401
    %v2235 = vsub.f32 %v2226, %v406
    %v2236 = vsub.f32 %v2226, %v411
    %v2237 = vsub.f32 %v2226, %v416
    %v2238 = vsub.f32 %v2226, %v421
    %v2239 = vsub.f32 %v2226, %v426
    %v2240 = vsub.f32 %v2226, %v431
    %v2241 = vsub.f32 %v2226, %v436
    %v2242 = vsub.f32 %v2226, %v441
    %v2243 = vand.u32 2147483647, %v2227
    %v2244 = vand.u32 2147483647, %v2228
    %v2245 = vand.u32 2147483647, %v2229
    %v2246 = vand.u32 2147483647, %v2230
    %v2247 = vand.u32 2147483647, %v2231
    %v2248 = vand.u32 2147483647, %v2232
    %v2249 = vand.u32 2147483647, %v2233
    %v2250 = vand.u32 2147483647, %v2234
    %v2251 = vand.u32 2147483647, %v2235
    %v2252 = vand.u32 2147483647, %v2236
    %v2253 = vand.u32 2147483647, %v2237
    %v2254 = vand.u32 2147483647, %v2238
    %v2255 = vand.u32 2147483647, %v2239
    %v2256 = vand.u32 2147483647, %v2240
    %v2257 = vand.u32 2147483647, %v2241
    %v2258 = vand.u32 2147483647, %v2242
    %v2259 = vsub.f32 1.0, %v2243
    %v2260 = vsub.f32 1.0, %v2244
    %v2261 = vsub.f32 1.0, %v2245
    %v2262 = vsub.f32 1.0, %v2246
    %v2263 = vsub.f32 1.0, %v2247
    %v2264 = vsub.f32 1.0, %v2248
    %v2265 = vsub.f32 1.0, %v2249
    %v2266 = vsub.f32 1.0, %v2250
    %v2267 = vsub.f32 1.0, %v2251
    %v2268 = vsub.f32 1.0, %v2252
    %v2269 = vsub.f32 1.0, %v2253
    %v2270 = vsub.f32 1.0, %v2254
    %v2271 = vsub.f32 1.0, %v2255
    %v2272 = vsub.f32 1.0, %v2256
    %v2273 = vsub.f32 1.0, %v2257
    %v2274 = vsub.f32 1.0, %v2258
    %v2275 = vmax.f32 %v2259, 0.0
    %v2276 = vmax.f32 %v2260, 0.0
    %v2277 = vmax.f32 %v2261, 0.0
    %v2278 = vmax.f32 %v2262, 0.0
    %v2279 = vmax.f32 %v2263, 0.0
    %v2280 = vmax.f32 %v2264, 0.0
    %v2281 = vmax.f32 %v2265, 0.0
    %v2282 = vmax.f32 %v2266, 0.0
    %v2283 = vmax.f32 %v2267, 0.0
    %v2284 = vmax.f32 %v2268, 0.0
    %v2285 = vmax.f32 %v2269, 0.0
    %v2286 = vmax.f32 %v2270, 0.0
    %v2287 = vmax.f32 %v2271, 0.0
    %v2288 = vmax.f32 %v2272, 0.0
    %v2289 = vmax.f32 %v2273, 0.0
    %v2290 = vmax.f32 %v2274, 0.0
    %v2291 = vperm.slane %v866, 5
    %v2292 = vsub.f32 %v2291, %v511
    %v2293 = vsub.f32 %v2291, %v516
    %v2294 = vsub.f32 %v2291, %v521
    %v2295 = vsub.f32 %v2291, %v526
    %v2296 = vsub.f32 %v2291, %v531
    %v2297 = vsub.f32 %v2291, %v536
    %v2298 = vsub.f32 %v2291, %v541
    %v2299 = vsub.f32 %v2291, %v546
    %v2300 = vsub.f32 %v2291, %v551
    %v2301 = vsub.f32 %v2291, %v556
    %v2302 = vsub.f32 %v2291, %v561
    %v2303 = vsub.f32 %v2291, %v566
    %v2304 = vsub.f32 %v2291, %v571
    %v2305 = vsub.f32 %v2291, %v576
    %v2306 = vsub.f32 %v2291, %v581
    %v2307 = vsub.f32 %v2291, %v586
    %v2308 = vand.u32 2147483647, %v2292
    %v2309 = vand.u32 2147483647, %v2293
    %v2310 = vand.u32 2147483647, %v2294
    %v2311 = vand.u32 2147483647, %v2295
    %v2312 = vand.u32 2147483647, %v2296
    %v2313 = vand.u32 2147483647, %v2297
    %v2314 = vand.u32 2147483647, %v2298
    %v2315 = vand.u32 2147483647, %v2299
    %v2316 = vand.u32 2147483647, %v2300
    %v2317 = vand.u32 2147483647, %v2301
    %v2318 = vand.u32 2147483647, %v2302
    %v2319 = vand.u32 2147483647, %v2303
    %v2320 = vand.u32 2147483647, %v2304
    %v2321 = vand.u32 2147483647, %v2305
    %v2322 = vand.u32 2147483647, %v2306
    %v2323 = vand.u32 2147483647, %v2307
    %v2324 = vsub.f32 1.0, %v2308
    %v2325 = vsub.f32 1.0, %v2309
    %v2326 = vsub.f32 1.0, %v2310
    %v2327 = vsub.f32 1.0, %v2311
    %v2328 = vsub.f32 1.0, %v2312
    %v2329 = vsub.f32 1.0, %v2313
    %v2330 = vsub.f32 1.0, %v2314
    %v2331 = vsub.f32 1.0, %v2315
    %v2332 = vsub.f32 1.0, %v2316
    %v2333 = vsub.f32 1.0, %v2317
    %v2334 = vsub.f32 1.0, %v2318
    %v2335 = vsub.f32 1.0, %v2319
    %v2336 = vsub.f32 1.0, %v2320
    %v2337 = vsub.f32 1.0, %v2321
    %v2338 = vsub.f32 1.0, %v2322
    %v2339 = vsub.f32 1.0, %v2323
    %v2340 = vmax.f32 %v2324, 0.0
    %v2341 = vmax.f32 %v2325, 0.0
    %v2342 = vmax.f32 %v2326, 0.0
    %v2343 = vmax.f32 %v2327, 0.0
    %v2344 = vmax.f32 %v2328, 0.0
    %v2345 = vmax.f32 %v2329, 0.0
    %v2346 = vmax.f32 %v2330, 0.0
    %v2347 = vmax.f32 %v2331, 0.0
    %v2348 = vmax.f32 %v2332, 0.0
    %v2349 = vmax.f32 %v2333, 0.0
    %v2350 = vmax.f32 %v2334, 0.0
    %v2351 = vmax.f32 %v2335, 0.0
    %v2352 = vmax.f32 %v2336, 0.0
    %v2353 = vmax.f32 %v2337, 0.0
    %v2354 = vmax.f32 %v2338, 0.0
    %v2355 = vmax.f32 %v2339, 0.0
    %v2356 = vmul.f32 %v2275, %v2340
    %v2357 = vmul.f32 %v2276, %v2341
    %v2358 = vmul.f32 %v2277, %v2342
    %v2359 = vmul.f32 %v2278, %v2343
    %v2360 = vmul.f32 %v2279, %v2344
    %v2361 = vmul.f32 %v2280, %v2345
    %v2362 = vmul.f32 %v2281, %v2346
    %v2363 = vmul.f32 %v2282, %v2347
    %v2364 = vmul.f32 %v2283, %v2348
    %v2365 = vmul.f32 %v2284, %v2349
    %v2366 = vmul.f32 %v2285, %v2350
    %v2367 = vmul.f32 %v2286, %v2351
    %v2368 = vmul.f32 %v2287, %v2352
    %v2369 = vmul.f32 %v2288, %v2353
    %v2370 = vmul.f32 %v2289, %v2354
    %v2371 = vmul.f32 %v2290, %v2355
    %v2373 = vrot.slane %v321, 4
    %2375 = vmatpush.msra.mxu0 %v2371
    %2376 = vmatpush.msra.mxu0 %v2370
    %2377 = vmatpush.msra.mxu0 %v2369
    %2378 = vmatpush.msra.mxu0 %v2368
    %2379 = vmatpush.msra.mxu0 %v2367
    %2380 = vmatpush.msra.mxu0 %v2366
    %2381 = vmatpush.msra.mxu0 %v2365
    %2382 = vmatpush.msra.mxu0 %v2364
    %2383 = vmatpush.msra.mxu0 %v2363
    %2384 = vmatpush.msra.mxu0 %v2362
    %2385 = vmatpush.msra.mxu0 %v2361
    %2386 = vmatpush.msra.mxu0 %v2360
    %2387 = vmatpush.msra.mxu0 %v2359
    %2388 = vmatpush.msra.mxu0 %v2358
    %2389 = vmatpush.msra.mxu0 %v2357
    %2390 = vmatpush.msra.mxu0 %v2356
    %2391 = vmatmul.f32.gmra.mxu0 %v2373
    %v2392 = vpop.f32.mrf.mxu0
    %v2393 = vadd.f32 0.0, %v2392
    %2394 = vdwg.mxu0
    %v2395 = vperm.slane %v158, 5
    %v2396 = vmul.f32 %v2395, %v2393
    %v2397 = vadd.f32 %v2396, 0.0
    %v2398 = vperm.slane %v245, 5
    %v2399 = vsub.f32 %v2398, %v366
    %v2400 = vsub.f32 %v2398, %v371
    %v2401 = vsub.f32 %v2398, %v376
    %v2402 = vsub.f32 %v2398, %v381
    %v2403 = vsub.f32 %v2398, %v386
    %v2404 = vsub.f32 %v2398, %v391
    %v2405 = vsub.f32 %v2398, %v396
    %v2406 = vsub.f32 %v2398, %v401
    %v2407 = vsub.f32 %v2398, %v406
    %v2408 = vsub.f32 %v2398, %v411
    %v2409 = vsub.f32 %v2398, %v416
    %v2410 = vsub.f32 %v2398, %v421
    %v2411 = vsub.f32 %v2398, %v426
    %v2412 = vsub.f32 %v2398, %v431
    %v2413 = vsub.f32 %v2398, %v436
    %v2414 = vsub.f32 %v2398, %v441
    %v2415 = vand.u32 2147483647, %v2399
    %v2416 = vand.u32 2147483647, %v2400
    %v2417 = vand.u32 2147483647, %v2401
    %v2418 = vand.u32 2147483647, %v2402
    %v2419 = vand.u32 2147483647, %v2403
    %v2420 = vand.u32 2147483647, %v2404
    %v2421 = vand.u32 2147483647, %v2405
    %v2422 = vand.u32 2147483647, %v2406
    %v2423 = vand.u32 2147483647, %v2407
    %v2424 = vand.u32 2147483647, %v2408
    %v2425 = vand.u32 2147483647, %v2409
    %v2426 = vand.u32 2147483647, %v2410
    %v2427 = vand.u32 2147483647, %v2411
    %v2428 = vand.u32 2147483647, %v2412
    %v2429 = vand.u32 2147483647, %v2413
    %v2430 = vand.u32 2147483647, %v2414
    %v2431 = vsub.f32 1.0, %v2415
    %v2432 = vsub.f32 1.0, %v2416
    %v2433 = vsub.f32 1.0, %v2417
    %v2434 = vsub.f32 1.0, %v2418
    %v2435 = vsub.f32 1.0, %v2419
    %v2436 = vsub.f32 1.0, %v2420
    %v2437 = vsub.f32 1.0, %v2421
    %v2438 = vsub.f32 1.0, %v2422
    %v2439 = vsub.f32 1.0, %v2423
    %v2440 = vsub.f32 1.0, %v2424
    %v2441 = vsub.f32 1.0, %v2425
    %v2442 = vsub.f32 1.0, %v2426
    %v2443 = vsub.f32 1.0, %v2427
    %v2444 = vsub.f32 1.0, %v2428
    %v2445 = vsub.f32 1.0, %v2429
    %v2446 = vsub.f32 1.0, %v2430
    %v2447 = vmax.f32 %v2431, 0.0
    %v2448 = vmax.f32 %v2432, 0.0
    %v2449 = vmax.f32 %v2433, 0.0
    %v2450 = vmax.f32 %v2434, 0.0
    %v2451 = vmax.f32 %v2435, 0.0
    %v2452 = vmax.f32 %v2436, 0.0
    %v2453 = vmax.f32 %v2437, 0.0
    %v2454 = vmax.f32 %v2438, 0.0
    %v2455 = vmax.f32 %v2439, 0.0
    %v2456 = vmax.f32 %v2440, 0.0
    %v2457 = vmax.f32 %v2441, 0.0
    %v2458 = vmax.f32 %v2442, 0.0
    %v2459 = vmax.f32 %v2443, 0.0
    %v2460 = vmax.f32 %v2444, 0.0
    %v2461 = vmax.f32 %v2445, 0.0
    %v2462 = vmax.f32 %v2446, 0.0
    %v2463 = vperm.slane %v1039, 5
    %v2464 = vsub.f32 %v2463, %v511
    %v2465 = vsub.f32 %v2463, %v516
    %v2466 = vsub.f32 %v2463, %v521
    %v2467 = vsub.f32 %v2463, %v526
    %v2468 = vsub.f32 %v2463, %v531
    %v2469 = vsub.f32 %v2463, %v536
    %v2470 = vsub.f32 %v2463, %v541
    %v2471 = vsub.f32 %v2463, %v546
    %v2472 = vsub.f32 %v2463, %v551
    %v2473 = vsub.f32 %v2463, %v556
    %v2474 = vsub.f32 %v2463, %v561
    %v2475 = vsub.f32 %v2463, %v566
    %v2476 = vsub.f32 %v2463, %v571
    %v2477 = vsub.f32 %v2463, %v576
    %v2478 = vsub.f32 %v2463, %v581
    %v2479 = vsub.f32 %v2463, %v586
    %v2480 = vand.u32 2147483647, %v2464
    %v2481 = vand.u32 2147483647, %v2465
    %v2482 = vand.u32 2147483647, %v2466
    %v2483 = vand.u32 2147483647, %v2467
    %v2484 = vand.u32 2147483647, %v2468
    %v2485 = vand.u32 2147483647, %v2469
    %v2486 = vand.u32 2147483647, %v2470
    %v2487 = vand.u32 2147483647, %v2471
    %v2488 = vand.u32 2147483647, %v2472
    %v2489 = vand.u32 2147483647, %v2473
    %v2490 = vand.u32 2147483647, %v2474
    %v2491 = vand.u32 2147483647, %v2475
    %v2492 = vand.u32 2147483647, %v2476
    %v2493 = vand.u32 2147483647, %v2477
    %v2494 = vand.u32 2147483647, %v2478
    %v2495 = vand.u32 2147483647, %v2479
    %v2496 = vsub.f32 1.0, %v2480
    %v2497 = vsub.f32 1.0, %v2481
    %v2498 = vsub.f32 1.0, %v2482
    %v2499 = vsub.f32 1.0, %v2483
    %v2500 = vsub.f32 1.0, %v2484
    %v2501 = vsub.f32 1.0, %v2485
    %v2502 = vsub.f32 1.0, %v2486
    %v2503 = vsub.f32 1.0, %v2487
    %v2504 = vsub.f32 1.0, %v2488
    %v2505 = vsub.f32 1.0, %v2489
    %v2506 = vsub.f32 1.0, %v2490
    %v2507 = vsub.f32 1.0, %v2491
    %v2508 = vsub.f32 1.0, %v2492
    %v2509 = vsub.f32 1.0, %v2493
    %v2510 = vsub.f32 1.0, %v2494
    %v2511 = vsub.f32 1.0, %v2495
    %v2512 = vmax.f32 %v2496, 0.0
    %v2513 = vmax.f32 %v2497, 0.0
    %v2514 = vmax.f32 %v2498, 0.0
    %v2515 = vmax.f32 %v2499, 0.0
    %v2516 = vmax.f32 %v2500, 0.0
    %v2517 = vmax.f32 %v2501, 0.0
    %v2518 = vmax.f32 %v2502, 0.0
    %v2519 = vmax.f32 %v2503, 0.0
    %v2520 = vmax.f32 %v2504, 0.0
    %v2521 = vmax.f32 %v2505, 0.0
    %v2522 = vmax.f32 %v2506, 0.0
    %v2523 = vmax.f32 %v2507, 0.0
    %v2524 = vmax.f32 %v2508, 0.0
    %v2525 = vmax.f32 %v2509, 0.0
    %v2526 = vmax.f32 %v2510, 0.0
    %v2527 = vmax.f32 %v2511, 0.0
    %v2528 = vmul.f32 %v2447, %v2512
    %v2529 = vmul.f32 %v2448, %v2513
    %v2530 = vmul.f32 %v2449, %v2514
    %v2531 = vmul.f32 %v2450, %v2515
    %v2532 = vmul.f32 %v2451, %v2516
    %v2533 = vmul.f32 %v2452, %v2517
    %v2534 = vmul.f32 %v2453, %v2518
    %v2535 = vmul.f32 %v2454, %v2519
    %v2536 = vmul.f32 %v2455, %v2520
    %v2537 = vmul.f32 %v2456, %v2521
    %v2538 = vmul.f32 %v2457, %v2522
    %v2539 = vmul.f32 %v2458, %v2523
    %v2540 = vmul.f32 %v2459, %v2524
    %v2541 = vmul.f32 %v2460, %v2525
    %v2542 = vmul.f32 %v2461, %v2526
    %v2543 = vmul.f32 %v2462, %v2527
    %2544 = vmatpush.msra.mxu0 %v2543
    %2545 = vmatpush.msra.mxu0 %v2542
    %2546 = vmatpush.msra.mxu0 %v2541
    %2547 = vmatpush.msra.mxu0 %v2540
    %2548 = vmatpush.msra.mxu0 %v2539
    %2549 = vmatpush.msra.mxu0 %v2538
    %2550 = vmatpush.msra.mxu0 %v2537
    %2551 = vmatpush.msra.mxu0 %v2536
    %2552 = vmatpush.msra.mxu0 %v2535
    %2553 = vmatpush.msra.mxu0 %v2534
    %2554 = vmatpush.msra.mxu0 %v2533
    %2555 = vmatpush.msra.mxu0 %v2532
    %2556 = vmatpush.msra.mxu0 %v2531
    %2557 = vmatpush.msra.mxu0 %v2530
    %2558 = vmatpush.msra.mxu0 %v2529
    %2559 = vmatpush.msra.mxu0 %v2528
    %2560 = vmatmul.f32.gmra.mxu0 %v2373
    %v2561 = vpop.f32.mrf.mxu0
    %v2562 = vadd.f32 0.0, %v2561
    %2563 = vdwg.mxu0
    %v2564 = vperm.slane %v173, 5
    %v2565 = vmul.f32 %v2564, %v2562
    %v2566 = vadd.f32 %v2397, %v2565
    %v2567 = vperm.slane %v242, 6
    %v2568 = vsub.f32 %v2567, %v366
    %v2569 = vsub.f32 %v2567, %v371
    %v2570 = vsub.f32 %v2567, %v376
    %v2571 = vsub.f32 %v2567, %v381
    %v2572 = vsub.f32 %v2567, %v386
    %v2573 = vsub.f32 %v2567, %v391
    %v2574 = vsub.f32 %v2567, %v396
    %v2575 = vsub.f32 %v2567, %v401
    %v2576 = vsub.f32 %v2567, %v406
    %v2577 = vsub.f32 %v2567, %v411
    %v2578 = vsub.f32 %v2567, %v416
    %v2579 = vsub.f32 %v2567, %v421
    %v2580 = vsub.f32 %v2567, %v426
    %v2581 = vsub.f32 %v2567, %v431
    %v2582 = vsub.f32 %v2567, %v436
    %v2583 = vsub.f32 %v2567, %v441
    %v2584 = vand.u32 2147483647, %v2568
    %v2585 = vand.u32 2147483647, %v2569
    %v2586 = vand.u32 2147483647, %v2570
    %v2587 = vand.u32 2147483647, %v2571
    %v2588 = vand.u32 2147483647, %v2572
    %v2589 = vand.u32 2147483647, %v2573
    %v2590 = vand.u32 2147483647, %v2574
    %v2591 = vand.u32 2147483647, %v2575
    %v2592 = vand.u32 2147483647, %v2576
    %v2593 = vand.u32 2147483647, %v2577
    %v2594 = vand.u32 2147483647, %v2578
    %v2595 = vand.u32 2147483647, %v2579
    %v2596 = vand.u32 2147483647, %v2580
    %v2597 = vand.u32 2147483647, %v2581
    %v2598 = vand.u32 2147483647, %v2582
    %v2599 = vand.u32 2147483647, %v2583
    %v2600 = vsub.f32 1.0, %v2584
    %v2601 = vsub.f32 1.0, %v2585
    %v2602 = vsub.f32 1.0, %v2586
    %v2603 = vsub.f32 1.0, %v2587
    %v2604 = vsub.f32 1.0, %v2588
    %v2605 = vsub.f32 1.0, %v2589
    %v2606 = vsub.f32 1.0, %v2590
    %v2607 = vsub.f32 1.0, %v2591
    %v2608 = vsub.f32 1.0, %v2592
    %v2609 = vsub.f32 1.0, %v2593
    %v2610 = vsub.f32 1.0, %v2594
    %v2611 = vsub.f32 1.0, %v2595
    %v2612 = vsub.f32 1.0, %v2596
    %v2613 = vsub.f32 1.0, %v2597
    %v2614 = vsub.f32 1.0, %v2598
    %v2615 = vsub.f32 1.0, %v2599
    %v2616 = vmax.f32 %v2600, 0.0
    %v2617 = vmax.f32 %v2601, 0.0
    %v2618 = vmax.f32 %v2602, 0.0
    %v2619 = vmax.f32 %v2603, 0.0
    %v2620 = vmax.f32 %v2604, 0.0
    %v2621 = vmax.f32 %v2605, 0.0
    %v2622 = vmax.f32 %v2606, 0.0
    %v2623 = vmax.f32 %v2607, 0.0
    %v2624 = vmax.f32 %v2608, 0.0
    %v2625 = vmax.f32 %v2609, 0.0
    %v2626 = vmax.f32 %v2610, 0.0
    %v2627 = vmax.f32 %v2611, 0.0
    %v2628 = vmax.f32 %v2612, 0.0
    %v2629 = vmax.f32 %v2613, 0.0
    %v2630 = vmax.f32 %v2614, 0.0
    %v2631 = vmax.f32 %v2615, 0.0
    %v2632 = vperm.slane %v866, 6
    %v2633 = vsub.f32 %v2632, %v511
    %v2634 = vsub.f32 %v2632, %v516
    %v2635 = vsub.f32 %v2632, %v521
    %v2636 = vsub.f32 %v2632, %v526
    %v2637 = vsub.f32 %v2632, %v531
    %v2638 = vsub.f32 %v2632, %v536
    %v2639 = vsub.f32 %v2632, %v541
    %v2640 = vsub.f32 %v2632, %v546
    %v2641 = vsub.f32 %v2632, %v551
    %v2642 = vsub.f32 %v2632, %v556
    %v2643 = vsub.f32 %v2632, %v561
    %v2644 = vsub.f32 %v2632, %v566
    %v2645 = vsub.f32 %v2632, %v571
    %v2646 = vsub.f32 %v2632, %v576
    %v2647 = vsub.f32 %v2632, %v581
    %v2648 = vsub.f32 %v2632, %v586
    %v2649 = vand.u32 2147483647, %v2633
    %v2650 = vand.u32 2147483647, %v2634
    %v2651 = vand.u32 2147483647, %v2635
    %v2652 = vand.u32 2147483647, %v2636
    %v2653 = vand.u32 2147483647, %v2637
    %v2654 = vand.u32 2147483647, %v2638
    %v2655 = vand.u32 2147483647, %v2639
    %v2656 = vand.u32 2147483647, %v2640
    %v2657 = vand.u32 2147483647, %v2641
    %v2658 = vand.u32 2147483647, %v2642
    %v2659 = vand.u32 2147483647, %v2643
    %v2660 = vand.u32 2147483647, %v2644
    %v2661 = vand.u32 2147483647, %v2645
    %v2662 = vand.u32 2147483647, %v2646
    %v2663 = vand.u32 2147483647, %v2647
    %v2664 = vand.u32 2147483647, %v2648
    %v2665 = vsub.f32 1.0, %v2649
    %v2666 = vsub.f32 1.0, %v2650
    %v2667 = vsub.f32 1.0, %v2651
    %v2668 = vsub.f32 1.0, %v2652
    %v2669 = vsub.f32 1.0, %v2653
    %v2670 = vsub.f32 1.0, %v2654
    %v2671 = vsub.f32 1.0, %v2655
    %v2672 = vsub.f32 1.0, %v2656
    %v2673 = vsub.f32 1.0, %v2657
    %v2674 = vsub.f32 1.0, %v2658
    %v2675 = vsub.f32 1.0, %v2659
    %v2676 = vsub.f32 1.0, %v2660
    %v2677 = vsub.f32 1.0, %v2661
    %v2678 = vsub.f32 1.0, %v2662
    %v2679 = vsub.f32 1.0, %v2663
    %v2680 = vsub.f32 1.0, %v2664
    %v2681 = vmax.f32 %v2665, 0.0
    %v2682 = vmax.f32 %v2666, 0.0
    %v2683 = vmax.f32 %v2667, 0.0
    %v2684 = vmax.f32 %v2668, 0.0
    %v2685 = vmax.f32 %v2669, 0.0
    %v2686 = vmax.f32 %v2670, 0.0
    %v2687 = vmax.f32 %v2671, 0.0
    %v2688 = vmax.f32 %v2672, 0.0
    %v2689 = vmax.f32 %v2673, 0.0
    %v2690 = vmax.f32 %v2674, 0.0
    %v2691 = vmax.f32 %v2675, 0.0
    %v2692 = vmax.f32 %v2676, 0.0
    %v2693 = vmax.f32 %v2677, 0.0
    %v2694 = vmax.f32 %v2678, 0.0
    %v2695 = vmax.f32 %v2679, 0.0
    %v2696 = vmax.f32 %v2680, 0.0
    %v2697 = vmul.f32 %v2616, %v2681
    %v2698 = vmul.f32 %v2617, %v2682
    %v2699 = vmul.f32 %v2618, %v2683
    %v2700 = vmul.f32 %v2619, %v2684
    %v2701 = vmul.f32 %v2620, %v2685
    %v2702 = vmul.f32 %v2621, %v2686
    %v2703 = vmul.f32 %v2622, %v2687
    %v2704 = vmul.f32 %v2623, %v2688
    %v2705 = vmul.f32 %v2624, %v2689
    %v2706 = vmul.f32 %v2625, %v2690
    %v2707 = vmul.f32 %v2626, %v2691
    %v2708 = vmul.f32 %v2627, %v2692
    %v2709 = vmul.f32 %v2628, %v2693
    %v2710 = vmul.f32 %v2629, %v2694
    %v2711 = vmul.f32 %v2630, %v2695
    %v2712 = vmul.f32 %v2631, %v2696
    %2713 = vmatpush.msra.mxu0 %v2712
    %2714 = vmatpush.msra.mxu0 %v2711
    %2715 = vmatpush.msra.mxu0 %v2710
    %2716 = vmatpush.msra.mxu0 %v2709
    %2717 = vmatpush.msra.mxu0 %v2708
    %2718 = vmatpush.msra.mxu0 %v2707
    %2719 = vmatpush.msra.mxu0 %v2706
    %2720 = vmatpush.msra.mxu0 %v2705
    %2721 = vmatpush.msra.mxu0 %v2704
    %2722 = vmatpush.msra.mxu0 %v2703
    %2723 = vmatpush.msra.mxu0 %v2702
    %2724 = vmatpush.msra.mxu0 %v2701
    %2725 = vmatpush.msra.mxu0 %v2700
    %2726 = vmatpush.msra.mxu0 %v2699
    %2727 = vmatpush.msra.mxu0 %v2698
    %2728 = vmatpush.msra.mxu0 %v2697
    %2729 = vmatmul.f32.gmra.mxu0 %v324
    %v2730 = vpop.f32.mrf.mxu0
    %v2731 = vadd.f32 0.0, %v2730
    %2732 = vdwg.mxu0
    %v2733 = vperm.slane %v158, 6
    %v2734 = vmul.f32 %v2733, %v2731
    %v2735 = vadd.f32 %v2734, 0.0
    %v2736 = vperm.slane %v245, 6
    %v2737 = vsub.f32 %v2736, %v366
    %v2738 = vsub.f32 %v2736, %v371
    %v2739 = vsub.f32 %v2736, %v376
    %v2740 = vsub.f32 %v2736, %v381
    %v2741 = vsub.f32 %v2736, %v386
    %v2742 = vsub.f32 %v2736, %v391
    %v2743 = vsub.f32 %v2736, %v396
    %v2744 = vsub.f32 %v2736, %v401
    %v2745 = vsub.f32 %v2736, %v406
    %v2746 = vsub.f32 %v2736, %v411
    %v2747 = vsub.f32 %v2736, %v416
    %v2748 = vsub.f32 %v2736, %v421
    %v2749 = vsub.f32 %v2736, %v426
    %v2750 = vsub.f32 %v2736, %v431
    %v2751 = vsub.f32 %v2736, %v436
    %v2752 = vsub.f32 %v2736, %v441
    %v2753 = vand.u32 2147483647, %v2737
    %v2754 = vand.u32 2147483647, %v2738
    %v2755 = vand.u32 2147483647, %v2739
    %v2756 = vand.u32 2147483647, %v2740
    %v2757 = vand.u32 2147483647, %v2741
    %v2758 = vand.u32 2147483647, %v2742
    %v2759 = vand.u32 2147483647, %v2743
    %v2760 = vand.u32 2147483647, %v2744
    %v2761 = vand.u32 2147483647, %v2745
    %v2762 = vand.u32 2147483647, %v2746
    %v2763 = vand.u32 2147483647, %v2747
    %v2764 = vand.u32 2147483647, %v2748
    %v2765 = vand.u32 2147483647, %v2749
    %v2766 = vand.u32 2147483647, %v2750
    %v2767 = vand.u32 2147483647, %v2751
    %v2768 = vand.u32 2147483647, %v2752
    %v2769 = vsub.f32 1.0, %v2753
    %v2770 = vsub.f32 1.0, %v2754
    %v2771 = vsub.f32 1.0, %v2755
    %v2772 = vsub.f32 1.0, %v2756
    %v2773 = vsub.f32 1.0, %v2757
    %v2774 = vsub.f32 1.0, %v2758
    %v2775 = vsub.f32 1.0, %v2759
    %v2776 = vsub.f32 1.0, %v2760
    %v2777 = vsub.f32 1.0, %v2761
    %v2778 = vsub.f32 1.0, %v2762
    %v2779 = vsub.f32 1.0, %v2763
    %v2780 = vsub.f32 1.0, %v2764
    %v2781 = vsub.f32 1.0, %v2765
    %v2782 = vsub.f32 1.0, %v2766
    %v2783 = vsub.f32 1.0, %v2767
    %v2784 = vsub.f32 1.0, %v2768
    %v2785 = vmax.f32 %v2769, 0.0
    %v2786 = vmax.f32 %v2770, 0.0
    %v2787 = vmax.f32 %v2771, 0.0
    %v2788 = vmax.f32 %v2772, 0.0
    %v2789 = vmax.f32 %v2773, 0.0
    %v2790 = vmax.f32 %v2774, 0.0
    %v2791 = vmax.f32 %v2775, 0.0
    %v2792 = vmax.f32 %v2776, 0.0
    %v2793 = vmax.f32 %v2777, 0.0
    %v2794 = vmax.f32 %v2778, 0.0
    %v2795 = vmax.f32 %v2779, 0.0
    %v2796 = vmax.f32 %v2780, 0.0
    %v2797 = vmax.f32 %v2781, 0.0
    %v2798 = vmax.f32 %v2782, 0.0
    %v2799 = vmax.f32 %v2783, 0.0
    %v2800 = vmax.f32 %v2784, 0.0
    %v2801 = vperm.slane %v1039, 6
    %v2802 = vsub.f32 %v2801, %v511
    %v2803 = vsub.f32 %v2801, %v516
    %v2804 = vsub.f32 %v2801, %v521
    %v2805 = vsub.f32 %v2801, %v526
    %v2806 = vsub.f32 %v2801, %v531
    %v2807 = vsub.f32 %v2801, %v536
    %v2808 = vsub.f32 %v2801, %v541
    %v2809 = vsub.f32 %v2801, %v546
    %v2810 = vsub.f32 %v2801, %v551
    %v2811 = vsub.f32 %v2801, %v556
    %v2812 = vsub.f32 %v2801, %v561
    %v2813 = vsub.f32 %v2801, %v566
    %v2814 = vsub.f32 %v2801, %v571
    %v2815 = vsub.f32 %v2801, %v576
    %v2816 = vsub.f32 %v2801, %v581
    %v2817 = vsub.f32 %v2801, %v586
    %v2818 = vand.u32 2147483647, %v2802
    %v2819 = vand.u32 2147483647, %v2803
    %v2820 = vand.u32 2147483647, %v2804
    %v2821 = vand.u32 2147483647, %v2805
    %v2822 = vand.u32 2147483647, %v2806
    %v2823 = vand.u32 2147483647, %v2807
    %v2824 = vand.u32 2147483647, %v2808
    %v2825 = vand.u32 2147483647, %v2809
    %v2826 = vand.u32 2147483647, %v2810
    %v2827 = vand.u32 2147483647, %v2811
    %v2828 = vand.u32 2147483647, %v2812
    %v2829 = vand.u32 2147483647, %v2813
    %v2830 = vand.u32 2147483647, %v2814
    %v2831 = vand.u32 2147483647, %v2815
    %v2832 = vand.u32 2147483647, %v2816
    %v2833 = vand.u32 2147483647, %v2817
    %v2834 = vsub.f32 1.0, %v2818
    %v2835 = vsub.f32 1.0, %v2819
    %v2836 = vsub.f32 1.0, %v2820
    %v2837 = vsub.f32 1.0, %v2821
    %v2838 = vsub.f32 1.0, %v2822
    %v2839 = vsub.f32 1.0, %v2823
    %v2840 = vsub.f32 1.0, %v2824
    %v2841 = vsub.f32 1.0, %v2825
    %v2842 = vsub.f32 1.0, %v2826
    %v2843 = vsub.f32 1.0, %v2827
    %v2844 = vsub.f32 1.0, %v2828
    %v2845 = vsub.f32 1.0, %v2829
    %v2846 = vsub.f32 1.0, %v2830
    %v2847 = vsub.f32 1.0, %v2831
    %v2848 = vsub.f32 1.0, %v2832
    %v2849 = vsub.f32 1.0, %v2833
    %v2850 = vmax.f32 %v2834, 0.0
    %v2851 = vmax.f32 %v2835, 0.0
    %v2852 = vmax.f32 %v2836, 0.0
    %v2853 = vmax.f32 %v2837, 0.0
    %v2854 = vmax.f32 %v2838, 0.0
    %v2855 = vmax.f32 %v2839, 0.0
    %v2856 = vmax.f32 %v2840, 0.0
    %v2857 = vmax.f32 %v2841, 0.0
    %v2858 = vmax.f32 %v2842, 0.0
    %v2859 = vmax.f32 %v2843, 0.0
    %v2860 = vmax.f32 %v2844, 0.0
    %v2861 = vmax.f32 %v2845, 0.0
    %v2862 = vmax.f32 %v2846, 0.0
    %v2863 = vmax.f32 %v2847, 0.0
    %v2864 = vmax.f32 %v2848, 0.0
    %v2865 = vmax.f32 %v2849, 0.0
    %v2866 = vmul.f32 %v2785, %v2850
    %v2867 = vmul.f32 %v2786, %v2851
    %v2868 = vmul.f32 %v2787, %v2852
    %v2869 = vmul.f32 %v2788, %v2853
    %v2870 = vmul.f32 %v2789, %v2854
    %v2871 = vmul.f32 %v2790, %v2855
    %v2872 = vmul.f32 %v2791, %v2856
    %v2873 = vmul.f32 %v2792, %v2857
    %v2874 = vmul.f32 %v2793, %v2858
    %v2875 = vmul.f32 %v2794, %v2859
    %v2876 = vmul.f32 %v2795, %v2860
    %v2877 = vmul.f32 %v2796, %v2861
    %v2878 = vmul.f32 %v2797, %v2862
    %v2879 = vmul.f32 %v2798, %v2863
    %v2880 = vmul.f32 %v2799, %v2864
    %v2881 = vmul.f32 %v2800, %v2865
    %2882 = vmatpush.msra.mxu0 %v2881
    %2883 = vmatpush.msra.mxu0 %v2880
    %2884 = vmatpush.msra.mxu0 %v2879
    %2885 = vmatpush.msra.mxu0 %v2878
    %2886 = vmatpush.msra.mxu0 %v2877
    %2887 = vmatpush.msra.mxu0 %v2876
    %2888 = vmatpush.msra.mxu0 %v2875
    %2889 = vmatpush.msra.mxu0 %v2874
    %2890 = vmatpush.msra.mxu0 %v2873
    %2891 = vmatpush.msra.mxu0 %v2872
    %2892 = vmatpush.msra.mxu0 %v2871
    %2893 = vmatpush.msra.mxu0 %v2870
    %2894 = vmatpush.msra.mxu0 %v2869
    %2895 = vmatpush.msra.mxu0 %v2868
    %2896 = vmatpush.msra.mxu0 %v2867
    %2897 = vmatpush.msra.mxu0 %v2866
    %2898 = vmatmul.f32.gmra.mxu0 %v324
    %v2899 = vpop.f32.mrf.mxu0
    %v2900 = vadd.f32 0.0, %v2899
    %2901 = vdwg.mxu0
    %v2902 = vperm.slane %v173, 6
    %v2903 = vmul.f32 %v2902, %v2900
    %v2904 = vadd.f32 %v2735, %v2903
    %v2905 = vperm.slane %v242, 7
    %v2906 = vsub.f32 %v2905, %v366
    %v2907 = vsub.f32 %v2905, %v371
    %v2908 = vsub.f32 %v2905, %v376
    %v2909 = vsub.f32 %v2905, %v381
    %v2910 = vsub.f32 %v2905, %v386
    %v2911 = vsub.f32 %v2905, %v391
    %v2912 = vsub.f32 %v2905, %v396
    %v2913 = vsub.f32 %v2905, %v401
    %v2914 = vsub.f32 %v2905, %v406
    %v2915 = vsub.f32 %v2905, %v411
    %v2916 = vsub.f32 %v2905, %v416
    %v2917 = vsub.f32 %v2905, %v421
    %v2918 = vsub.f32 %v2905, %v426
    %v2919 = vsub.f32 %v2905, %v431
    %v2920 = vsub.f32 %v2905, %v436
    %v2921 = vsub.f32 %v2905, %v441
    %v2922 = vand.u32 2147483647, %v2906
    %v2923 = vand.u32 2147483647, %v2907
    %v2924 = vand.u32 2147483647, %v2908
    %v2925 = vand.u32 2147483647, %v2909
    %v2926 = vand.u32 2147483647, %v2910
    %v2927 = vand.u32 2147483647, %v2911
    %v2928 = vand.u32 2147483647, %v2912
    %v2929 = vand.u32 2147483647, %v2913
    %v2930 = vand.u32 2147483647, %v2914
    %v2931 = vand.u32 2147483647, %v2915
    %v2932 = vand.u32 2147483647, %v2916
    %v2933 = vand.u32 2147483647, %v2917
    %v2934 = vand.u32 2147483647, %v2918
    %v2935 = vand.u32 2147483647, %v2919
    %v2936 = vand.u32 2147483647, %v2920
    %v2937 = vand.u32 2147483647, %v2921
    %v2938 = vsub.f32 1.0, %v2922
    %v2939 = vsub.f32 1.0, %v2923
    %v2940 = vsub.f32 1.0, %v2924
    %v2941 = vsub.f32 1.0, %v2925
    %v2942 = vsub.f32 1.0, %v2926
    %v2943 = vsub.f32 1.0, %v2927
    %v2944 = vsub.f32 1.0, %v2928
    %v2945 = vsub.f32 1.0, %v2929
    %v2946 = vsub.f32 1.0, %v2930
    %v2947 = vsub.f32 1.0, %v2931
    %v2948 = vsub.f32 1.0, %v2932
    %v2949 = vsub.f32 1.0, %v2933
    %v2950 = vsub.f32 1.0, %v2934
    %v2951 = vsub.f32 1.0, %v2935
    %v2952 = vsub.f32 1.0, %v2936
    %v2953 = vsub.f32 1.0, %v2937
    %v2954 = vmax.f32 %v2938, 0.0
    %v2955 = vmax.f32 %v2939, 0.0
    %v2956 = vmax.f32 %v2940, 0.0
    %v2957 = vmax.f32 %v2941, 0.0
    %v2958 = vmax.f32 %v2942, 0.0
    %v2959 = vmax.f32 %v2943, 0.0
    %v2960 = vmax.f32 %v2944, 0.0
    %v2961 = vmax.f32 %v2945, 0.0
    %v2962 = vmax.f32 %v2946, 0.0
    %v2963 = vmax.f32 %v2947, 0.0
    %v2964 = vmax.f32 %v2948, 0.0
    %v2965 = vmax.f32 %v2949, 0.0
    %v2966 = vmax.f32 %v2950, 0.0
    %v2967 = vmax.f32 %v2951, 0.0
    %v2968 = vmax.f32 %v2952, 0.0
    %v2969 = vmax.f32 %v2953, 0.0
    %v2970 = vperm.slane %v866, 7
    %v2971 = vsub.f32 %v2970, %v511
    %v2972 = vsub.f32 %v2970, %v516
    %v2973 = vsub.f32 %v2970, %v521
    %v2974 = vsub.f32 %v2970, %v526
    %v2975 = vsub.f32 %v2970, %v531
    %v2976 = vsub.f32 %v2970, %v536
    %v2977 = vsub.f32 %v2970, %v541
    %v2978 = vsub.f32 %v2970, %v546
    %v2979 = vsub.f32 %v2970, %v551
    %v2980 = vsub.f32 %v2970, %v556
    %v2981 = vsub.f32 %v2970, %v561
    %v2982 = vsub.f32 %v2970, %v566
    %v2983 = vsub.f32 %v2970, %v571
    %v2984 = vsub.f32 %v2970, %v576
    %v2985 = vsub.f32 %v2970, %v581
    %v2986 = vsub.f32 %v2970, %v586
    %v2987 = vand.u32 2147483647, %v2971
    %v2988 = vand.u32 2147483647, %v2972
    %v2989 = vand.u32 2147483647, %v2973
    %v2990 = vand.u32 2147483647, %v2974
    %v2991 = vand.u32 2147483647, %v2975
    %v2992 = vand.u32 2147483647, %v2976
    %v2993 = vand.u32 2147483647, %v2977
    %v2994 = vand.u32 2147483647, %v2978
    %v2995 = vand.u32 2147483647, %v2979
    %v2996 = vand.u32 2147483647, %v2980
    %v2997 = vand.u32 2147483647, %v2981
    %v2998 = vand.u32 2147483647, %v2982
    %v2999 = vand.u32 2147483647, %v2983
    %v3000 = vand.u32 2147483647, %v2984
    %v3001 = vand.u32 2147483647, %v2985
    %v3002 = vand.u32 2147483647, %v2986
    %v3003 = vsub.f32 1.0, %v2987
    %v3004 = vsub.f32 1.0, %v2988
    %v3005 = vsub.f32 1.0, %v2989
    %v3006 = vsub.f32 1.0, %v2990
    %v3007 = vsub.f32 1.0, %v2991
    %v3008 = vsub.f32 1.0, %v2992
    %v3009 = vsub.f32 1.0, %v2993
    %v3010 = vsub.f32 1.0, %v2994
    %v3011 = vsub.f32 1.0, %v2995
    %v3012 = vsub.f32 1.0, %v2996
    %v3013 = vsub.f32 1.0, %v2997
    %v3014 = vsub.f32 1.0, %v2998
    %v3015 = vsub.f32 1.0, %v2999
    %v3016 = vsub.f32 1.0, %v3000
    %v3017 = vsub.f32 1.0, %v3001
    %v3018 = vsub.f32 1.0, %v3002
    %v3019 = vmax.f32 %v3003, 0.0
    %v3020 = vmax.f32 %v3004, 0.0
    %v3021 = vmax.f32 %v3005, 0.0
    %v3022 = vmax.f32 %v3006, 0.0
    %v3023 = vmax.f32 %v3007, 0.0
    %v3024 = vmax.f32 %v3008, 0.0
    %v3025 = vmax.f32 %v3009, 0.0
    %v3026 = vmax.f32 %v3010, 0.0
    %v3027 = vmax.f32 %v3011, 0.0
    %v3028 = vmax.f32 %v3012, 0.0
    %v3029 = vmax.f32 %v3013, 0.0
    %v3030 = vmax.f32 %v3014, 0.0
    %v3031 = vmax.f32 %v3015, 0.0
    %v3032 = vmax.f32 %v3016, 0.0
    %v3033 = vmax.f32 %v3017, 0.0
    %v3034 = vmax.f32 %v3018, 0.0
    %v3035 = vmul.f32 %v2954, %v3019
    %v3036 = vmul.f32 %v2955, %v3020
    %v3037 = vmul.f32 %v2956, %v3021
    %v3038 = vmul.f32 %v2957, %v3022
    %v3039 = vmul.f32 %v2958, %v3023
    %v3040 = vmul.f32 %v2959, %v3024
    %v3041 = vmul.f32 %v2960, %v3025
    %v3042 = vmul.f32 %v2961, %v3026
    %v3043 = vmul.f32 %v2962, %v3027
    %v3044 = vmul.f32 %v2963, %v3028
    %v3045 = vmul.f32 %v2964, %v3029
    %v3046 = vmul.f32 %v2965, %v3030
    %v3047 = vmul.f32 %v2966, %v3031
    %v3048 = vmul.f32 %v2967, %v3032
    %v3049 = vmul.f32 %v2968, %v3033
    %v3050 = vmul.f32 %v2969, %v3034
    %v3052 = vrot.slane %v324, 4
    %3054 = vmatpush.msra.mxu0 %v3050
    %3055 = vmatpush.msra.mxu0 %v3049
    %3056 = vmatpush.msra.mxu0 %v3048
    %3057 = vmatpush.msra.mxu0 %v3047
    %3058 = vmatpush.msra.mxu0 %v3046
    %3059 = vmatpush.msra.mxu0 %v3045
    %3060 = vmatpush.msra.mxu0 %v3044
    %3061 = vmatpush.msra.mxu0 %v3043
    %3062 = vmatpush.msra.mxu0 %v3042
    %3063 = vmatpush.msra.mxu0 %v3041
    %3064 = vmatpush.msra.mxu0 %v3040
    %3065 = vmatpush.msra.mxu0 %v3039
    %3066 = vmatpush.msra.mxu0 %v3038
    %3067 = vmatpush.msra.mxu0 %v3037
    %3068 = vmatpush.msra.mxu0 %v3036
    %3069 = vmatpush.msra.mxu0 %v3035
    %3070 = vmatmul.f32.gmra.mxu0 %v3052
    %v3071 = vpop.f32.mrf.mxu0
    %v3072 = vadd.f32 0.0, %v3071
    %3073 = vdwg.mxu0
    %v3074 = vperm.slane %v158, 7
    %v3075 = vmul.f32 %v3074, %v3072
    %v3076 = vadd.f32 %v3075, 0.0
    %v3077 = vperm.slane %v245, 7
    %v3078 = vsub.f32 %v3077, %v366
    %v3079 = vsub.f32 %v3077, %v371
    %v3080 = vsub.f32 %v3077, %v376
    %v3081 = vsub.f32 %v3077, %v381
    %v3082 = vsub.f32 %v3077, %v386
    %v3083 = vsub.f32 %v3077, %v391
    %v3084 = vsub.f32 %v3077, %v396
    %v3085 = vsub.f32 %v3077, %v401
    %v3086 = vsub.f32 %v3077, %v406
    %v3087 = vsub.f32 %v3077, %v411
    %v3088 = vsub.f32 %v3077, %v416
    %v3089 = vsub.f32 %v3077, %v421
    %v3090 = vsub.f32 %v3077, %v426
    %v3091 = vsub.f32 %v3077, %v431
    %v3092 = vsub.f32 %v3077, %v436
    %v3093 = vsub.f32 %v3077, %v441
    %v3094 = vand.u32 2147483647, %v3078
    %v3095 = vand.u32 2147483647, %v3079
    %v3096 = vand.u32 2147483647, %v3080
    %v3097 = vand.u32 2147483647, %v3081
    %v3098 = vand.u32 2147483647, %v3082
    %v3099 = vand.u32 2147483647, %v3083
    %v3100 = vand.u32 2147483647, %v3084
    %v3101 = vand.u32 2147483647, %v3085
    %v3102 = vand.u32 2147483647, %v3086
    %v3103 = vand.u32 2147483647, %v3087
    %v3104 = vand.u32 2147483647, %v3088
    %v3105 = vand.u32 2147483647, %v3089
    %v3106 = vand.u32 2147483647, %v3090
    %v3107 = vand.u32 2147483647, %v3091
    %v3108 = vand.u32 2147483647, %v3092
    %v3109 = vand.u32 2147483647, %v3093
    %v3110 = vsub.f32 1.0, %v3094
    %v3111 = vsub.f32 1.0, %v3095
    %v3112 = vsub.f32 1.0, %v3096
    %v3113 = vsub.f32 1.0, %v3097
    %v3114 = vsub.f32 1.0, %v3098
    %v3115 = vsub.f32 1.0, %v3099
    %v3116 = vsub.f32 1.0, %v3100
    %v3117 = vsub.f32 1.0, %v3101
    %v3118 = vsub.f32 1.0, %v3102
    %v3119 = vsub.f32 1.0, %v3103
    %v3120 = vsub.f32 1.0, %v3104
    %v3121 = vsub.f32 1.0, %v3105
    %v3122 = vsub.f32 1.0, %v3106
    %v3123 = vsub.f32 1.0, %v3107
    %v3124 = vsub.f32 1.0, %v3108
    %v3125 = vsub.f32 1.0, %v3109
    %v3126 = vmax.f32 %v3110, 0.0
    %v3127 = vmax.f32 %v3111, 0.0
    %v3128 = vmax.f32 %v3112, 0.0
    %v3129 = vmax.f32 %v3113, 0.0
    %v3130 = vmax.f32 %v3114, 0.0
    %v3131 = vmax.f32 %v3115, 0.0
    %v3132 = vmax.f32 %v3116, 0.0
    %v3133 = vmax.f32 %v3117, 0.0
    %v3134 = vmax.f32 %v3118, 0.0
    %v3135 = vmax.f32 %v3119, 0.0
    %v3136 = vmax.f32 %v3120, 0.0
    %v3137 = vmax.f32 %v3121, 0.0
    %v3138 = vmax.f32 %v3122, 0.0
    %v3139 = vmax.f32 %v3123, 0.0
    %v3140 = vmax.f32 %v3124, 0.0
    %v3141 = vmax.f32 %v3125, 0.0
    %v3142 = vperm.slane %v1039, 7
    %v3143 = vsub.f32 %v3142, %v511
    %v3144 = vsub.f32 %v3142, %v516
    %v3145 = vsub.f32 %v3142, %v521
    %v3146 = vsub.f32 %v3142, %v526
    %v3147 = vsub.f32 %v3142, %v531
    %v3148 = vsub.f32 %v3142, %v536
    %v3149 = vsub.f32 %v3142, %v541
    %v3150 = vsub.f32 %v3142, %v546
    %v3151 = vsub.f32 %v3142, %v551
    %v3152 = vsub.f32 %v3142, %v556
    %v3153 = vsub.f32 %v3142, %v561
    %v3154 = vsub.f32 %v3142, %v566
    %v3155 = vsub.f32 %v3142, %v571
    %v3156 = vsub.f32 %v3142, %v576
    %v3157 = vsub.f32 %v3142, %v581
    %v3158 = vsub.f32 %v3142, %v586
    %v3159 = vand.u32 2147483647, %v3143
    %v3160 = vand.u32 2147483647, %v3144
    %v3161 = vand.u32 2147483647, %v3145
    %v3162 = vand.u32 2147483647, %v3146
    %v3163 = vand.u32 2147483647, %v3147
    %v3164 = vand.u32 2147483647, %v3148
    %v3165 = vand.u32 2147483647, %v3149
    %v3166 = vand.u32 2147483647, %v3150
    %v3167 = vand.u32 2147483647, %v3151
    %v3168 = vand.u32 2147483647, %v3152
    %v3169 = vand.u32 2147483647, %v3153
    %v3170 = vand.u32 2147483647, %v3154
    %v3171 = vand.u32 2147483647, %v3155
    %v3172 = vand.u32 2147483647, %v3156
    %v3173 = vand.u32 2147483647, %v3157
    %v3174 = vand.u32 2147483647, %v3158
    %v3175 = vsub.f32 1.0, %v3159
    %v3176 = vsub.f32 1.0, %v3160
    %v3177 = vsub.f32 1.0, %v3161
    %v3178 = vsub.f32 1.0, %v3162
    %v3179 = vsub.f32 1.0, %v3163
    %v3180 = vsub.f32 1.0, %v3164
    %v3181 = vsub.f32 1.0, %v3165
    %v3182 = vsub.f32 1.0, %v3166
    %v3183 = vsub.f32 1.0, %v3167
    %v3184 = vsub.f32 1.0, %v3168
    %v3185 = vsub.f32 1.0, %v3169
    %v3186 = vsub.f32 1.0, %v3170
    %v3187 = vsub.f32 1.0, %v3171
    %v3188 = vsub.f32 1.0, %v3172
    %v3189 = vsub.f32 1.0, %v3173
    %v3190 = vsub.f32 1.0, %v3174
    %v3191 = vmax.f32 %v3175, 0.0
    %v3192 = vmax.f32 %v3176, 0.0
    %v3193 = vmax.f32 %v3177, 0.0
    %v3194 = vmax.f32 %v3178, 0.0
    %v3195 = vmax.f32 %v3179, 0.0
    %v3196 = vmax.f32 %v3180, 0.0
    %v3197 = vmax.f32 %v3181, 0.0
    %v3198 = vmax.f32 %v3182, 0.0
    %v3199 = vmax.f32 %v3183, 0.0
    %v3200 = vmax.f32 %v3184, 0.0
    %v3201 = vmax.f32 %v3185, 0.0
    %v3202 = vmax.f32 %v3186, 0.0
    %v3203 = vmax.f32 %v3187, 0.0
    %v3204 = vmax.f32 %v3188, 0.0
    %v3205 = vmax.f32 %v3189, 0.0
    %v3206 = vmax.f32 %v3190, 0.0
    %v3207 = vmul.f32 %v3126, %v3191
    %v3208 = vmul.f32 %v3127, %v3192
    %v3209 = vmul.f32 %v3128, %v3193
    %v3210 = vmul.f32 %v3129, %v3194
    %v3211 = vmul.f32 %v3130, %v3195
    %v3212 = vmul.f32 %v3131, %v3196
    %v3213 = vmul.f32 %v3132, %v3197
    %v3214 = vmul.f32 %v3133, %v3198
    %v3215 = vmul.f32 %v3134, %v3199
    %v3216 = vmul.f32 %v3135, %v3200
    %v3217 = vmul.f32 %v3136, %v3201
    %v3218 = vmul.f32 %v3137, %v3202
    %v3219 = vmul.f32 %v3138, %v3203
    %v3220 = vmul.f32 %v3139, %v3204
    %v3221 = vmul.f32 %v3140, %v3205
    %v3222 = vmul.f32 %v3141, %v3206
    %3223 = vmatpush.msra.mxu0 %v3222
    %3224 = vmatpush.msra.mxu0 %v3221
    %3225 = vmatpush.msra.mxu0 %v3220
    %3226 = vmatpush.msra.mxu0 %v3219
    %3227 = vmatpush.msra.mxu0 %v3218
    %3228 = vmatpush.msra.mxu0 %v3217
    %3229 = vmatpush.msra.mxu0 %v3216
    %3230 = vmatpush.msra.mxu0 %v3215
    %3231 = vmatpush.msra.mxu0 %v3214
    %3232 = vmatpush.msra.mxu0 %v3213
    %3233 = vmatpush.msra.mxu0 %v3212
    %3234 = vmatpush.msra.mxu0 %v3211
    %3235 = vmatpush.msra.mxu0 %v3210
    %3236 = vmatpush.msra.mxu0 %v3209
    %3237 = vmatpush.msra.mxu0 %v3208
    %3238 = vmatpush.msra.mxu0 %v3207
    %3239 = vmatmul.f32.gmra.mxu0 %v3052
    %v3240 = vpop.f32.mrf.mxu0
    %v3241 = vadd.f32 0.0, %v3240
    %3242 = vdwg.mxu0
    %v3243 = vperm.slane %v173, 7
    %v3244 = vmul.f32 %v3243, %v3241
    %v3245 = vadd.f32 %v3076, %v3244
    %v3247 = vrot.slane %v1208, 4
    %v3250 = vrot.slane %v1887, 4
    %v3253 = vrot.slane %v2566, 4
    %v3256 = vrot.slane %v3245, 4
    %vm3258 = vcmask 1043456
    %v3259 = vsel %vm3258, %v862, %v3247
    %v3260 = vsel %vm3258, %v1546, %v3250
    %v3261 = vsel %vm3258, %v2225, %v3253
    %v3262 = vsel %vm3258, %v2904, %v3256
    %v3263 = vadd.f32 %v3259, 0.0
    %v3264 = vadd.f32 %v3260, 0.0
    %v3265 = vadd.f32 %v3261, 0.0
    %v3266 = vadd.f32 %v3262, 0.0
    %s3267 = scalar_lea.vmem %s4, 32
    %v3268 = vld [vmem:[%s3267] sm:$0xff]
    %v3269 = vld [vmem:[%s3267 + $0x8] sm:$0xff]
    %v3270 = vld [vmem:[%s3267 + $0x10] sm:$0xff]
    %v3271 = vld [vmem:[%s3267 + $0x18] sm:$0xff]
    %s3272 = scalar_lea.vmem %s1, 32
    %v3273 = vld [vmem:[%s3272] sm:$0xff]
    %v3274 = vld [vmem:[%s3272 + $0x8] sm:$0xff]
    %v3275 = vld [vmem:[%s3272 + $0x10] sm:$0xff]
    %v3276 = vld [vmem:[%s3272 + $0x18] sm:$0xff]
    %v3278 = vsel %vm86, %v3268, 0
    %v3281 = vsel %vm86, %v3269, 0
    %v3284 = vsel %vm86, %v3270, 0
    %v3287 = vsel %vm86, %v3271, 0
    %3289 = vmatpush.msra.mxu0 0.0
    %3290 = vmatpush.msra.mxu0 0.0
    %3291 = vmatpush.msra.mxu0 0.0
    %3292 = vmatpush.msra.mxu0 0.0
    %3293 = vmatpush.msra.mxu0 0.0
    %3294 = vmatpush.msra.mxu0 0.0
    %3295 = vmatpush.msra.mxu0 0.0
    %3296 = vmatpush.msra.mxu0 0.0
    %3297 = vmatpush.msra.mxu0 0.0
    %3298 = vmatpush.msra.mxu0 0.0
    %3299 = vmatpush.msra.mxu0 0.0
    %3300 = vmatpush.msra.mxu0 0.0
    %3301 = vmatpush.msra.mxu0 %v57
    %3302 = vmatpush.msra.mxu0 %v56
    %3303 = vmatpush.msra.mxu0 %v55
    %3304 = vmatpush.msra.mxu0 %v54
    %3305 = vmatmul.f32.gmra.mxu0 %v3278
    %v3306 = vpop.f32.mrf.mxu0
    %v3307 = vadd.f32 %v3273, %v3306
    %3308 = vmatmul.f32.gmra.mxu0 %v3281
    %v3309 = vpop.f32.mrf.mxu0
    %v3310 = vadd.f32 %v3274, %v3309
    %3311 = vmatmul.f32.gmra.mxu0 %v3284
    %v3312 = vpop.f32.mrf.mxu0
    %v3313 = vadd.f32 %v3275, %v3312
    %3314 = vmatmul.f32.gmra.mxu0 %v3287
    %v3315 = vpop.f32.mrf.mxu0
    %v3316 = vadd.f32 %v3276, %v3315
    %3317 = vdwg.mxu0
    %s3318 = scalar_lea.vmem %s5, 32
    %v3319 = vld [vmem:[%s3318] sm:$0xff]
    %v3320 = vld [vmem:[%s3318 + $0x8] sm:$0xff]
    %v3321 = vld [vmem:[%s3318 + $0x10] sm:$0xff]
    %v3322 = vld [vmem:[%s3318 + $0x18] sm:$0xff]
    %v3323 = vld [vmem:[%s3] sm:$0xff]
    %v3324 = vld [vmem:[%s3 + $0x8] sm:$0xff]
    %v3325 = vld [vmem:[%s3 + $0x10] sm:$0xff]
    %v3326 = vld [vmem:[%s3 + $0x18] sm:$0xff]
    %s3327 = scalar_lea.vmem %s6, 32
    %v3328 = vld [vmem:[%s3327] sm:$0xff]
    %v3329 = vld [vmem:[%s3327 + $0x8] sm:$0xff]
    %v3330 = vld [vmem:[%s3327 + $0x10] sm:$0xff]
    %v3331 = vld [vmem:[%s3327 + $0x18] sm:$0xff]
    %3333 = vset.pattern.permute.xlu0 0
    %3334 = vperm.xlu0 %3333, %v3328
    %v3335 = vpop.permute.xlu0 %3334
    %3338 = vset.pattern.permute.xlu0 0
    %3339 = vperm.xlu0 %3338, %v3329
    %v3340 = vpop.permute.xlu0 %3339
    %3343 = vset.pattern.permute.xlu0 0
    %3344 = vperm.xlu0 %3343, %v3330
    %v3345 = vpop.permute.xlu0 %3344
    %3348 = vset.pattern.permute.xlu0 0
    %3349 = vperm.xlu0 %3348, %v3331
    %v3350 = vpop.permute.xlu0 %3349
    %v3353 = vsel %vm86, %v3319, 0
    %v3356 = vsel %vm86, %v3320, 0
    %v3359 = vsel %vm86, %v3321, 0
    %v3362 = vsel %vm86, %v3322, 0
    %3364 = vmatpush.msra.mxu0 0.0
    %3365 = vmatpush.msra.mxu0 0.0
    %3366 = vmatpush.msra.mxu0 0.0
    %3367 = vmatpush.msra.mxu0 0.0
    %3368 = vmatpush.msra.mxu0 0.0
    %3369 = vmatpush.msra.mxu0 0.0
    %3370 = vmatpush.msra.mxu0 0.0
    %3371 = vmatpush.msra.mxu0 0.0
    %3372 = vmatpush.msra.mxu0 0.0
    %3373 = vmatpush.msra.mxu0 0.0
    %3374 = vmatpush.msra.mxu0 0.0
    %3375 = vmatpush.msra.mxu0 0.0
    %3376 = vmatpush.msra.mxu0 %v3326
    %3377 = vmatpush.msra.mxu0 %v3325
    %3378 = vmatpush.msra.mxu0 %v3324
    %3379 = vmatpush.msra.mxu0 %v3323
    %3380 = vmatmul.f32.gmra.mxu0 %v3353
    %v3381 = vpop.f32.mrf.mxu0
    %v3382 = vadd.f32 %v3335, %v3381
    %3383 = vmatmul.f32.gmra.mxu0 %v3356
    %v3384 = vpop.f32.mrf.mxu0
    %v3385 = vadd.f32 %v3340, %v3384
    %3386 = vmatmul.f32.gmra.mxu0 %v3359
    %v3387 = vpop.f32.mrf.mxu0
    %v3388 = vadd.f32 %v3345, %v3387
    %3389 = vmatmul.f32.gmra.mxu0 %v3362
    %v3390 = vpop.f32.mrf.mxu0
    %v3391 = vadd.f32 %v3350, %v3390
    %3392 = vdwg.mxu0
    %v3393 = vld [vmem:[%s13] sm:$0xff]
    %v3394 = vld [vmem:[%s13 + $0x8] sm:$0xff]
    %v3395 = vld [vmem:[%s13 + $0x10] sm:$0xff]
    %v3396 = vld [vmem:[%s13 + $0x18] sm:$0xff]
    %v3397 = vld [vmem:[%s14] sm:$0xff]
    %v3398 = vld [vmem:[%s14 + $0x8] sm:$0xff]
    %v3399 = vld [vmem:[%s14 + $0x10] sm:$0xff]
    %v3400 = vld [vmem:[%s14 + $0x18] sm:$0xff]
    %s3401 = scalar_lea.vmem %s15, 1
    %v3402 = vld [vmem:[%s3401] sm:$0x1]
    %v3403 = vmax.f32 %v3313, -1.0
    %v3404 = vmin.f32 %v3403, 4.0
    %v3405 = vadd.f32 %v3404, %v3402
    %v3406 = vperm.slane %v3307, 0
    %3408 = vset.pattern.permute.xlu0 0
    %3409 = vperm.xlu0 %3408, %v3397
    %v3410 = vpop.permute.xlu0 %3409
    %3413 = vset.pattern.permute.xlu0 0
    %3414 = vperm.xlu0 %3413, %v3398
    %v3415 = vpop.permute.xlu0 %3414
    %3418 = vset.pattern.permute.xlu0 0
    %3419 = vperm.xlu0 %3418, %v3399
    %v3420 = vpop.permute.xlu0 %3419
    %3423 = vset.pattern.permute.xlu0 0
    %3424 = vperm.xlu0 %3423, %v3400
    %v3425 = vpop.permute.xlu0 %3424
    %v3427 = vsub.f32 %v3406, %v3410
    %v3428 = vsub.f32 %v3406, %v3415
    %v3429 = vsub.f32 %v3406, %v3420
    %v3430 = vsub.f32 %v3406, %v3425
    %v3431 = vand.u32 2147483647, %v3427
    %v3432 = vand.u32 2147483647, %v3428
    %v3433 = vand.u32 2147483647, %v3429
    %v3434 = vand.u32 2147483647, %v3430
    %v3435 = vsub.f32 1.0, %v3431
    %v3436 = vsub.f32 1.0, %v3432
    %v3437 = vsub.f32 1.0, %v3433
    %v3438 = vsub.f32 1.0, %v3434
    %v3439 = vmax.f32 %v3435, 0.0
    %v3440 = vmax.f32 %v3436, 0.0
    %v3441 = vmax.f32 %v3437, 0.0
    %v3442 = vmax.f32 %v3438, 0.0
    %v3443 = vperm.slane %v3405, 0
    %3445 = vset.pattern.permute.xlu0 0
    %3446 = vperm.xlu0 %3445, %v3393
    %v3447 = vpop.permute.xlu0 %3446
    %3450 = vset.pattern.permute.xlu0 0
    %3451 = vperm.xlu0 %3450, %v3394
    %v3452 = vpop.permute.xlu0 %3451
    %3455 = vset.pattern.permute.xlu0 0
    %3456 = vperm.xlu0 %3455, %v3395
    %v3457 = vpop.permute.xlu0 %3456
    %3460 = vset.pattern.permute.xlu0 0
    %3461 = vperm.xlu0 %3460, %v3396
    %v3462 = vpop.permute.xlu0 %3461
    %v3464 = vsub.f32 %v3443, %v3447
    %v3465 = vsub.f32 %v3443, %v3452
    %v3466 = vsub.f32 %v3443, %v3457
    %v3467 = vsub.f32 %v3443, %v3462
    %v3468 = vand.u32 2147483647, %v3464
    %v3469 = vand.u32 2147483647, %v3465
    %v3470 = vand.u32 2147483647, %v3466
    %v3471 = vand.u32 2147483647, %v3467
    %v3472 = vsub.f32 1.0, %v3468
    %v3473 = vsub.f32 1.0, %v3469
    %v3474 = vsub.f32 1.0, %v3470
    %v3475 = vsub.f32 1.0, %v3471
    %v3476 = vmax.f32 %v3472, 0.0
    %v3477 = vmax.f32 %v3473, 0.0
    %v3478 = vmax.f32 %v3474, 0.0
    %v3479 = vmax.f32 %v3475, 0.0
    %v3480 = vmul.f32 %v3439, %v3476
    %v3481 = vmul.f32 %v3440, %v3477
    %v3482 = vmul.f32 %v3441, %v3478
    %v3483 = vmul.f32 %v3442, %v3479
    %v3485 = vsel %vm86, %v3382, 0
    %3487 = vmatpush.msra.mxu0 0.0
    %3488 = vmatpush.msra.mxu0 0.0
    %3489 = vmatpush.msra.mxu0 0.0
    %3490 = vmatpush.msra.mxu0 0.0
    %3491 = vmatpush.msra.mxu0 0.0
    %3492 = vmatpush.msra.mxu0 0.0
    %3493 = vmatpush.msra.mxu0 0.0
    %3494 = vmatpush.msra.mxu0 0.0
    %3495 = vmatpush.msra.mxu0 0.0
    %3496 = vmatpush.msra.mxu0 0.0
    %3497 = vmatpush.msra.mxu0 0.0
    %3498 = vmatpush.msra.mxu0 0.0
    %3499 = vmatpush.msra.mxu0 %v3483
    %3500 = vmatpush.msra.mxu0 %v3482
    %3501 = vmatpush.msra.mxu0 %v3481
    %3502 = vmatpush.msra.mxu0 %v3480
    %3503 = vmatmul.f32.gmra.mxu0 %v3485
    %v3504 = vpop.f32.mrf.mxu0
    %v3505 = vadd.f32 0.0, %v3504
    %3506 = vdwg.mxu0
    %v3507 = vperm.slane %v188, 0
    %v3508 = vmul.f32 %v3507, %v3505
    %v3509 = vadd.f32 %v3508, 0.0
    %v3510 = vmax.f32 %v3316, -1.0
    %v3511 = vmin.f32 %v3510, 4.0
    %v3512 = vadd.f32 %v3511, %v3402
    %v3513 = vperm.slane %v3310, 0
    %v3514 = vsub.f32 %v3513, %v3410
    %v3515 = vsub.f32 %v3513, %v3415
    %v3516 = vsub.f32 %v3513, %v3420
    %v3517 = vsub.f32 %v3513, %v3425
    %v3518 = vand.u32 2147483647, %v3514
    %v3519 = vand.u32 2147483647, %v3515
    %v3520 = vand.u32 2147483647, %v3516
    %v3521 = vand.u32 2147483647, %v3517
    %v3522 = vsub.f32 1.0, %v3518
    %v3523 = vsub.f32 1.0, %v3519
    %v3524 = vsub.f32 1.0, %v3520
    %v3525 = vsub.f32 1.0, %v3521
    %v3526 = vmax.f32 %v3522, 0.0
    %v3527 = vmax.f32 %v3523, 0.0
    %v3528 = vmax.f32 %v3524, 0.0
    %v3529 = vmax.f32 %v3525, 0.0
    %v3530 = vperm.slane %v3512, 0
    %v3531 = vsub.f32 %v3530, %v3447
    %v3532 = vsub.f32 %v3530, %v3452
    %v3533 = vsub.f32 %v3530, %v3457
    %v3534 = vsub.f32 %v3530, %v3462
    %v3535 = vand.u32 2147483647, %v3531
    %v3536 = vand.u32 2147483647, %v3532
    %v3537 = vand.u32 2147483647, %v3533
    %v3538 = vand.u32 2147483647, %v3534
    %v3539 = vsub.f32 1.0, %v3535
    %v3540 = vsub.f32 1.0, %v3536
    %v3541 = vsub.f32 1.0, %v3537
    %v3542 = vsub.f32 1.0, %v3538
    %v3543 = vmax.f32 %v3539, 0.0
    %v3544 = vmax.f32 %v3540, 0.0
    %v3545 = vmax.f32 %v3541, 0.0
    %v3546 = vmax.f32 %v3542, 0.0
    %v3547 = vmul.f32 %v3526, %v3543
    %v3548 = vmul.f32 %v3527, %v3544
    %v3549 = vmul.f32 %v3528, %v3545
    %v3550 = vmul.f32 %v3529, %v3546
    %3551 = vmatpush.msra.mxu0 0.0
    %3552 = vmatpush.msra.mxu0 0.0
    %3553 = vmatpush.msra.mxu0 0.0
    %3554 = vmatpush.msra.mxu0 0.0
    %3555 = vmatpush.msra.mxu0 0.0
    %3556 = vmatpush.msra.mxu0 0.0
    %3557 = vmatpush.msra.mxu0 0.0
    %3558 = vmatpush.msra.mxu0 0.0
    %3559 = vmatpush.msra.mxu0 0.0
    %3560 = vmatpush.msra.mxu0 0.0
    %3561 = vmatpush.msra.mxu0 0.0
    %3562 = vmatpush.msra.mxu0 0.0
    %3563 = vmatpush.msra.mxu0 %v3550
    %3564 = vmatpush.msra.mxu0 %v3549
    %3565 = vmatpush.msra.mxu0 %v3548
    %3566 = vmatpush.msra.mxu0 %v3547
    %3567 = vmatmul.f32.gmra.mxu0 %v3485
    %v3568 = vpop.f32.mrf.mxu0
    %v3569 = vadd.f32 0.0, %v3568
    %3570 = vdwg.mxu0
    %v3571 = vperm.slane %v203, 0
    %v3572 = vmul.f32 %v3571, %v3569
    %v3573 = vadd.f32 %v3509, %v3572
    %v3575 = vperm.slane %v3402, 0
    %v3577 = vadd.f32 %v3404, %v3575
    %v3578 = vperm.slane %v3307, 1
    %v3579 = vsub.f32 %v3578, %v3410
    %v3580 = vsub.f32 %v3578, %v3415
    %v3581 = vsub.f32 %v3578, %v3420
    %v3582 = vsub.f32 %v3578, %v3425
    %v3583 = vand.u32 2147483647, %v3579
    %v3584 = vand.u32 2147483647, %v3580
    %v3585 = vand.u32 2147483647, %v3581
    %v3586 = vand.u32 2147483647, %v3582
    %v3587 = vsub.f32 1.0, %v3583
    %v3588 = vsub.f32 1.0, %v3584
    %v3589 = vsub.f32 1.0, %v3585
    %v3590 = vsub.f32 1.0, %v3586
    %v3591 = vmax.f32 %v3587, 0.0
    %v3592 = vmax.f32 %v3588, 0.0
    %v3593 = vmax.f32 %v3589, 0.0
    %v3594 = vmax.f32 %v3590, 0.0
    %v3595 = vperm.slane %v3577, 1
    %v3596 = vsub.f32 %v3595, %v3447
    %v3597 = vsub.f32 %v3595, %v3452
    %v3598 = vsub.f32 %v3595, %v3457
    %v3599 = vsub.f32 %v3595, %v3462
    %v3600 = vand.u32 2147483647, %v3596
    %v3601 = vand.u32 2147483647, %v3597
    %v3602 = vand.u32 2147483647, %v3598
    %v3603 = vand.u32 2147483647, %v3599
    %v3604 = vsub.f32 1.0, %v3600
    %v3605 = vsub.f32 1.0, %v3601
    %v3606 = vsub.f32 1.0, %v3602
    %v3607 = vsub.f32 1.0, %v3603
    %v3608 = vmax.f32 %v3604, 0.0
    %v3609 = vmax.f32 %v3605, 0.0
    %v3610 = vmax.f32 %v3606, 0.0
    %v3611 = vmax.f32 %v3607, 0.0
    %v3612 = vmul.f32 %v3591, %v3608
    %v3613 = vmul.f32 %v3592, %v3609
    %v3614 = vmul.f32 %v3593, %v3610
    %v3615 = vmul.f32 %v3594, %v3611
    %v3616 = vrot.slane %v3382, 4
    %v3617 = vsel %vm86, %v3616, 0
    %3619 = vmatpush.msra.mxu0 0.0
    %3620 = vmatpush.msra.mxu0 0.0
    %3621 = vmatpush.msra.mxu0 0.0
    %3622 = vmatpush.msra.mxu0 0.0
    %3623 = vmatpush.msra.mxu0 0.0
    %3624 = vmatpush.msra.mxu0 0.0
    %3625 = vmatpush.msra.mxu0 0.0
    %3626 = vmatpush.msra.mxu0 0.0
    %3627 = vmatpush.msra.mxu0 0.0
    %3628 = vmatpush.msra.mxu0 0.0
    %3629 = vmatpush.msra.mxu0 0.0
    %3630 = vmatpush.msra.mxu0 0.0
    %3631 = vmatpush.msra.mxu0 %v3615
    %3632 = vmatpush.msra.mxu0 %v3614
    %3633 = vmatpush.msra.mxu0 %v3613
    %3634 = vmatpush.msra.mxu0 %v3612
    %3635 = vmatmul.f32.gmra.mxu0 %v3617
    %v3636 = vpop.f32.mrf.mxu0
    %v3637 = vadd.f32 0.0, %v3636
    %3638 = vdwg.mxu0
    %v3639 = vperm.slane %v188, 1
    %v3640 = vmul.f32 %v3639, %v3637
    %v3641 = vadd.f32 %v3640, 0.0
    %v3642 = vadd.f32 %v3511, %v3575
    %v3643 = vperm.slane %v3310, 1
    %v3644 = vsub.f32 %v3643, %v3410
    %v3645 = vsub.f32 %v3643, %v3415
    %v3646 = vsub.f32 %v3643, %v3420
    %v3647 = vsub.f32 %v3643, %v3425
    %v3648 = vand.u32 2147483647, %v3644
    %v3649 = vand.u32 2147483647, %v3645
    %v3650 = vand.u32 2147483647, %v3646
    %v3651 = vand.u32 2147483647, %v3647
    %v3652 = vsub.f32 1.0, %v3648
    %v3653 = vsub.f32 1.0, %v3649
    %v3654 = vsub.f32 1.0, %v3650
    %v3655 = vsub.f32 1.0, %v3651
    %v3656 = vmax.f32 %v3652, 0.0
    %v3657 = vmax.f32 %v3653, 0.0
    %v3658 = vmax.f32 %v3654, 0.0
    %v3659 = vmax.f32 %v3655, 0.0
    %v3660 = vperm.slane %v3642, 1
    %v3661 = vsub.f32 %v3660, %v3447
    %v3662 = vsub.f32 %v3660, %v3452
    %v3663 = vsub.f32 %v3660, %v3457
    %v3664 = vsub.f32 %v3660, %v3462
    %v3665 = vand.u32 2147483647, %v3661
    %v3666 = vand.u32 2147483647, %v3662
    %v3667 = vand.u32 2147483647, %v3663
    %v3668 = vand.u32 2147483647, %v3664
    %v3669 = vsub.f32 1.0, %v3665
    %v3670 = vsub.f32 1.0, %v3666
    %v3671 = vsub.f32 1.0, %v3667
    %v3672 = vsub.f32 1.0, %v3668
    %v3673 = vmax.f32 %v3669, 0.0
    %v3674 = vmax.f32 %v3670, 0.0
    %v3675 = vmax.f32 %v3671, 0.0
    %v3676 = vmax.f32 %v3672, 0.0
    %v3677 = vmul.f32 %v3656, %v3673
    %v3678 = vmul.f32 %v3657, %v3674
    %v3679 = vmul.f32 %v3658, %v3675
    %v3680 = vmul.f32 %v3659, %v3676
    %3681 = vmatpush.msra.mxu0 0.0
    %3682 = vmatpush.msra.mxu0 0.0
    %3683 = vmatpush.msra.mxu0 0.0
    %3684 = vmatpush.msra.mxu0 0.0
    %3685 = vmatpush.msra.mxu0 0.0
    %3686 = vmatpush.msra.mxu0 0.0
    %3687 = vmatpush.msra.mxu0 0.0
    %3688 = vmatpush.msra.mxu0 0.0
    %3689 = vmatpush.msra.mxu0 0.0
    %3690 = vmatpush.msra.mxu0 0.0
    %3691 = vmatpush.msra.mxu0 0.0
    %3692 = vmatpush.msra.mxu0 0.0
    %3693 = vmatpush.msra.mxu0 %v3680
    %3694 = vmatpush.msra.mxu0 %v3679
    %3695 = vmatpush.msra.mxu0 %v3678
    %3696 = vmatpush.msra.mxu0 %v3677
    %3697 = vmatmul.f32.gmra.mxu0 %v3617
    %v3698 = vpop.f32.mrf.mxu0
    %v3699 = vadd.f32 0.0, %v3698
    %3700 = vdwg.mxu0
    %v3701 = vperm.slane %v203, 1
    %v3702 = vmul.f32 %v3701, %v3699
    %v3703 = vadd.f32 %v3641, %v3702
    %v3704 = vperm.slane %v3307, 2
    %v3705 = vsub.f32 %v3704, %v3410
    %v3706 = vsub.f32 %v3704, %v3415
    %v3707 = vsub.f32 %v3704, %v3420
    %v3708 = vsub.f32 %v3704, %v3425
    %v3709 = vand.u32 2147483647, %v3705
    %v3710 = vand.u32 2147483647, %v3706
    %v3711 = vand.u32 2147483647, %v3707
    %v3712 = vand.u32 2147483647, %v3708
    %v3713 = vsub.f32 1.0, %v3709
    %v3714 = vsub.f32 1.0, %v3710
    %v3715 = vsub.f32 1.0, %v3711
    %v3716 = vsub.f32 1.0, %v3712
    %v3717 = vmax.f32 %v3713, 0.0
    %v3718 = vmax.f32 %v3714, 0.0
    %v3719 = vmax.f32 %v3715, 0.0
    %v3720 = vmax.f32 %v3716, 0.0
    %v3721 = vperm.slane %v3577, 2
    %v3722 = vsub.f32 %v3721, %v3447
    %v3723 = vsub.f32 %v3721, %v3452
    %v3724 = vsub.f32 %v3721, %v3457
    %v3725 = vsub.f32 %v3721, %v3462
    %v3726 = vand.u32 2147483647, %v3722
    %v3727 = vand.u32 2147483647, %v3723
    %v3728 = vand.u32 2147483647, %v3724
    %v3729 = vand.u32 2147483647, %v3725
    %v3730 = vsub.f32 1.0, %v3726
    %v3731 = vsub.f32 1.0, %v3727
    %v3732 = vsub.f32 1.0, %v3728
    %v3733 = vsub.f32 1.0, %v3729
    %v3734 = vmax.f32 %v3730, 0.0
    %v3735 = vmax.f32 %v3731, 0.0
    %v3736 = vmax.f32 %v3732, 0.0
    %v3737 = vmax.f32 %v3733, 0.0
    %v3738 = vmul.f32 %v3717, %v3734
    %v3739 = vmul.f32 %v3718, %v3735
    %v3740 = vmul.f32 %v3719, %v3736
    %v3741 = vmul.f32 %v3720, %v3737
    %v3743 = vsel %vm86, %v3385, 0
    %3745 = vmatpush.msra.mxu0 0.0
    %3746 = vmatpush.msra.mxu0 0.0
    %3747 = vmatpush.msra.mxu0 0.0
    %3748 = vmatpush.msra.mxu0 0.0
    %3749 = vmatpush.msra.mxu0 0.0
    %3750 = vmatpush.msra.mxu0 0.0
    %3751 = vmatpush.msra.mxu0 0.0
    %3752 = vmatpush.msra.mxu0 0.0
    %3753 = vmatpush.msra.mxu0 0.0
    %3754 = vmatpush.msra.mxu0 0.0
    %3755 = vmatpush.msra.mxu0 0.0
    %3756 = vmatpush.msra.mxu0 0.0
    %3757 = vmatpush.msra.mxu0 %v3741
    %3758 = vmatpush.msra.mxu0 %v3740
    %3759 = vmatpush.msra.mxu0 %v3739
    %3760 = vmatpush.msra.mxu0 %v3738
    %3761 = vmatmul.f32.gmra.mxu0 %v3743
    %v3762 = vpop.f32.mrf.mxu0
    %v3763 = vadd.f32 0.0, %v3762
    %3764 = vdwg.mxu0
    %v3765 = vperm.slane %v188, 2
    %v3766 = vmul.f32 %v3765, %v3763
    %v3767 = vadd.f32 %v3766, 0.0
    %v3768 = vperm.slane %v3310, 2
    %v3769 = vsub.f32 %v3768, %v3410
    %v3770 = vsub.f32 %v3768, %v3415
    %v3771 = vsub.f32 %v3768, %v3420
    %v3772 = vsub.f32 %v3768, %v3425
    %v3773 = vand.u32 2147483647, %v3769
    %v3774 = vand.u32 2147483647, %v3770
    %v3775 = vand.u32 2147483647, %v3771
    %v3776 = vand.u32 2147483647, %v3772
    %v3777 = vsub.f32 1.0, %v3773
    %v3778 = vsub.f32 1.0, %v3774
    %v3779 = vsub.f32 1.0, %v3775
    %v3780 = vsub.f32 1.0, %v3776
    %v3781 = vmax.f32 %v3777, 0.0
    %v3782 = vmax.f32 %v3778, 0.0
    %v3783 = vmax.f32 %v3779, 0.0
    %v3784 = vmax.f32 %v3780, 0.0
    %v3785 = vperm.slane %v3642, 2
    %v3786 = vsub.f32 %v3785, %v3447
    %v3787 = vsub.f32 %v3785, %v3452
    %v3788 = vsub.f32 %v3785, %v3457
    %v3789 = vsub.f32 %v3785, %v3462
    %v3790 = vand.u32 2147483647, %v3786
    %v3791 = vand.u32 2147483647, %v3787
    %v3792 = vand.u32 2147483647, %v3788
    %v3793 = vand.u32 2147483647, %v3789
    %v3794 = vsub.f32 1.0, %v3790
    %v3795 = vsub.f32 1.0, %v3791
    %v3796 = vsub.f32 1.0, %v3792
    %v3797 = vsub.f32 1.0, %v3793
    %v3798 = vmax.f32 %v3794, 0.0
    %v3799 = vmax.f32 %v3795, 0.0
    %v3800 = vmax.f32 %v3796, 0.0
    %v3801 = vmax.f32 %v3797, 0.0
    %v3802 = vmul.f32 %v3781, %v3798
    %v3803 = vmul.f32 %v3782, %v3799
    %v3804 = vmul.f32 %v3783, %v3800
    %v3805 = vmul.f32 %v3784, %v3801
    %3806 = vmatpush.msra.mxu0 0.0
    %3807 = vmatpush.msra.mxu0 0.0
    %3808 = vmatpush.msra.mxu0 0.0
    %3809 = vmatpush.msra.mxu0 0.0
    %3810 = vmatpush.msra.mxu0 0.0
    %3811 = vmatpush.msra.mxu0 0.0
    %3812 = vmatpush.msra.mxu0 0.0
    %3813 = vmatpush.msra.mxu0 0.0
    %3814 = vmatpush.msra.mxu0 0.0
    %3815 = vmatpush.msra.mxu0 0.0
    %3816 = vmatpush.msra.mxu0 0.0
    %3817 = vmatpush.msra.mxu0 0.0
    %3818 = vmatpush.msra.mxu0 %v3805
    %3819 = vmatpush.msra.mxu0 %v3804
    %3820 = vmatpush.msra.mxu0 %v3803
    %3821 = vmatpush.msra.mxu0 %v3802
    %3822 = vmatmul.f32.gmra.mxu0 %v3743
    %v3823 = vpop.f32.mrf.mxu0
    %v3824 = vadd.f32 0.0, %v3823
    %3825 = vdwg.mxu0
    %v3826 = vperm.slane %v203, 2
    %v3827 = vmul.f32 %v3826, %v3824
    %v3828 = vadd.f32 %v3767, %v3827
    %v3829 = vperm.slane %v3307, 3
    %v3830 = vsub.f32 %v3829, %v3410
    %v3831 = vsub.f32 %v3829, %v3415
    %v3832 = vsub.f32 %v3829, %v3420
    %v3833 = vsub.f32 %v3829, %v3425
    %v3834 = vand.u32 2147483647, %v3830
    %v3835 = vand.u32 2147483647, %v3831
    %v3836 = vand.u32 2147483647, %v3832
    %v3837 = vand.u32 2147483647, %v3833
    %v3838 = vsub.f32 1.0, %v3834
    %v3839 = vsub.f32 1.0, %v3835
    %v3840 = vsub.f32 1.0, %v3836
    %v3841 = vsub.f32 1.0, %v3837
    %v3842 = vmax.f32 %v3838, 0.0
    %v3843 = vmax.f32 %v3839, 0.0
    %v3844 = vmax.f32 %v3840, 0.0
    %v3845 = vmax.f32 %v3841, 0.0
    %v3846 = vperm.slane %v3577, 3
    %v3847 = vsub.f32 %v3846, %v3447
    %v3848 = vsub.f32 %v3846, %v3452
    %v3849 = vsub.f32 %v3846, %v3457
    %v3850 = vsub.f32 %v3846, %v3462
    %v3851 = vand.u32 2147483647, %v3847
    %v3852 = vand.u32 2147483647, %v3848
    %v3853 = vand.u32 2147483647, %v3849
    %v3854 = vand.u32 2147483647, %v3850
    %v3855 = vsub.f32 1.0, %v3851
    %v3856 = vsub.f32 1.0, %v3852
    %v3857 = vsub.f32 1.0, %v3853
    %v3858 = vsub.f32 1.0, %v3854
    %v3859 = vmax.f32 %v3855, 0.0
    %v3860 = vmax.f32 %v3856, 0.0
    %v3861 = vmax.f32 %v3857, 0.0
    %v3862 = vmax.f32 %v3858, 0.0
    %v3863 = vmul.f32 %v3842, %v3859
    %v3864 = vmul.f32 %v3843, %v3860
    %v3865 = vmul.f32 %v3844, %v3861
    %v3866 = vmul.f32 %v3845, %v3862
    %v3867 = vrot.slane %v3385, 4
    %v3868 = vsel %vm86, %v3867, 0
    %3870 = vmatpush.msra.mxu0 0.0
    %3871 = vmatpush.msra.mxu0 0.0
    %3872 = vmatpush.msra.mxu0 0.0
    %3873 = vmatpush.msra.mxu0 0.0
    %3874 = vmatpush.msra.mxu0 0.0
    %3875 = vmatpush.msra.mxu0 0.0
    %3876 = vmatpush.msra.mxu0 0.0
    %3877 = vmatpush.msra.mxu0 0.0
    %3878 = vmatpush.msra.mxu0 0.0
    %3879 = vmatpush.msra.mxu0 0.0
    %3880 = vmatpush.msra.mxu0 0.0
    %3881 = vmatpush.msra.mxu0 0.0
    %3882 = vmatpush.msra.mxu0 %v3866
    %3883 = vmatpush.msra.mxu0 %v3865
    %3884 = vmatpush.msra.mxu0 %v3864
    %3885 = vmatpush.msra.mxu0 %v3863
    %3886 = vmatmul.f32.gmra.mxu0 %v3868
    %v3887 = vpop.f32.mrf.mxu0
    %v3888 = vadd.f32 0.0, %v3887
    %3889 = vdwg.mxu0
    %v3890 = vperm.slane %v188, 3
    %v3891 = vmul.f32 %v3890, %v3888
    %v3892 = vadd.f32 %v3891, 0.0
    %v3893 = vperm.slane %v3310, 3
    %v3894 = vsub.f32 %v3893, %v3410
    %v3895 = vsub.f32 %v3893, %v3415
    %v3896 = vsub.f32 %v3893, %v3420
    %v3897 = vsub.f32 %v3893, %v3425
    %v3898 = vand.u32 2147483647, %v3894
    %v3899 = vand.u32 2147483647, %v3895
    %v3900 = vand.u32 2147483647, %v3896
    %v3901 = vand.u32 2147483647, %v3897
    %v3902 = vsub.f32 1.0, %v3898
    %v3903 = vsub.f32 1.0, %v3899
    %v3904 = vsub.f32 1.0, %v3900
    %v3905 = vsub.f32 1.0, %v3901
    %v3906 = vmax.f32 %v3902, 0.0
    %v3907 = vmax.f32 %v3903, 0.0
    %v3908 = vmax.f32 %v3904, 0.0
    %v3909 = vmax.f32 %v3905, 0.0
    %v3910 = vperm.slane %v3642, 3
    %v3911 = vsub.f32 %v3910, %v3447
    %v3912 = vsub.f32 %v3910, %v3452
    %v3913 = vsub.f32 %v3910, %v3457
    %v3914 = vsub.f32 %v3910, %v3462
    %v3915 = vand.u32 2147483647, %v3911
    %v3916 = vand.u32 2147483647, %v3912
    %v3917 = vand.u32 2147483647, %v3913
    %v3918 = vand.u32 2147483647, %v3914
    %v3919 = vsub.f32 1.0, %v3915
    %v3920 = vsub.f32 1.0, %v3916
    %v3921 = vsub.f32 1.0, %v3917
    %v3922 = vsub.f32 1.0, %v3918
    %v3923 = vmax.f32 %v3919, 0.0
    %v3924 = vmax.f32 %v3920, 0.0
    %v3925 = vmax.f32 %v3921, 0.0
    %v3926 = vmax.f32 %v3922, 0.0
    %v3927 = vmul.f32 %v3906, %v3923
    %v3928 = vmul.f32 %v3907, %v3924
    %v3929 = vmul.f32 %v3908, %v3925
    %v3930 = vmul.f32 %v3909, %v3926
    %3931 = vmatpush.msra.mxu0 0.0
    %3932 = vmatpush.msra.mxu0 0.0
    %3933 = vmatpush.msra.mxu0 0.0
    %3934 = vmatpush.msra.mxu0 0.0
    %3935 = vmatpush.msra.mxu0 0.0
    %3936 = vmatpush.msra.mxu0 0.0
    %3937 = vmatpush.msra.mxu0 0.0
    %3938 = vmatpush.msra.mxu0 0.0
    %3939 = vmatpush.msra.mxu0 0.0
    %3940 = vmatpush.msra.mxu0 0.0
    %3941 = vmatpush.msra.mxu0 0.0
    %3942 = vmatpush.msra.mxu0 0.0
    %3943 = vmatpush.msra.mxu0 %v3930
    %3944 = vmatpush.msra.mxu0 %v3929
    %3945 = vmatpush.msra.mxu0 %v3928
    %3946 = vmatpush.msra.mxu0 %v3927
    %3947 = vmatmul.f32.gmra.mxu0 %v3868
    %v3948 = vpop.f32.mrf.mxu0
    %v3949 = vadd.f32 0.0, %v3948
    %3950 = vdwg.mxu0
    %v3951 = vperm.slane %v203, 3
    %v3952 = vmul.f32 %v3951, %v3949
    %v3953 = vadd.f32 %v3892, %v3952
    %v3954 = vperm.slane %v3307, 4
    %v3955 = vsub.f32 %v3954, %v3410
    %v3956 = vsub.f32 %v3954, %v3415
    %v3957 = vsub.f32 %v3954, %v3420
    %v3958 = vsub.f32 %v3954, %v3425
    %v3959 = vand.u32 2147483647, %v3955
    %v3960 = vand.u32 2147483647, %v3956
    %v3961 = vand.u32 2147483647, %v3957
    %v3962 = vand.u32 2147483647, %v3958
    %v3963 = vsub.f32 1.0, %v3959
    %v3964 = vsub.f32 1.0, %v3960
    %v3965 = vsub.f32 1.0, %v3961
    %v3966 = vsub.f32 1.0, %v3962
    %v3967 = vmax.f32 %v3963, 0.0
    %v3968 = vmax.f32 %v3964, 0.0
    %v3969 = vmax.f32 %v3965, 0.0
    %v3970 = vmax.f32 %v3966, 0.0
    %v3971 = vperm.slane %v3577, 4
    %v3972 = vsub.f32 %v3971, %v3447
    %v3973 = vsub.f32 %v3971, %v3452
    %v3974 = vsub.f32 %v3971, %v3457
    %v3975 = vsub.f32 %v3971, %v3462
    %v3976 = vand.u32 2147483647, %v3972
    %v3977 = vand.u32 2147483647, %v3973
    %v3978 = vand.u32 2147483647, %v3974
    %v3979 = vand.u32 2147483647, %v3975
    %v3980 = vsub.f32 1.0, %v3976
    %v3981 = vsub.f32 1.0, %v3977
    %v3982 = vsub.f32 1.0, %v3978
    %v3983 = vsub.f32 1.0, %v3979
    %v3984 = vmax.f32 %v3980, 0.0
    %v3985 = vmax.f32 %v3981, 0.0
    %v3986 = vmax.f32 %v3982, 0.0
    %v3987 = vmax.f32 %v3983, 0.0
    %v3988 = vmul.f32 %v3967, %v3984
    %v3989 = vmul.f32 %v3968, %v3985
    %v3990 = vmul.f32 %v3969, %v3986
    %v3991 = vmul.f32 %v3970, %v3987
    %v3993 = vsel %vm86, %v3388, 0
    %3995 = vmatpush.msra.mxu0 0.0
    %3996 = vmatpush.msra.mxu0 0.0
    %3997 = vmatpush.msra.mxu0 0.0
    %3998 = vmatpush.msra.mxu0 0.0
    %3999 = vmatpush.msra.mxu0 0.0
    %4000 = vmatpush.msra.mxu0 0.0
    %4001 = vmatpush.msra.mxu0 0.0
    %4002 = vmatpush.msra.mxu0 0.0
    %4003 = vmatpush.msra.mxu0 0.0
    %4004 = vmatpush.msra.mxu0 0.0
    %4005 = vmatpush.msra.mxu0 0.0
    %4006 = vmatpush.msra.mxu0 0.0
    %4007 = vmatpush.msra.mxu0 %v3991
    %4008 = vmatpush.msra.mxu0 %v3990
    %4009 = vmatpush.msra.mxu0 %v3989
    %4010 = vmatpush.msra.mxu0 %v3988
    %4011 = vmatmul.f32.gmra.mxu0 %v3993
    %v4012 = vpop.f32.mrf.mxu0
    %v4013 = vadd.f32 0.0, %v4012
    %4014 = vdwg.mxu0
    %v4015 = vperm.slane %v188, 4
    %v4016 = vmul.f32 %v4015, %v4013
    %v4017 = vadd.f32 %v4016, 0.0
    %v4018 = vperm.slane %v3310, 4
    %v4019 = vsub.f32 %v4018, %v3410
    %v4020 = vsub.f32 %v4018, %v3415
    %v4021 = vsub.f32 %v4018, %v3420
    %v4022 = vsub.f32 %v4018, %v3425
    %v4023 = vand.u32 2147483647, %v4019
    %v4024 = vand.u32 2147483647, %v4020
    %v4025 = vand.u32 2147483647, %v4021
    %v4026 = vand.u32 2147483647, %v4022
    %v4027 = vsub.f32 1.0, %v4023
    %v4028 = vsub.f32 1.0, %v4024
    %v4029 = vsub.f32 1.0, %v4025
    %v4030 = vsub.f32 1.0, %v4026
    %v4031 = vmax.f32 %v4027, 0.0
    %v4032 = vmax.f32 %v4028, 0.0
    %v4033 = vmax.f32 %v4029, 0.0
    %v4034 = vmax.f32 %v4030, 0.0
    %v4035 = vperm.slane %v3642, 4
    %v4036 = vsub.f32 %v4035, %v3447
    %v4037 = vsub.f32 %v4035, %v3452
    %v4038 = vsub.f32 %v4035, %v3457
    %v4039 = vsub.f32 %v4035, %v3462
    %v4040 = vand.u32 2147483647, %v4036
    %v4041 = vand.u32 2147483647, %v4037
    %v4042 = vand.u32 2147483647, %v4038
    %v4043 = vand.u32 2147483647, %v4039
    %v4044 = vsub.f32 1.0, %v4040
    %v4045 = vsub.f32 1.0, %v4041
    %v4046 = vsub.f32 1.0, %v4042
    %v4047 = vsub.f32 1.0, %v4043
    %v4048 = vmax.f32 %v4044, 0.0
    %v4049 = vmax.f32 %v4045, 0.0
    %v4050 = vmax.f32 %v4046, 0.0
    %v4051 = vmax.f32 %v4047, 0.0
    %v4052 = vmul.f32 %v4031, %v4048
    %v4053 = vmul.f32 %v4032, %v4049
    %v4054 = vmul.f32 %v4033, %v4050
    %v4055 = vmul.f32 %v4034, %v4051
    %4056 = vmatpush.msra.mxu0 0.0
    %4057 = vmatpush.msra.mxu0 0.0
    %4058 = vmatpush.msra.mxu0 0.0
    %4059 = vmatpush.msra.mxu0 0.0
    %4060 = vmatpush.msra.mxu0 0.0
    %4061 = vmatpush.msra.mxu0 0.0
    %4062 = vmatpush.msra.mxu0 0.0
    %4063 = vmatpush.msra.mxu0 0.0
    %4064 = vmatpush.msra.mxu0 0.0
    %4065 = vmatpush.msra.mxu0 0.0
    %4066 = vmatpush.msra.mxu0 0.0
    %4067 = vmatpush.msra.mxu0 0.0
    %4068 = vmatpush.msra.mxu0 %v4055
    %4069 = vmatpush.msra.mxu0 %v4054
    %4070 = vmatpush.msra.mxu0 %v4053
    %4071 = vmatpush.msra.mxu0 %v4052
    %4072 = vmatmul.f32.gmra.mxu0 %v3993
    %v4073 = vpop.f32.mrf.mxu0
    %v4074 = vadd.f32 0.0, %v4073
    %4075 = vdwg.mxu0
    %v4076 = vperm.slane %v203, 4
    %v4077 = vmul.f32 %v4076, %v4074
    %v4078 = vadd.f32 %v4017, %v4077
    %v4079 = vperm.slane %v3307, 5
    %v4080 = vsub.f32 %v4079, %v3410
    %v4081 = vsub.f32 %v4079, %v3415
    %v4082 = vsub.f32 %v4079, %v3420
    %v4083 = vsub.f32 %v4079, %v3425
    %v4084 = vand.u32 2147483647, %v4080
    %v4085 = vand.u32 2147483647, %v4081
    %v4086 = vand.u32 2147483647, %v4082
    %v4087 = vand.u32 2147483647, %v4083
    %v4088 = vsub.f32 1.0, %v4084
    %v4089 = vsub.f32 1.0, %v4085
    %v4090 = vsub.f32 1.0, %v4086
    %v4091 = vsub.f32 1.0, %v4087
    %v4092 = vmax.f32 %v4088, 0.0
    %v4093 = vmax.f32 %v4089, 0.0
    %v4094 = vmax.f32 %v4090, 0.0
    %v4095 = vmax.f32 %v4091, 0.0
    %v4096 = vperm.slane %v3577, 5
    %v4097 = vsub.f32 %v4096, %v3447
    %v4098 = vsub.f32 %v4096, %v3452
    %v4099 = vsub.f32 %v4096, %v3457
    %v4100 = vsub.f32 %v4096, %v3462
    %v4101 = vand.u32 2147483647, %v4097
    %v4102 = vand.u32 2147483647, %v4098
    %v4103 = vand.u32 2147483647, %v4099
    %v4104 = vand.u32 2147483647, %v4100
    %v4105 = vsub.f32 1.0, %v4101
    %v4106 = vsub.f32 1.0, %v4102
    %v4107 = vsub.f32 1.0, %v4103
    %v4108 = vsub.f32 1.0, %v4104
    %v4109 = vmax.f32 %v4105, 0.0
    %v4110 = vmax.f32 %v4106, 0.0
    %v4111 = vmax.f32 %v4107, 0.0
    %v4112 = vmax.f32 %v4108, 0.0
    %v4113 = vmul.f32 %v4092, %v4109
    %v4114 = vmul.f32 %v4093, %v4110
    %v4115 = vmul.f32 %v4094, %v4111
    %v4116 = vmul.f32 %v4095, %v4112
    %v4117 = vrot.slane %v3388, 4
    %v4118 = vsel %vm86, %v4117, 0
    %4120 = vmatpush.msra.mxu0 0.0
    %4121 = vmatpush.msra.mxu0 0.0
    %4122 = vmatpush.msra.mxu0 0.0
    %4123 = vmatpush.msra.mxu0 0.0
    %4124 = vmatpush.msra.mxu0 0.0
    %4125 = vmatpush.msra.mxu0 0.0
    %4126 = vmatpush.msra.mxu0 0.0
    %4127 = vmatpush.msra.mxu0 0.0
    %4128 = vmatpush.msra.mxu0 0.0
    %4129 = vmatpush.msra.mxu0 0.0
    %4130 = vmatpush.msra.mxu0 0.0
    %4131 = vmatpush.msra.mxu0 0.0
    %4132 = vmatpush.msra.mxu0 %v4116
    %4133 = vmatpush.msra.mxu0 %v4115
    %4134 = vmatpush.msra.mxu0 %v4114
    %4135 = vmatpush.msra.mxu0 %v4113
    %4136 = vmatmul.f32.gmra.mxu0 %v4118
    %v4137 = vpop.f32.mrf.mxu0
    %v4138 = vadd.f32 0.0, %v4137
    %4139 = vdwg.mxu0
    %v4140 = vperm.slane %v188, 5
    %v4141 = vmul.f32 %v4140, %v4138
    %v4142 = vadd.f32 %v4141, 0.0
    %v4143 = vperm.slane %v3310, 5
    %v4144 = vsub.f32 %v4143, %v3410
    %v4145 = vsub.f32 %v4143, %v3415
    %v4146 = vsub.f32 %v4143, %v3420
    %v4147 = vsub.f32 %v4143, %v3425
    %v4148 = vand.u32 2147483647, %v4144
    %v4149 = vand.u32 2147483647, %v4145
    %v4150 = vand.u32 2147483647, %v4146
    %v4151 = vand.u32 2147483647, %v4147
    %v4152 = vsub.f32 1.0, %v4148
    %v4153 = vsub.f32 1.0, %v4149
    %v4154 = vsub.f32 1.0, %v4150
    %v4155 = vsub.f32 1.0, %v4151
    %v4156 = vmax.f32 %v4152, 0.0
    %v4157 = vmax.f32 %v4153, 0.0
    %v4158 = vmax.f32 %v4154, 0.0
    %v4159 = vmax.f32 %v4155, 0.0
    %v4160 = vperm.slane %v3642, 5
    %v4161 = vsub.f32 %v4160, %v3447
    %v4162 = vsub.f32 %v4160, %v3452
    %v4163 = vsub.f32 %v4160, %v3457
    %v4164 = vsub.f32 %v4160, %v3462
    %v4165 = vand.u32 2147483647, %v4161
    %v4166 = vand.u32 2147483647, %v4162
    %v4167 = vand.u32 2147483647, %v4163
    %v4168 = vand.u32 2147483647, %v4164
    %v4169 = vsub.f32 1.0, %v4165
    %v4170 = vsub.f32 1.0, %v4166
    %v4171 = vsub.f32 1.0, %v4167
    %v4172 = vsub.f32 1.0, %v4168
    %v4173 = vmax.f32 %v4169, 0.0
    %v4174 = vmax.f32 %v4170, 0.0
    %v4175 = vmax.f32 %v4171, 0.0
    %v4176 = vmax.f32 %v4172, 0.0
    %v4177 = vmul.f32 %v4156, %v4173
    %v4178 = vmul.f32 %v4157, %v4174
    %v4179 = vmul.f32 %v4158, %v4175
    %v4180 = vmul.f32 %v4159, %v4176
    %4181 = vmatpush.msra.mxu0 0.0
    %4182 = vmatpush.msra.mxu0 0.0
    %4183 = vmatpush.msra.mxu0 0.0
    %4184 = vmatpush.msra.mxu0 0.0
    %4185 = vmatpush.msra.mxu0 0.0
    %4186 = vmatpush.msra.mxu0 0.0
    %4187 = vmatpush.msra.mxu0 0.0
    %4188 = vmatpush.msra.mxu0 0.0
    %4189 = vmatpush.msra.mxu0 0.0
    %4190 = vmatpush.msra.mxu0 0.0
    %4191 = vmatpush.msra.mxu0 0.0
    %4192 = vmatpush.msra.mxu0 0.0
    %4193 = vmatpush.msra.mxu0 %v4180
    %4194 = vmatpush.msra.mxu0 %v4179
    %4195 = vmatpush.msra.mxu0 %v4178
    %4196 = vmatpush.msra.mxu0 %v4177
    %4197 = vmatmul.f32.gmra.mxu0 %v4118
    %v4198 = vpop.f32.mrf.mxu0
    %v4199 = vadd.f32 0.0, %v4198
    %4200 = vdwg.mxu0
    %v4201 = vperm.slane %v203, 5
    %v4202 = vmul.f32 %v4201, %v4199
    %v4203 = vadd.f32 %v4142, %v4202
    %v4204 = vperm.slane %v3307, 6
    %v4205 = vsub.f32 %v4204, %v3410
    %v4206 = vsub.f32 %v4204, %v3415
    %v4207 = vsub.f32 %v4204, %v3420
    %v4208 = vsub.f32 %v4204, %v3425
    %v4209 = vand.u32 2147483647, %v4205
    %v4210 = vand.u32 2147483647, %v4206
    %v4211 = vand.u32 2147483647, %v4207
    %v4212 = vand.u32 2147483647, %v4208
    %v4213 = vsub.f32 1.0, %v4209
    %v4214 = vsub.f32 1.0, %v4210
    %v4215 = vsub.f32 1.0, %v4211
    %v4216 = vsub.f32 1.0, %v4212
    %v4217 = vmax.f32 %v4213, 0.0
    %v4218 = vmax.f32 %v4214, 0.0
    %v4219 = vmax.f32 %v4215, 0.0
    %v4220 = vmax.f32 %v4216, 0.0
    %v4221 = vperm.slane %v3577, 6
    %v4222 = vsub.f32 %v4221, %v3447
    %v4223 = vsub.f32 %v4221, %v3452
    %v4224 = vsub.f32 %v4221, %v3457
    %v4225 = vsub.f32 %v4221, %v3462
    %v4226 = vand.u32 2147483647, %v4222
    %v4227 = vand.u32 2147483647, %v4223
    %v4228 = vand.u32 2147483647, %v4224
    %v4229 = vand.u32 2147483647, %v4225
    %v4230 = vsub.f32 1.0, %v4226
    %v4231 = vsub.f32 1.0, %v4227
    %v4232 = vsub.f32 1.0, %v4228
    %v4233 = vsub.f32 1.0, %v4229
    %v4234 = vmax.f32 %v4230, 0.0
    %v4235 = vmax.f32 %v4231, 0.0
    %v4236 = vmax.f32 %v4232, 0.0
    %v4237 = vmax.f32 %v4233, 0.0
    %v4238 = vmul.f32 %v4217, %v4234
    %v4239 = vmul.f32 %v4218, %v4235
    %v4240 = vmul.f32 %v4219, %v4236
    %v4241 = vmul.f32 %v4220, %v4237
    %v4243 = vsel %vm86, %v3391, 0
    %4245 = vmatpush.msra.mxu0 0.0
    %4246 = vmatpush.msra.mxu0 0.0
    %4247 = vmatpush.msra.mxu0 0.0
    %4248 = vmatpush.msra.mxu0 0.0
    %4249 = vmatpush.msra.mxu0 0.0
    %4250 = vmatpush.msra.mxu0 0.0
    %4251 = vmatpush.msra.mxu0 0.0
    %4252 = vmatpush.msra.mxu0 0.0
    %4253 = vmatpush.msra.mxu0 0.0
    %4254 = vmatpush.msra.mxu0 0.0
    %4255 = vmatpush.msra.mxu0 0.0
    %4256 = vmatpush.msra.mxu0 0.0
    %4257 = vmatpush.msra.mxu0 %v4241
    %4258 = vmatpush.msra.mxu0 %v4240
    %4259 = vmatpush.msra.mxu0 %v4239
    %4260 = vmatpush.msra.mxu0 %v4238
    %4261 = vmatmul.f32.gmra.mxu0 %v4243
    %v4262 = vpop.f32.mrf.mxu0
    %v4263 = vadd.f32 0.0, %v4262
    %4264 = vdwg.mxu0
    %v4265 = vperm.slane %v188, 6
    %v4266 = vmul.f32 %v4265, %v4263
    %v4267 = vadd.f32 %v4266, 0.0
    %v4268 = vperm.slane %v3310, 6
    %v4269 = vsub.f32 %v4268, %v3410
    %v4270 = vsub.f32 %v4268, %v3415
    %v4271 = vsub.f32 %v4268, %v3420
    %v4272 = vsub.f32 %v4268, %v3425
    %v4273 = vand.u32 2147483647, %v4269
    %v4274 = vand.u32 2147483647, %v4270
    %v4275 = vand.u32 2147483647, %v4271
    %v4276 = vand.u32 2147483647, %v4272
    %v4277 = vsub.f32 1.0, %v4273
    %v4278 = vsub.f32 1.0, %v4274
    %v4279 = vsub.f32 1.0, %v4275
    %v4280 = vsub.f32 1.0, %v4276
    %v4281 = vmax.f32 %v4277, 0.0
    %v4282 = vmax.f32 %v4278, 0.0
    %v4283 = vmax.f32 %v4279, 0.0
    %v4284 = vmax.f32 %v4280, 0.0
    %v4285 = vperm.slane %v3642, 6
    %v4286 = vsub.f32 %v4285, %v3447
    %v4287 = vsub.f32 %v4285, %v3452
    %v4288 = vsub.f32 %v4285, %v3457
    %v4289 = vsub.f32 %v4285, %v3462
    %v4290 = vand.u32 2147483647, %v4286
    %v4291 = vand.u32 2147483647, %v4287
    %v4292 = vand.u32 2147483647, %v4288
    %v4293 = vand.u32 2147483647, %v4289
    %v4294 = vsub.f32 1.0, %v4290
    %v4295 = vsub.f32 1.0, %v4291
    %v4296 = vsub.f32 1.0, %v4292
    %v4297 = vsub.f32 1.0, %v4293
    %v4298 = vmax.f32 %v4294, 0.0
    %v4299 = vmax.f32 %v4295, 0.0
    %v4300 = vmax.f32 %v4296, 0.0
    %v4301 = vmax.f32 %v4297, 0.0
    %v4302 = vmul.f32 %v4281, %v4298
    %v4303 = vmul.f32 %v4282, %v4299
    %v4304 = vmul.f32 %v4283, %v4300
    %v4305 = vmul.f32 %v4284, %v4301
    %4306 = vmatpush.msra.mxu0 0.0
    %4307 = vmatpush.msra.mxu0 0.0
    %4308 = vmatpush.msra.mxu0 0.0
    %4309 = vmatpush.msra.mxu0 0.0
    %4310 = vmatpush.msra.mxu0 0.0
    %4311 = vmatpush.msra.mxu0 0.0
    %4312 = vmatpush.msra.mxu0 0.0
    %4313 = vmatpush.msra.mxu0 0.0
    %4314 = vmatpush.msra.mxu0 0.0
    %4315 = vmatpush.msra.mxu0 0.0
    %4316 = vmatpush.msra.mxu0 0.0
    %4317 = vmatpush.msra.mxu0 0.0
    %4318 = vmatpush.msra.mxu0 %v4305
    %4319 = vmatpush.msra.mxu0 %v4304
    %4320 = vmatpush.msra.mxu0 %v4303
    %4321 = vmatpush.msra.mxu0 %v4302
    %4322 = vmatmul.f32.gmra.mxu0 %v4243
    %v4323 = vpop.f32.mrf.mxu0
    %v4324 = vadd.f32 0.0, %v4323
    %4325 = vdwg.mxu0
    %v4326 = vperm.slane %v203, 6
    %v4327 = vmul.f32 %v4326, %v4324
    %v4328 = vadd.f32 %v4267, %v4327
    %v4329 = vperm.slane %v3307, 7
    %v4330 = vsub.f32 %v4329, %v3410
    %v4331 = vsub.f32 %v4329, %v3415
    %v4332 = vsub.f32 %v4329, %v3420
    %v4333 = vsub.f32 %v4329, %v3425
    %v4334 = vand.u32 2147483647, %v4330
    %v4335 = vand.u32 2147483647, %v4331
    %v4336 = vand.u32 2147483647, %v4332
    %v4337 = vand.u32 2147483647, %v4333
    %v4338 = vsub.f32 1.0, %v4334
    %v4339 = vsub.f32 1.0, %v4335
    %v4340 = vsub.f32 1.0, %v4336
    %v4341 = vsub.f32 1.0, %v4337
    %v4342 = vmax.f32 %v4338, 0.0
    %v4343 = vmax.f32 %v4339, 0.0
    %v4344 = vmax.f32 %v4340, 0.0
    %v4345 = vmax.f32 %v4341, 0.0
    %v4346 = vperm.slane %v3577, 7
    %v4347 = vsub.f32 %v4346, %v3447
    %v4348 = vsub.f32 %v4346, %v3452
    %v4349 = vsub.f32 %v4346, %v3457
    %v4350 = vsub.f32 %v4346, %v3462
    %v4351 = vand.u32 2147483647, %v4347
    %v4352 = vand.u32 2147483647, %v4348
    %v4353 = vand.u32 2147483647, %v4349
    %v4354 = vand.u32 2147483647, %v4350
    %v4355 = vsub.f32 1.0, %v4351
    %v4356 = vsub.f32 1.0, %v4352
    %v4357 = vsub.f32 1.0, %v4353
    %v4358 = vsub.f32 1.0, %v4354
    %v4359 = vmax.f32 %v4355, 0.0
    %v4360 = vmax.f32 %v4356, 0.0
    %v4361 = vmax.f32 %v4357, 0.0
    %v4362 = vmax.f32 %v4358, 0.0
    %v4363 = vmul.f32 %v4342, %v4359
    %v4364 = vmul.f32 %v4343, %v4360
    %v4365 = vmul.f32 %v4344, %v4361
    %v4366 = vmul.f32 %v4345, %v4362
    %v4367 = vrot.slane %v3391, 4
    %v4368 = vsel %vm86, %v4367, 0
    %4370 = vmatpush.msra.mxu0 0.0
    %4371 = vmatpush.msra.mxu0 0.0
    %4372 = vmatpush.msra.mxu0 0.0
    %4373 = vmatpush.msra.mxu0 0.0
    %4374 = vmatpush.msra.mxu0 0.0
    %4375 = vmatpush.msra.mxu0 0.0
    %4376 = vmatpush.msra.mxu0 0.0
    %4377 = vmatpush.msra.mxu0 0.0
    %4378 = vmatpush.msra.mxu0 0.0
    %4379 = vmatpush.msra.mxu0 0.0
    %4380 = vmatpush.msra.mxu0 0.0
    %4381 = vmatpush.msra.mxu0 0.0
    %4382 = vmatpush.msra.mxu0 %v4366
    %4383 = vmatpush.msra.mxu0 %v4365
    %4384 = vmatpush.msra.mxu0 %v4364
    %4385 = vmatpush.msra.mxu0 %v4363
    %4386 = vmatmul.f32.gmra.mxu0 %v4368
    %v4387 = vpop.f32.mrf.mxu0
    %v4388 = vadd.f32 0.0, %v4387
    %4389 = vdwg.mxu0
    %v4390 = vperm.slane %v188, 7
    %v4391 = vmul.f32 %v4390, %v4388
    %v4392 = vadd.f32 %v4391, 0.0
    %v4393 = vperm.slane %v3310, 7
    %v4394 = vsub.f32 %v4393, %v3410
    %v4395 = vsub.f32 %v4393, %v3415
    %v4396 = vsub.f32 %v4393, %v3420
    %v4397 = vsub.f32 %v4393, %v3425
    %v4398 = vand.u32 2147483647, %v4394
    %v4399 = vand.u32 2147483647, %v4395
    %v4400 = vand.u32 2147483647, %v4396
    %v4401 = vand.u32 2147483647, %v4397
    %v4402 = vsub.f32 1.0, %v4398
    %v4403 = vsub.f32 1.0, %v4399
    %v4404 = vsub.f32 1.0, %v4400
    %v4405 = vsub.f32 1.0, %v4401
    %v4406 = vmax.f32 %v4402, 0.0
    %v4407 = vmax.f32 %v4403, 0.0
    %v4408 = vmax.f32 %v4404, 0.0
    %v4409 = vmax.f32 %v4405, 0.0
    %v4410 = vperm.slane %v3642, 7
    %v4411 = vsub.f32 %v4410, %v3447
    %v4412 = vsub.f32 %v4410, %v3452
    %v4413 = vsub.f32 %v4410, %v3457
    %v4414 = vsub.f32 %v4410, %v3462
    %v4415 = vand.u32 2147483647, %v4411
    %v4416 = vand.u32 2147483647, %v4412
    %v4417 = vand.u32 2147483647, %v4413
    %v4418 = vand.u32 2147483647, %v4414
    %v4419 = vsub.f32 1.0, %v4415
    %v4420 = vsub.f32 1.0, %v4416
    %v4421 = vsub.f32 1.0, %v4417
    %v4422 = vsub.f32 1.0, %v4418
    %v4423 = vmax.f32 %v4419, 0.0
    %v4424 = vmax.f32 %v4420, 0.0
    %v4425 = vmax.f32 %v4421, 0.0
    %v4426 = vmax.f32 %v4422, 0.0
    %v4427 = vmul.f32 %v4406, %v4423
    %v4428 = vmul.f32 %v4407, %v4424
    %v4429 = vmul.f32 %v4408, %v4425
    %v4430 = vmul.f32 %v4409, %v4426
    %4431 = vmatpush.msra.mxu0 0.0
    %4432 = vmatpush.msra.mxu0 0.0
    %4433 = vmatpush.msra.mxu0 0.0
    %4434 = vmatpush.msra.mxu0 0.0
    %4435 = vmatpush.msra.mxu0 0.0
    %4436 = vmatpush.msra.mxu0 0.0
    %4437 = vmatpush.msra.mxu0 0.0
    %4438 = vmatpush.msra.mxu0 0.0
    %4439 = vmatpush.msra.mxu0 0.0
    %4440 = vmatpush.msra.mxu0 0.0
    %4441 = vmatpush.msra.mxu0 0.0
    %4442 = vmatpush.msra.mxu0 0.0
    %4443 = vmatpush.msra.mxu0 %v4430
    %4444 = vmatpush.msra.mxu0 %v4429
    %4445 = vmatpush.msra.mxu0 %v4428
    %4446 = vmatpush.msra.mxu0 %v4427
    %4447 = vmatmul.f32.gmra.mxu0 %v4368
    %v4448 = vpop.f32.mrf.mxu0
    %v4449 = vadd.f32 0.0, %v4448
    %4450 = vdwg.mxu0
    %v4451 = vperm.slane %v203, 7
    %v4452 = vmul.f32 %v4451, %v4449
    %v4453 = vadd.f32 %v4392, %v4452
    %v4455 = vrot.slane %v3703, 4
    %v4458 = vrot.slane %v3953, 4
    %v4461 = vrot.slane %v4203, 4
    %v4464 = vrot.slane %v4453, 4
    %v4466 = vsel %vm3258, %v3573, %v4455
    %v4467 = vsel %vm3258, %v3828, %v4458
    %v4468 = vsel %vm3258, %v4078, %v4461
    %v4469 = vsel %vm3258, %v4328, %v4464
    %v4470 = vadd.f32 %v3263, %v4466
    %v4471 = vadd.f32 %v3264, %v4467
    %v4472 = vadd.f32 %v3265, %v4468
    %v4473 = vadd.f32 %v3266, %v4469
    %v4474 = vld [vmem:[%s9] sm:$0xff]
    %v4475 = vld [vmem:[%s9 + $0x8] sm:$0xff]
    %v4476 = vld [vmem:[%s9 + $0x10] sm:$0xff]
    %v4477 = vld [vmem:[%s9 + $0x18] sm:$0xff]
    %v4478 = vld [vmem:[%s10] sm:$0xff]
    %v4479 = vld [vmem:[%s10 + $0x8] sm:$0xff]
    %v4480 = vld [vmem:[%s10 + $0x10] sm:$0xff]
    %v4481 = vld [vmem:[%s10 + $0x18] sm:$0xff]
    %4483 = vset.pattern.permute.xlu0 0
    %4484 = vperm.xlu0 %4483, %v4478
    %v4485 = vpop.permute.xlu0 %4484
    %4488 = vset.pattern.permute.xlu0 0
    %4489 = vperm.xlu0 %4488, %v4479
    %v4490 = vpop.permute.xlu0 %4489
    %4493 = vset.pattern.permute.xlu0 0
    %4494 = vperm.xlu0 %4493, %v4480
    %v4495 = vpop.permute.xlu0 %4494
    %4498 = vset.pattern.permute.xlu0 0
    %4499 = vperm.xlu0 %4498, %v4481
    %v4500 = vpop.permute.xlu0 %4499
    %v4503 = vsel %vm86, %v4474, 0
    %v4506 = vsel %vm86, %v4475, 0
    %v4509 = vsel %vm86, %v4476, 0
    %v4512 = vsel %vm86, %v4477, 0
    %4514 = vmatpush.msra.mxu0 0.0
    %4515 = vmatpush.msra.mxu0 0.0
    %4516 = vmatpush.msra.mxu0 0.0
    %4517 = vmatpush.msra.mxu0 0.0
    %4518 = vmatpush.msra.mxu0 0.0
    %4519 = vmatpush.msra.mxu0 0.0
    %4520 = vmatpush.msra.mxu0 0.0
    %4521 = vmatpush.msra.mxu0 0.0
    %4522 = vmatpush.msra.mxu0 0.0
    %4523 = vmatpush.msra.mxu0 0.0
    %4524 = vmatpush.msra.mxu0 0.0
    %4525 = vmatpush.msra.mxu0 0.0
    %4526 = vmatpush.msra.mxu0 %v4473
    %4527 = vmatpush.msra.mxu0 %v4472
    %4528 = vmatpush.msra.mxu0 %v4471
    %4529 = vmatpush.msra.mxu0 %v4470
    %4530 = vmatmul.f32.gmra.mxu0 %v4503
    %v4531 = vpop.f32.mrf.mxu0
    %v4532 = vadd.f32 %v4485, %v4531
    %4533 = vmatmul.f32.gmra.mxu0 %v4506
    %v4534 = vpop.f32.mrf.mxu0
    %v4535 = vadd.f32 %v4490, %v4534
    %4536 = vmatmul.f32.gmra.mxu0 %v4509
    %v4537 = vpop.f32.mrf.mxu0
    %v4538 = vadd.f32 %v4495, %v4537
    %4539 = vmatmul.f32.gmra.mxu0 %v4512
    %v4540 = vpop.f32.mrf.mxu0
    %v4541 = vadd.f32 %v4500, %v4540
    %4542 = vdwg.mxu0
    %4543 = vst [vmem:[#allocation2] sm:$0xff] %v4532
    %4544 = vst [vmem:[#allocation2 + $0x8] sm:$0xff] %v4535
    %4545 = vst [vmem:[#allocation2 + $0x10] sm:$0xff] %v4538
    %4546 = vst [vmem:[#allocation2 + $0x18] sm:$0xff] %v4541
    // Predicated region
    $region66: #{tpu_custom_call.1} parent=1 // pred_check
      _
    $region67: #{tpu_custom_call.1} parent=1 // pred_check_branch
      %4548 = sbr.rel (0) target = $region69
    $region68: #{tpu_custom_call.1} parent=1 // pred_region
      %4550 = vsyncadd [#allocation3], 0
      %s4551 = sshll.u32 [#allocation2], 4
      %s4552 = int_to_ptr.vmem [resolvable:$true] %s4551
      %s4553 = sshll.u32 %s16, 4
      %s4554 = int_to_ptr.hbm [resolvable:$true] %s4553
      %4559 = dma.vmem_to_hbm [thread:$0]  %s4552, 512, %s4554, [#allocation3], 128, 128, 8
    $region69: #{tpu_custom_call.1} parent=1 // pred_fallthru
      _
    // Predicated region
    $region70: #{tpu_custom_call.1} parent=1 // pred_check
      _
    $region71: #{tpu_custom_call.1} parent=1 // pred_check_branch
      %4561 = sbr.rel (0) target = $region73
    $region72: #{tpu_custom_call.1} parent=1 // pred_region
      %4563 = dma.done [#allocation3], 512
    $region73: #{tpu_custom_call.1} parent=1 // pred_fallthru
      _
    %4564 = vsyncpa [#allocation3], 1

</llo_original>
